<compile_context>
chip_gen: v5e
topology: v5e:2x2
jax: 0.10.0
libtpu: 0.0.40
codegen_flags: <defaults>
</compile_context>

<pallas_src>
import functools
import math

import jax
import jax.numpy as jnp
from jax.experimental import pallas as pl
from jax.experimental.pallas import tpu as pltpu


_WEIGHT_ORDER = (
    "norm1_g", "norm1_b", "norm2_g", "norm2_b", "norm3_g", "norm3_b",
    "sa_wq", "sa_bq", "sa_wk", "sa_bk", "sa_wv", "sa_bv", "sa_wo", "sa_bo",
    "ca_wq", "ca_bq", "ca_wk", "ca_bk", "ca_wv", "ca_bv", "ca_wo", "ca_bo",
    "ffn_w1", "ffn_b1", "ffn_w2", "ffn_b2",
)


# --------------------------------------------------------------------------
# Fused decoder-layer kernel (bt batch elements per grid step)
# --------------------------------------------------------------------------

def _decoder_layer_kernel(
    # activations (per-batch-block)
    tgt_ref, mem_ref,
    # layernorm params
    n1g_ref, n1b_ref, n2g_ref, n2b_ref, n3g_ref, n3b_ref,
    # self-attention params (full-width slabs, scale folded into wq/bq)
    sa_wq_ref, sa_bq_ref, sa_wk_ref, sa_bk_ref, sa_wv_ref, sa_bv_ref,
    sa_wo_ref, sa_bo_ref,
    # cross-attention params
    ca_wq_ref, ca_bq_ref, ca_wk_ref, ca_bk_ref, ca_wv_ref, ca_bv_ref,
    ca_wo_ref, ca_bo_ref,
    # feed-forward params
    ffn_w1_ref, ffn_b1_ref, ffn_w2_ref, ffn_b2_ref,
    # outputs: out_ref, then optionally (self_w_ref, cross_w_ref)
    out_ref, *attn_w_refs, nhead, need_weights):
  f32 = jnp.float32
  bt, Lt, D = tgt_ref.shape
  Lm = mem_ref.shape[1]
  Dh = D // nhead
  cdt = sa_wq_ref.dtype                       # MXU operand dtype (bf16)

  tgt = tgt_ref[...].reshape(bt * Lt, D).astype(f32)
  mem = mem_ref[...].reshape(bt * Lm, D).astype(f32)

  def layer_norm(x, g_ref, b_ref):
    mu = jnp.mean(x, axis=-1, keepdims=True)
    var = jnp.mean(jnp.square(x - mu), axis=-1, keepdims=True)
    return (x - mu) * jax.lax.rsqrt(var + 1e-5) * g_ref[...] + b_ref[...]

  def project(x, w_ref, b_ref):
    # Full-width (M, D) @ (D, D) GEMM, bf16 operands, f32 accumulate.
    return jnp.dot(x.astype(cdt), w_ref[...],
                   preferred_element_type=f32) + b_ref[...]

  def mha(x_q, x_kv, Lq, Lk, wq, bq, wk, bk, wv, bv, wo, bo, w_out_ref):
    # Projections stay full width; heads are static lane slices afterwards.
    q = project(x_q, wq, bq).reshape(bt, Lq, D)   # scale already folded in
    k = project(x_kv, wk, bk).reshape(bt, Lk, D)
    v = project(x_kv, wv, bv).reshape(bt, Lk, D)

    ctx_heads = []
    w_sum = jnp.zeros((bt, Lq, Lk), f32) if need_weights else None
    for h in range(nhead):                        # nhead is small & static
      sl = slice(h * Dh, (h + 1) * Dh)
      q_h = q[:, :, sl].astype(cdt)
      k_h = k[:, :, sl].astype(cdt)
      v_h = v[:, :, sl].astype(cdt)
      s = jnp.einsum('bqd,bkd->bqk', q_h, k_h, preferred_element_type=f32)
      s = s - jnp.max(s, axis=-1, keepdims=True)
      e = jnp.exp(s)
      p = e / jnp.sum(e, axis=-1, keepdims=True)  # exact softmax (f32)
      ctx_heads.append(
          jnp.einsum('bqk,bkd->bqd', p.astype(cdt), v_h,
                     preferred_element_type=f32))
      if need_weights:
        w_sum = w_sum + p
    if need_weights:
      # average_attn_weights=True (PyTorch default): mean over heads.
      w_out_ref[...] = (w_sum * (1.0 / nhead)).astype(w_out_ref.dtype)

    ctx = jnp.concatenate(ctx_heads, axis=-1).reshape(bt * Lq, D)
    # Single full-width out-projection.
    return jnp.dot(ctx.astype(cdt), wo[...],
                   preferred_element_type=f32) + bo[...]

  self_w_ref = attn_w_refs[0] if need_weights else None
  cross_w_ref = attn_w_refs[1] if need_weights else None

  # --- self-attention block (pre-norm, as in the reference forward) ---
  t2 = layer_norm(tgt, n1g_ref, n1b_ref)
  sa = mha(t2, t2, Lt, Lt, sa_wq_ref, sa_bq_ref, sa_wk_ref, sa_bk_ref,
           sa_wv_ref, sa_bv_ref, sa_wo_ref, sa_bo_ref, self_w_ref)
  x1 = tgt + sa                                   # dropout1 == identity

  # --- cross-attention block ---
  t2 = layer_norm(x1, n2g_ref, n2b_ref)
  ca = mha(t2, mem, Lt, Lm, ca_wq_ref, ca_bq_ref, ca_wk_ref, ca_bk_ref,
           ca_wv_ref, ca_bv_ref, ca_wo_ref, ca_bo_ref, cross_w_ref)
  x2 = x1 + ca                                    # dropout2 == identity

  # --- feed-forward block (relu) ---
  t2 = layer_norm(x2, n3g_ref, n3b_ref)
  h = jnp.dot(t2.astype(cdt), ffn_w1_ref[...],
              preferred_element_type=f32) + ffn_b1_ref[...]
  h = jnp.maximum(h, 0.0)
  y = jnp.dot(h.astype(cdt), ffn_w2_ref[...],
              preferred_element_type=f32) + ffn_b2_ref[...]
  out_ref[...] = (x2 + y).reshape(bt, Lt, D).astype(out_ref.dtype)


# --------------------------------------------------------------------------
# Wrapper
# --------------------------------------------------------------------------

def _const_index_map(ndim):
  return lambda b: (0,) * ndim


def _pick_batch_block(B, Lt, batch_block):
  if batch_block is not None:
    assert B % batch_block == 0
    return batch_block
  # Fold batch elements until the GEMM M dim (~bt*Lt) fills MXU rows.
  best = 1
  for d in range(1, B + 1):
    if B % d == 0 and d * Lt <= 128:
      best = d
  return best
  # TODO(synk): on v7x, prefer keeping grid size >= 2 so both TensorCores
  # are busy when B is large enough.


def _estimate_vmem_bytes(weights, bt, Lt, Lm, D, F, need_weights):
  wbytes = sum(int(w.size) * jnp.dtype(w.dtype).itemsize for w in weights)
  act_in = (bt * Lt * D + bt * Lm * D) * 4
  act_out = bt * Lt * D * 4
  if need_weights:
    act_out += bt * Lt * (Lt + Lm) * 4
  temps = (bt * Lt * F * 4 + 8 * bt * Lt * D * 4
           + 4 * bt * Lt * max(Lt, Lm) * 4)
  est = 2 * wbytes + 2 * (act_in + act_out) + temps + (4 << 20)
  return int(min(64 << 20, max(16 << 20, est)))   # v7x-safe ceiling


def transformer_decoder_layer(tgt, memory, kparams, nhead, *,
                              batch_block=None, need_weights=True):
  """tgt: (B, Lt, D), memory: (B, Lm, D). kparams from prepare_kernel_params."""
  B, Lt, D = tgt.shape
  Lm = memory.shape[1]
  bt = _pick_batch_block(B, Lt, batch_block)
  grid = (B // bt,)

  weights = [kparams[k] for k in _WEIGHT_ORDER]
  F = kparams["ffn_w1"].shape[-1]

  kern = functools.partial(_decoder_layer_kernel, nhead=nhead,
                           need_weights=need_weights)

  in_specs = [
      pl.BlockSpec((bt, Lt, D), lambda b: (b, 0, 0)),
      pl.BlockSpec((bt, Lm, D), lambda b: (b, 0, 0)),
  ] + [pl.BlockSpec(w.shape, _const_index_map(w.ndim)) for w in weights]

  out_spec_main = pl.BlockSpec((bt, Lt, D), lambda b: (b, 0, 0))
  if need_weights:
    out_shape = (
        jax.ShapeDtypeStruct((B, Lt, D), tgt.dtype),
        jax.ShapeDtypeStruct((B, Lt, Lt), jnp.float32),
        jax.ShapeDtypeStruct((B, Lt, Lm), jnp.float32),
    )
    out_specs = (
        out_spec_main,
        pl.BlockSpec((bt, Lt, Lt), lambda b: (b, 0, 0)),
        pl.BlockSpec((bt, Lt, Lm), lambda b: (b, 0, 0)),
    )
  else:
    out_shape = jax.ShapeDtypeStruct((B, Lt, D), tgt.dtype)
    out_specs = out_spec_main

  vmem_limit = _estimate_vmem_bytes(weights, bt, Lt, Lm, D, F, need_weights)

  result = pl.pallas_call(
      kern,
      out_shape=out_shape,
      grid=grid,
      in_specs=in_specs,
      out_specs=out_specs,
      compiler_params=pltpu.CompilerParams(
          dimension_semantics=("parallel",),
          vmem_limit_bytes=vmem_limit),
  )(tgt, memory, *weights)

  if need_weights:
    out, self_w, cross_w = result
    return out, self_w, cross_w
  return result


# --------------------------------------------------------------------------
# One-time parameter preparation (transposes, scale folding, bf16 packing)
# --------------------------------------------------------------------------

def prepare_kernel_params(params, d_model, nhead, param_dtype=jnp.bfloat16):
  D = d_model
  Dh = D // nhead
  scale = 1.0 / math.sqrt(Dh)

  def mha_prep(p):
    in_w = p["in_proj_weight"].astype(jnp.float32)   # (3D, D)
    in_b = p["in_proj_bias"].astype(jnp.float32)     # (3D,)
    # y = x @ W.T ; fold the softmax scale into the Q projection.
    wq = (in_w[:D] * scale).T.astype(param_dtype)            # (D, D)
    bq = (in_b[:D] * scale).reshape(1, D)
    wk = in_w[D:2 * D].T.astype(param_dtype)
    bk = in_b[D:2 * D].reshape(1, D)
    wv = in_w[2 * D:].T.astype(param_dtype)
    bv = in_b[2 * D:].reshape(1, D)
    wo = p["out_proj_weight"].T.astype(param_dtype)          # (D, D)
    bo = p["out_proj_bias"].astype(jnp.float32).reshape(1, D)
    return wq, bq, wk, bk, wv, bv, wo, bo

  sa = mha_prep(params["self_attn"])
  ca = mha_prep(params["cross_attn"])
  F = params["linear1_w"].shape[0]

  kp = {
      "norm1_g": params["norm1_g"].reshape(1, D).astype(jnp.float32),
      "norm1_b": params["norm1_b"].reshape(1, D).astype(jnp.float32),
      "norm2_g": params["norm2_g"].reshape(1, D).astype(jnp.float32),
      "norm2_b": params["norm2_b"].reshape(1, D).astype(jnp.float32),
      "norm3_g": params["norm3_g"].reshape(1, D).astype(jnp.float32),
      "norm3_b": params["norm3_b"].reshape(1, D).astype(jnp.float32),
      "ffn_w1": params["linear1_w"].T.astype(param_dtype),   # (D, F)
      "ffn_b1": params["linear1_b"].reshape(1, F).astype(jnp.float32),
      "ffn_w2": params["linear2_w"].T.astype(param_dtype),   # (F, D)
      "ffn_b2": params["linear2_b"].reshape(1, D).astype(jnp.float32),
  }
  for name, val in zip(("sa_wq", "sa_bq", "sa_wk", "sa_bk", "sa_wv", "sa_bv",
                        "sa_wo", "sa_bo"), sa):
    kp[name] = val
  for name, val in zip(("ca_wq", "ca_bq", "ca_wk", "ca_bk", "ca_wv", "ca_bv",
                        "ca_wo", "ca_bo"), ca):
    kp[name] = val
  return kp


# --------------------------------------------------------------------------
# Deterministic PyTorch-layout parameter init + example run
# --------------------------------------------------------------------------

def init_params(key, d_model, nhead, dim_feedforward):
  ks = jax.random.split(key, 6)
  s = 0.02

  def mha_params(k1, k2):
    return {
        "in_proj_weight": s * jax.random.normal(k1, (3 * d_model, d_model), jnp.float32),
        "in_proj_bias": jnp.zeros((3 * d_model,), jnp.float32),
        "out_proj_weight": s * jax.random.normal(k2, (d_model, d_model), jnp.float32),
        "out_proj_bias": jnp.zeros((d_model,), jnp.float32),
    }

  return {
      "self_attn": mha_params(ks[0], ks[1]),
      "cross_attn": mha_params(ks[2], ks[3]),
      "linear1_w": s * jax.random.normal(ks[4], (dim_feedforward, d_model), jnp.float32),
      "linear1_b": jnp.zeros((dim_feedforward,), jnp.float32),
      "linear2_w": s * jax.random.normal(ks[5], (d_model, dim_feedforward), jnp.float32),
      "linear2_b": jnp.zeros((d_model,), jnp.float32),
      "norm1_g": jnp.ones((d_model,), jnp.float32),
      "norm1_b": jnp.zeros((d_model,), jnp.float32),
      "norm2_g": jnp.ones((d_model,), jnp.float32),
      "norm2_b": jnp.zeros((d_model,), jnp.float32),
      "norm3_g": jnp.ones((d_model,), jnp.float32),
      "norm3_b": jnp.zeros((d_model,), jnp.float32),
  }


if __name__ == "__main__":
  B, Lt, Lm = 2, 8, 16
  d_model, nhead, dim_feedforward = 32, 4, 64

  key = jax.random.PRNGKey(0)
  k_tgt, k_mem, k_par = jax.random.split(key, 3)
  tgt = jax.random.normal(k_tgt, (B, Lt, d_model), jnp.float32)
  memory = jax.random.normal(k_mem, (B, Lm, d_model), jnp.float32)

  params = init_params(k_par, d_model, nhead, dim_feedforward)
  kparams = prepare_kernel_params(params, d_model, nhead)   # one-time packing

  out, self_w, cross_w = transformer_decoder_layer(tgt, memory, kparams, nhead)
  jax.block_until_ready((out, self_w, cross_w))

  assert out.shape == (B, Lt, d_model)
  assert self_w.shape == (B, Lt, Lt)
  assert cross_w.shape == (B, Lt, Lm)
  assert bool(jnp.all(jnp.isfinite(out)))
  # head-averaged softmax rows must sum to 1
  assert bool(jnp.allclose(jnp.sum(self_w, -1), 1.0, atol=1e-2))
  assert bool(jnp.allclose(jnp.sum(cross_w, -1), 1.0, atol=1e-2))
  print("KERNEL_OK")
</pallas_src>

<mosaic_0001>
module attributes {stable_mosaic.version = 11 : i64} {
  func.func @_decoder_layer_kernel(%arg0: i32, %arg1: memref<2x8x32xf32, #tpu.memory_space<vmem>>, %arg2: memref<2x16x32xf32, #tpu.memory_space<vmem>>, %arg3: memref<1x32xf32, #tpu.memory_space<vmem>>, %arg4: memref<1x32xf32, #tpu.memory_space<vmem>>, %arg5: memref<1x32xf32, #tpu.memory_space<vmem>>, %arg6: memref<1x32xf32, #tpu.memory_space<vmem>>, %arg7: memref<1x32xf32, #tpu.memory_space<vmem>>, %arg8: memref<1x32xf32, #tpu.memory_space<vmem>>, %arg9: memref<32x32xbf16, #tpu.memory_space<vmem>>, %arg10: memref<1x32xf32, #tpu.memory_space<vmem>>, %arg11: memref<32x32xbf16, #tpu.memory_space<vmem>>, %arg12: memref<1x32xf32, #tpu.memory_space<vmem>>, %arg13: memref<32x32xbf16, #tpu.memory_space<vmem>>, %arg14: memref<1x32xf32, #tpu.memory_space<vmem>>, %arg15: memref<32x32xbf16, #tpu.memory_space<vmem>>, %arg16: memref<1x32xf32, #tpu.memory_space<vmem>>, %arg17: memref<32x32xbf16, #tpu.memory_space<vmem>>, %arg18: memref<1x32xf32, #tpu.memory_space<vmem>>, %arg19: memref<32x32xbf16, #tpu.memory_space<vmem>>, %arg20: memref<1x32xf32, #tpu.memory_space<vmem>>, %arg21: memref<32x32xbf16, #tpu.memory_space<vmem>>, %arg22: memref<1x32xf32, #tpu.memory_space<vmem>>, %arg23: memref<32x32xbf16, #tpu.memory_space<vmem>>, %arg24: memref<1x32xf32, #tpu.memory_space<vmem>>, %arg25: memref<32x64xbf16, #tpu.memory_space<vmem>>, %arg26: memref<1x64xf32, #tpu.memory_space<vmem>>, %arg27: memref<64x32xbf16, #tpu.memory_space<vmem>>, %arg28: memref<1x32xf32, #tpu.memory_space<vmem>>, %arg29: memref<2x8x32xf32, #tpu.memory_space<vmem>>, %arg30: memref<2x8x8xf32, #tpu.memory_space<vmem>>, %arg31: memref<2x8x16xf32, #tpu.memory_space<vmem>>) attributes {dimension_semantics = [#tpu.dimension_semantics<parallel>], iteration_bounds = array<i64: 1>, scalar_prefetch = 0 : i64, scratch_operands = 0 : i64, tpu.core_type = #tpu.core_type<tc>, window_params = [{transform_indices = @transform_0, window_bounds = array<i64: 2, 8, 32>}, {transform_indices = @transform_1, window_bounds = array<i64: 2, 16, 32>}, {pipeline_mode = #tpu.pipeline_mode<synchronous>, transform_indices = @transform_2, window_bounds = array<i64: 1, 32>}, {pipeline_mode = #tpu.pipeline_mode<synchronous>, transform_indices = @transform_3, window_bounds = array<i64: 1, 32>}, {pipeline_mode = #tpu.pipeline_mode<synchronous>, transform_indices = @transform_4, window_bounds = array<i64: 1, 32>}, {pipeline_mode = #tpu.pipeline_mode<synchronous>, transform_indices = @transform_5, window_bounds = array<i64: 1, 32>}, {pipeline_mode = #tpu.pipeline_mode<synchronous>, transform_indices = @transform_6, window_bounds = array<i64: 1, 32>}, {pipeline_mode = #tpu.pipeline_mode<synchronous>, transform_indices = @transform_7, window_bounds = array<i64: 1, 32>}, {pipeline_mode = #tpu.pipeline_mode<synchronous>, transform_indices = @transform_8, window_bounds = array<i64: 32, 32>}, {pipeline_mode = #tpu.pipeline_mode<synchronous>, transform_indices = @transform_9, window_bounds = array<i64: 1, 32>}, {pipeline_mode = #tpu.pipeline_mode<synchronous>, transform_indices = @transform_10, window_bounds = array<i64: 32, 32>}, {pipeline_mode = #tpu.pipeline_mode<synchronous>, transform_indices = @transform_11, window_bounds = array<i64: 1, 32>}, {pipeline_mode = #tpu.pipeline_mode<synchronous>, transform_indices = @transform_12, window_bounds = array<i64: 32, 32>}, {pipeline_mode = #tpu.pipeline_mode<synchronous>, transform_indices = @transform_13, window_bounds = array<i64: 1, 32>}, {pipeline_mode = #tpu.pipeline_mode<synchronous>, transform_indices = @transform_14, window_bounds = array<i64: 32, 32>}, {pipeline_mode = #tpu.pipeline_mode<synchronous>, transform_indices = @transform_15, window_bounds = array<i64: 1, 32>}, {pipeline_mode = #tpu.pipeline_mode<synchronous>, transform_indices = @transform_16, window_bounds = array<i64: 32, 32>}, {pipeline_mode = #tpu.pipeline_mode<synchronous>, transform_indices = @transform_17, window_bounds = array<i64: 1, 32>}, {pipeline_mode = #tpu.pipeline_mode<synchronous>, transform_indices = @transform_18, window_bounds = array<i64: 32, 32>}, {pipeline_mode = #tpu.pipeline_mode<synchronous>, transform_indices = @transform_19, window_bounds = array<i64: 1, 32>}, {pipeline_mode = #tpu.pipeline_mode<synchronous>, transform_indices = @transform_20, window_bounds = array<i64: 32, 32>}, {pipeline_mode = #tpu.pipeline_mode<synchronous>, transform_indices = @transform_21, window_bounds = array<i64: 1, 32>}, {pipeline_mode = #tpu.pipeline_mode<synchronous>, transform_indices = @transform_22, window_bounds = array<i64: 32, 32>}, {pipeline_mode = #tpu.pipeline_mode<synchronous>, transform_indices = @transform_23, window_bounds = array<i64: 1, 32>}, {pipeline_mode = #tpu.pipeline_mode<synchronous>, transform_indices = @transform_24, window_bounds = array<i64: 32, 64>}, {pipeline_mode = #tpu.pipeline_mode<synchronous>, transform_indices = @transform_25, window_bounds = array<i64: 1, 64>}, {pipeline_mode = #tpu.pipeline_mode<synchronous>, transform_indices = @transform_26, window_bounds = array<i64: 64, 32>}, {pipeline_mode = #tpu.pipeline_mode<synchronous>, transform_indices = @transform_27, window_bounds = array<i64: 1, 32>}, {transform_indices = @transform_28, window_bounds = array<i64: 2, 8, 32>}, {transform_indices = @transform_29, window_bounds = array<i64: 2, 8, 8>}, {transform_indices = @transform_30, window_bounds = array<i64: 2, 8, 16>}]} {
    %c0 = arith.constant 0 : index
    %c0_0 = arith.constant 0 : index
    %c0_1 = arith.constant 0 : index
    %0 = vector.load %arg1[%c0, %c0_0, %c0_1] : memref<2x8x32xf32, #tpu.memory_space<vmem>>, vector<2x8x32xf32>
    %1 = vector.shape_cast %0 : vector<2x8x32xf32> to vector<16x32xf32>
    %c0_2 = arith.constant 0 : index
    %c0_3 = arith.constant 0 : index
    %c0_4 = arith.constant 0 : index
    %2 = vector.load %arg2[%c0_2, %c0_3, %c0_4] : memref<2x16x32xf32, #tpu.memory_space<vmem>>, vector<2x16x32xf32>
    %3 = vector.shape_cast %2 : vector<2x16x32xf32> to vector<32x32xf32>
    %cst = arith.constant dense<0.000000e+00> : vector<16xf32>
    %4 = vector.multi_reduction <add>, %1, %cst [1] : vector<16x32xf32> to vector<16xf32>
    %5 = vector.shape_cast %4 : vector<16xf32> to vector<16x1xf32>
    %cst_5 = arith.constant 3.200000e+01 : f32
    %6 = vector.broadcast %cst_5 : f32 to vector<16x1xf32>
    %7 = arith.divf %5, %6 : vector<16x1xf32>
    %8 = vector.broadcast %7 : vector<16x1xf32> to vector<16x32xf32>
    %9 = arith.subf %1, %8 : vector<16x32xf32>
    %10 = arith.mulf %9, %9 : vector<16x32xf32>
    %cst_6 = arith.constant dense<0.000000e+00> : vector<16xf32>
    %11 = vector.multi_reduction <add>, %10, %cst_6 [1] : vector<16x32xf32> to vector<16xf32>
    %12 = vector.shape_cast %11 : vector<16xf32> to vector<16x1xf32>
    %cst_7 = arith.constant 3.200000e+01 : f32
    %13 = vector.broadcast %cst_7 : f32 to vector<16x1xf32>
    %14 = arith.divf %12, %13 : vector<16x1xf32>
    %15 = vector.broadcast %7 : vector<16x1xf32> to vector<16x32xf32>
    %16 = arith.subf %1, %15 : vector<16x32xf32>
    %cst_8 = arith.constant 9.99999974E-6 : f32
    %17 = vector.broadcast %cst_8 : f32 to vector<16x1xf32>
    %18 = arith.addf %14, %17 : vector<16x1xf32>
    %19 = math.rsqrt %18 : vector<16x1xf32>
    %20 = vector.broadcast %19 : vector<16x1xf32> to vector<16x32xf32>
    %21 = arith.mulf %16, %20 : vector<16x32xf32>
    %c0_9 = arith.constant 0 : index
    %c0_10 = arith.constant 0 : index
    %22 = vector.load %arg3[%c0_9, %c0_10] : memref<1x32xf32, #tpu.memory_space<vmem>>, vector<1x32xf32>
    %23 = vector.broadcast %22 : vector<1x32xf32> to vector<16x32xf32>
    %24 = arith.mulf %21, %23 : vector<16x32xf32>
    %c0_11 = arith.constant 0 : index
    %c0_12 = arith.constant 0 : index
    %25 = vector.load %arg4[%c0_11, %c0_12] : memref<1x32xf32, #tpu.memory_space<vmem>>, vector<1x32xf32>
    %26 = vector.broadcast %25 : vector<1x32xf32> to vector<16x32xf32>
    %27 = arith.addf %24, %26 : vector<16x32xf32>
    %28 = arith.truncf %27 : vector<16x32xf32> to vector<16x32xbf16>
    %c0_13 = arith.constant 0 : index
    %c0_14 = arith.constant 0 : index
    %29 = vector.load %arg9[%c0_13, %c0_14] : memref<32x32xbf16, #tpu.memory_space<vmem>>, vector<32x32xbf16>
    %cst_15 = arith.constant dense<0.000000e+00> : vector<16x32xf32>
    %30 = tpu.matmul %28, %29, %cst_15 {dimension_numbers = #tpu.dot_dimension_numbers<[1], [0], [0], [1], [0, 0, 1, 1], [], []>} : vector<16x32xbf16>, vector<32x32xbf16>, vector<16x32xf32> -> vector<16x32xf32>
    %c0_16 = arith.constant 0 : index
    %c0_17 = arith.constant 0 : index
    %31 = vector.load %arg10[%c0_16, %c0_17] : memref<1x32xf32, #tpu.memory_space<vmem>>, vector<1x32xf32>
    %32 = vector.broadcast %31 : vector<1x32xf32> to vector<16x32xf32>
    %33 = arith.addf %30, %32 : vector<16x32xf32>
    %34 = vector.shape_cast %33 : vector<16x32xf32> to vector<2x8x32xf32>
    %35 = arith.truncf %27 : vector<16x32xf32> to vector<16x32xbf16>
    %c0_18 = arith.constant 0 : index
    %c0_19 = arith.constant 0 : index
    %36 = vector.load %arg11[%c0_18, %c0_19] : memref<32x32xbf16, #tpu.memory_space<vmem>>, vector<32x32xbf16>
    %cst_20 = arith.constant dense<0.000000e+00> : vector<16x32xf32>
    %37 = tpu.matmul %35, %36, %cst_20 {dimension_numbers = #tpu.dot_dimension_numbers<[1], [0], [0], [1], [0, 0, 1, 1], [], []>} : vector<16x32xbf16>, vector<32x32xbf16>, vector<16x32xf32> -> vector<16x32xf32>
    %c0_21 = arith.constant 0 : index
    %c0_22 = arith.constant 0 : index
    %38 = vector.load %arg12[%c0_21, %c0_22] : memref<1x32xf32, #tpu.memory_space<vmem>>, vector<1x32xf32>
    %39 = vector.broadcast %38 : vector<1x32xf32> to vector<16x32xf32>
    %40 = arith.addf %37, %39 : vector<16x32xf32>
    %41 = vector.shape_cast %40 : vector<16x32xf32> to vector<2x8x32xf32>
    %42 = arith.truncf %27 : vector<16x32xf32> to vector<16x32xbf16>
    %c0_23 = arith.constant 0 : index
    %c0_24 = arith.constant 0 : index
    %43 = vector.load %arg13[%c0_23, %c0_24] : memref<32x32xbf16, #tpu.memory_space<vmem>>, vector<32x32xbf16>
    %cst_25 = arith.constant dense<0.000000e+00> : vector<16x32xf32>
    %44 = tpu.matmul %42, %43, %cst_25 {dimension_numbers = #tpu.dot_dimension_numbers<[1], [0], [0], [1], [0, 0, 1, 1], [], []>} : vector<16x32xbf16>, vector<32x32xbf16>, vector<16x32xf32> -> vector<16x32xf32>
    %c0_26 = arith.constant 0 : index
    %c0_27 = arith.constant 0 : index
    %45 = vector.load %arg14[%c0_26, %c0_27] : memref<1x32xf32, #tpu.memory_space<vmem>>, vector<1x32xf32>
    %46 = vector.broadcast %45 : vector<1x32xf32> to vector<16x32xf32>
    %47 = arith.addf %44, %46 : vector<16x32xf32>
    %48 = vector.shape_cast %47 : vector<16x32xf32> to vector<2x8x32xf32>
    %cst_28 = arith.constant 0.000000e+00 : f32
    %49 = vector.broadcast %cst_28 : f32 to vector<2x8x8xf32>
    %50 = vector.extract_strided_slice %34 {offsets = [0, 0, 0], sizes = [2, 8, 8], strides = [1, 1, 1]} : vector<2x8x32xf32> to vector<2x8x8xf32>
    %51 = arith.truncf %50 : vector<2x8x8xf32> to vector<2x8x8xbf16>
    %52 = vector.extract_strided_slice %41 {offsets = [0, 0, 0], sizes = [2, 8, 8], strides = [1, 1, 1]} : vector<2x8x32xf32> to vector<2x8x8xf32>
    %53 = arith.truncf %52 : vector<2x8x8xf32> to vector<2x8x8xbf16>
    %54 = vector.extract_strided_slice %48 {offsets = [0, 0, 0], sizes = [2, 8, 8], strides = [1, 1, 1]} : vector<2x8x32xf32> to vector<2x8x8xf32>
    %55 = arith.truncf %54 : vector<2x8x8xf32> to vector<2x8x8xbf16>
    "tpu.trace_start"() <{level = 10 : i32, message = "bqd,bkd->bqk"}> : () -> ()
    %cst_29 = arith.constant dense<0.000000e+00> : vector<2x8x8xf32>
    %56 = tpu.matmul %51, %53, %cst_29 {dimension_numbers = #tpu.dot_dimension_numbers<[2], [2], [1], [1], [0, 0, 0, 1, 1, 1], [0], [0]>} : vector<2x8x8xbf16>, vector<2x8x8xbf16>, vector<2x8x8xf32> -> vector<2x8x8xf32>
    "tpu.trace_stop"() : () -> ()
    %cst_30 = arith.constant dense<0xFF800000> : vector<2x8xf32>
    %57 = vector.multi_reduction <maximumf>, %56, %cst_30 [2] : vector<2x8x8xf32> to vector<2x8xf32>
    %58 = vector.shape_cast %57 : vector<2x8xf32> to vector<2x8x1xf32>
    %59 = vector.broadcast %58 : vector<2x8x1xf32> to vector<2x8x8xf32>
    %60 = arith.subf %56, %59 : vector<2x8x8xf32>
    %61 = math.exp %60 : vector<2x8x8xf32>
    %cst_31 = arith.constant dense<0.000000e+00> : vector<2x8xf32>
    %62 = vector.multi_reduction <add>, %61, %cst_31 [2] : vector<2x8x8xf32> to vector<2x8xf32>
    %63 = vector.shape_cast %62 : vector<2x8xf32> to vector<2x8x1xf32>
    %64 = vector.broadcast %63 : vector<2x8x1xf32> to vector<2x8x8xf32>
    %65 = arith.divf %61, %64 : vector<2x8x8xf32>
    %66 = arith.truncf %65 : vector<2x8x8xf32> to vector<2x8x8xbf16>
    "tpu.trace_start"() <{level = 10 : i32, message = "bqk,bkd->bqd"}> : () -> ()
    %cst_32 = arith.constant dense<0.000000e+00> : vector<2x8x8xf32>
    %67 = tpu.matmul %66, %55, %cst_32 {dimension_numbers = #tpu.dot_dimension_numbers<[2], [1], [1], [2], [0, 0, 0, 1, 1, 2], [0], [0]>} : vector<2x8x8xbf16>, vector<2x8x8xbf16>, vector<2x8x8xf32> -> vector<2x8x8xf32>
    "tpu.trace_stop"() : () -> ()
    %68 = arith.addf %49, %65 : vector<2x8x8xf32>
    %69 = vector.extract_strided_slice %34 {offsets = [0, 0, 8], sizes = [2, 8, 8], strides = [1, 1, 1]} : vector<2x8x32xf32> to vector<2x8x8xf32>
    %70 = arith.truncf %69 : vector<2x8x8xf32> to vector<2x8x8xbf16>
    %71 = vector.extract_strided_slice %41 {offsets = [0, 0, 8], sizes = [2, 8, 8], strides = [1, 1, 1]} : vector<2x8x32xf32> to vector<2x8x8xf32>
    %72 = arith.truncf %71 : vector<2x8x8xf32> to vector<2x8x8xbf16>
    %73 = vector.extract_strided_slice %48 {offsets = [0, 0, 8], sizes = [2, 8, 8], strides = [1, 1, 1]} : vector<2x8x32xf32> to vector<2x8x8xf32>
    %74 = arith.truncf %73 : vector<2x8x8xf32> to vector<2x8x8xbf16>
    "tpu.trace_start"() <{level = 10 : i32, message = "bqd,bkd->bqk"}> : () -> ()
    %cst_33 = arith.constant dense<0.000000e+00> : vector<2x8x8xf32>
    %75 = tpu.matmul %70, %72, %cst_33 {dimension_numbers = #tpu.dot_dimension_numbers<[2], [2], [1], [1], [0, 0, 0, 1, 1, 1], [0], [0]>} : vector<2x8x8xbf16>, vector<2x8x8xbf16>, vector<2x8x8xf32> -> vector<2x8x8xf32>
    "tpu.trace_stop"() : () -> ()
    %cst_34 = arith.constant dense<0xFF800000> : vector<2x8xf32>
    %76 = vector.multi_reduction <maximumf>, %75, %cst_34 [2] : vector<2x8x8xf32> to vector<2x8xf32>
    %77 = vector.shape_cast %76 : vector<2x8xf32> to vector<2x8x1xf32>
    %78 = vector.broadcast %77 : vector<2x8x1xf32> to vector<2x8x8xf32>
    %79 = arith.subf %75, %78 : vector<2x8x8xf32>
    %80 = math.exp %79 : vector<2x8x8xf32>
    %cst_35 = arith.constant dense<0.000000e+00> : vector<2x8xf32>
    %81 = vector.multi_reduction <add>, %80, %cst_35 [2] : vector<2x8x8xf32> to vector<2x8xf32>
    %82 = vector.shape_cast %81 : vector<2x8xf32> to vector<2x8x1xf32>
    %83 = vector.broadcast %82 : vector<2x8x1xf32> to vector<2x8x8xf32>
    %84 = arith.divf %80, %83 : vector<2x8x8xf32>
    %85 = arith.truncf %84 : vector<2x8x8xf32> to vector<2x8x8xbf16>
    "tpu.trace_start"() <{level = 10 : i32, message = "bqk,bkd->bqd"}> : () -> ()
    %cst_36 = arith.constant dense<0.000000e+00> : vector<2x8x8xf32>
    %86 = tpu.matmul %85, %74, %cst_36 {dimension_numbers = #tpu.dot_dimension_numbers<[2], [1], [1], [2], [0, 0, 0, 1, 1, 2], [0], [0]>} : vector<2x8x8xbf16>, vector<2x8x8xbf16>, vector<2x8x8xf32> -> vector<2x8x8xf32>
    "tpu.trace_stop"() : () -> ()
    %87 = arith.addf %68, %84 : vector<2x8x8xf32>
    %88 = vector.extract_strided_slice %34 {offsets = [0, 0, 16], sizes = [2, 8, 8], strides = [1, 1, 1]} : vector<2x8x32xf32> to vector<2x8x8xf32>
    %89 = arith.truncf %88 : vector<2x8x8xf32> to vector<2x8x8xbf16>
    %90 = vector.extract_strided_slice %41 {offsets = [0, 0, 16], sizes = [2, 8, 8], strides = [1, 1, 1]} : vector<2x8x32xf32> to vector<2x8x8xf32>
    %91 = arith.truncf %90 : vector<2x8x8xf32> to vector<2x8x8xbf16>
    %92 = vector.extract_strided_slice %48 {offsets = [0, 0, 16], sizes = [2, 8, 8], strides = [1, 1, 1]} : vector<2x8x32xf32> to vector<2x8x8xf32>
    %93 = arith.truncf %92 : vector<2x8x8xf32> to vector<2x8x8xbf16>
    "tpu.trace_start"() <{level = 10 : i32, message = "bqd,bkd->bqk"}> : () -> ()
    %cst_37 = arith.constant dense<0.000000e+00> : vector<2x8x8xf32>
    %94 = tpu.matmul %89, %91, %cst_37 {dimension_numbers = #tpu.dot_dimension_numbers<[2], [2], [1], [1], [0, 0, 0, 1, 1, 1], [0], [0]>} : vector<2x8x8xbf16>, vector<2x8x8xbf16>, vector<2x8x8xf32> -> vector<2x8x8xf32>
    "tpu.trace_stop"() : () -> ()
    %cst_38 = arith.constant dense<0xFF800000> : vector<2x8xf32>
    %95 = vector.multi_reduction <maximumf>, %94, %cst_38 [2] : vector<2x8x8xf32> to vector<2x8xf32>
    %96 = vector.shape_cast %95 : vector<2x8xf32> to vector<2x8x1xf32>
    %97 = vector.broadcast %96 : vector<2x8x1xf32> to vector<2x8x8xf32>
    %98 = arith.subf %94, %97 : vector<2x8x8xf32>
    %99 = math.exp %98 : vector<2x8x8xf32>
    %cst_39 = arith.constant dense<0.000000e+00> : vector<2x8xf32>
    %100 = vector.multi_reduction <add>, %99, %cst_39 [2] : vector<2x8x8xf32> to vector<2x8xf32>
    %101 = vector.shape_cast %100 : vector<2x8xf32> to vector<2x8x1xf32>
    %102 = vector.broadcast %101 : vector<2x8x1xf32> to vector<2x8x8xf32>
    %103 = arith.divf %99, %102 : vector<2x8x8xf32>
    %104 = arith.truncf %103 : vector<2x8x8xf32> to vector<2x8x8xbf16>
    "tpu.trace_start"() <{level = 10 : i32, message = "bqk,bkd->bqd"}> : () -> ()
    %cst_40 = arith.constant dense<0.000000e+00> : vector<2x8x8xf32>
    %105 = tpu.matmul %104, %93, %cst_40 {dimension_numbers = #tpu.dot_dimension_numbers<[2], [1], [1], [2], [0, 0, 0, 1, 1, 2], [0], [0]>} : vector<2x8x8xbf16>, vector<2x8x8xbf16>, vector<2x8x8xf32> -> vector<2x8x8xf32>
    "tpu.trace_stop"() : () -> ()
    %106 = arith.addf %87, %103 : vector<2x8x8xf32>
    %107 = vector.extract_strided_slice %34 {offsets = [0, 0, 24], sizes = [2, 8, 8], strides = [1, 1, 1]} : vector<2x8x32xf32> to vector<2x8x8xf32>
    %108 = arith.truncf %107 : vector<2x8x8xf32> to vector<2x8x8xbf16>
    %109 = vector.extract_strided_slice %41 {offsets = [0, 0, 24], sizes = [2, 8, 8], strides = [1, 1, 1]} : vector<2x8x32xf32> to vector<2x8x8xf32>
    %110 = arith.truncf %109 : vector<2x8x8xf32> to vector<2x8x8xbf16>
    %111 = vector.extract_strided_slice %48 {offsets = [0, 0, 24], sizes = [2, 8, 8], strides = [1, 1, 1]} : vector<2x8x32xf32> to vector<2x8x8xf32>
    %112 = arith.truncf %111 : vector<2x8x8xf32> to vector<2x8x8xbf16>
    "tpu.trace_start"() <{level = 10 : i32, message = "bqd,bkd->bqk"}> : () -> ()
    %cst_41 = arith.constant dense<0.000000e+00> : vector<2x8x8xf32>
    %113 = tpu.matmul %108, %110, %cst_41 {dimension_numbers = #tpu.dot_dimension_numbers<[2], [2], [1], [1], [0, 0, 0, 1, 1, 1], [0], [0]>} : vector<2x8x8xbf16>, vector<2x8x8xbf16>, vector<2x8x8xf32> -> vector<2x8x8xf32>
    "tpu.trace_stop"() : () -> ()
    %cst_42 = arith.constant dense<0xFF800000> : vector<2x8xf32>
    %114 = vector.multi_reduction <maximumf>, %113, %cst_42 [2] : vector<2x8x8xf32> to vector<2x8xf32>
    %115 = vector.shape_cast %114 : vector<2x8xf32> to vector<2x8x1xf32>
    %116 = vector.broadcast %115 : vector<2x8x1xf32> to vector<2x8x8xf32>
    %117 = arith.subf %113, %116 : vector<2x8x8xf32>
    %118 = math.exp %117 : vector<2x8x8xf32>
    %cst_43 = arith.constant dense<0.000000e+00> : vector<2x8xf32>
    %119 = vector.multi_reduction <add>, %118, %cst_43 [2] : vector<2x8x8xf32> to vector<2x8xf32>
    %120 = vector.shape_cast %119 : vector<2x8xf32> to vector<2x8x1xf32>
    %121 = vector.broadcast %120 : vector<2x8x1xf32> to vector<2x8x8xf32>
    %122 = arith.divf %118, %121 : vector<2x8x8xf32>
    %123 = arith.truncf %122 : vector<2x8x8xf32> to vector<2x8x8xbf16>
    "tpu.trace_start"() <{level = 10 : i32, message = "bqk,bkd->bqd"}> : () -> ()
    %cst_44 = arith.constant dense<0.000000e+00> : vector<2x8x8xf32>
    %124 = tpu.matmul %123, %112, %cst_44 {dimension_numbers = #tpu.dot_dimension_numbers<[2], [1], [1], [2], [0, 0, 0, 1, 1, 2], [0], [0]>} : vector<2x8x8xbf16>, vector<2x8x8xbf16>, vector<2x8x8xf32> -> vector<2x8x8xf32>
    "tpu.trace_stop"() : () -> ()
    %125 = arith.addf %106, %122 : vector<2x8x8xf32>
    %cst_45 = arith.constant 2.500000e-01 : f32
    %126 = vector.broadcast %cst_45 : f32 to vector<2x8x8xf32>
    %127 = arith.mulf %125, %126 : vector<2x8x8xf32>
    %c0_46 = arith.constant 0 : index
    %c0_47 = arith.constant 0 : index
    %c0_48 = arith.constant 0 : index
    %128 = vector.load %arg30[%c0_46, %c0_47, %c0_48] : memref<2x8x8xf32, #tpu.memory_space<vmem>>, vector<2x8x8xf32>
    tpu.vector_store %arg30[%c0_46, %c0_47, %c0_48], %127 {strides = array<i32>} : memref<2x8x8xf32, #tpu.memory_space<vmem>>, vector<2x8x8xf32>,
    %129 = tpu.concatenate %67, %86, %105, %124 in 2 : vector<2x8x8xf32>, vector<2x8x8xf32>, vector<2x8x8xf32>, vector<2x8x8xf32> -> vector<2x8x32xf32>
    %130 = vector.shape_cast %129 : vector<2x8x32xf32> to vector<16x32xf32>
    %131 = arith.truncf %130 : vector<16x32xf32> to vector<16x32xbf16>
    %c0_49 = arith.constant 0 : index
    %c0_50 = arith.constant 0 : index
    %132 = vector.load %arg15[%c0_49, %c0_50] : memref<32x32xbf16, #tpu.memory_space<vmem>>, vector<32x32xbf16>
    %cst_51 = arith.constant dense<0.000000e+00> : vector<16x32xf32>
    %133 = tpu.matmul %131, %132, %cst_51 {dimension_numbers = #tpu.dot_dimension_numbers<[1], [0], [0], [1], [0, 0, 1, 1], [], []>} : vector<16x32xbf16>, vector<32x32xbf16>, vector<16x32xf32> -> vector<16x32xf32>
    %c0_52 = arith.constant 0 : index
    %c0_53 = arith.constant 0 : index
    %134 = vector.load %arg16[%c0_52, %c0_53] : memref<1x32xf32, #tpu.memory_space<vmem>>, vector<1x32xf32>
    %135 = vector.broadcast %134 : vector<1x32xf32> to vector<16x32xf32>
    %136 = arith.addf %133, %135 : vector<16x32xf32>
    %137 = arith.addf %1, %136 : vector<16x32xf32>
    %cst_54 = arith.constant dense<0.000000e+00> : vector<16xf32>
    %138 = vector.multi_reduction <add>, %137, %cst_54 [1] : vector<16x32xf32> to vector<16xf32>
    %139 = vector.shape_cast %138 : vector<16xf32> to vector<16x1xf32>
    %cst_55 = arith.constant 3.200000e+01 : f32
    %140 = vector.broadcast %cst_55 : f32 to vector<16x1xf32>
    %141 = arith.divf %139, %140 : vector<16x1xf32>
    %142 = vector.broadcast %141 : vector<16x1xf32> to vector<16x32xf32>
    %143 = arith.subf %137, %142 : vector<16x32xf32>
    %144 = arith.mulf %143, %143 : vector<16x32xf32>
    %cst_56 = arith.constant dense<0.000000e+00> : vector<16xf32>
    %145 = vector.multi_reduction <add>, %144, %cst_56 [1] : vector<16x32xf32> to vector<16xf32>
    %146 = vector.shape_cast %145 : vector<16xf32> to vector<16x1xf32>
    %cst_57 = arith.constant 3.200000e+01 : f32
    %147 = vector.broadcast %cst_57 : f32 to vector<16x1xf32>
    %148 = arith.divf %146, %147 : vector<16x1xf32>
    %149 = vector.broadcast %141 : vector<16x1xf32> to vector<16x32xf32>
    %150 = arith.subf %137, %149 : vector<16x32xf32>
    %cst_58 = arith.constant 9.99999974E-6 : f32
    %151 = vector.broadcast %cst_58 : f32 to vector<16x1xf32>
    %152 = arith.addf %148, %151 : vector<16x1xf32>
    %153 = math.rsqrt %152 : vector<16x1xf32>
    %154 = vector.broadcast %153 : vector<16x1xf32> to vector<16x32xf32>
    %155 = arith.mulf %150, %154 : vector<16x32xf32>
    %c0_59 = arith.constant 0 : index
    %c0_60 = arith.constant 0 : index
    %156 = vector.load %arg5[%c0_59, %c0_60] : memref<1x32xf32, #tpu.memory_space<vmem>>, vector<1x32xf32>
    %157 = vector.broadcast %156 : vector<1x32xf32> to vector<16x32xf32>
    %158 = arith.mulf %155, %157 : vector<16x32xf32>
    %c0_61 = arith.constant 0 : index
    %c0_62 = arith.constant 0 : index
    %159 = vector.load %arg6[%c0_61, %c0_62] : memref<1x32xf32, #tpu.memory_space<vmem>>, vector<1x32xf32>
    %160 = vector.broadcast %159 : vector<1x32xf32> to vector<16x32xf32>
    %161 = arith.addf %158, %160 : vector<16x32xf32>
    %162 = arith.truncf %161 : vector<16x32xf32> to vector<16x32xbf16>
    %c0_63 = arith.constant 0 : index
    %c0_64 = arith.constant 0 : index
    %163 = vector.load %arg17[%c0_63, %c0_64] : memref<32x32xbf16, #tpu.memory_space<vmem>>, vector<32x32xbf16>
    %cst_65 = arith.constant dense<0.000000e+00> : vector<16x32xf32>
    %164 = tpu.matmul %162, %163, %cst_65 {dimension_numbers = #tpu.dot_dimension_numbers<[1], [0], [0], [1], [0, 0, 1, 1], [], []>} : vector<16x32xbf16>, vector<32x32xbf16>, vector<16x32xf32> -> vector<16x32xf32>
    %c0_66 = arith.constant 0 : index
    %c0_67 = arith.constant 0 : index
    %165 = vector.load %arg18[%c0_66, %c0_67] : memref<1x32xf32, #tpu.memory_space<vmem>>, vector<1x32xf32>
    %166 = vector.broadcast %165 : vector<1x32xf32> to vector<16x32xf32>
    %167 = arith.addf %164, %166 : vector<16x32xf32>
    %168 = vector.shape_cast %167 : vector<16x32xf32> to vector<2x8x32xf32>
    %169 = arith.truncf %3 : vector<32x32xf32> to vector<32x32xbf16>
    %c0_68 = arith.constant 0 : index
    %c0_69 = arith.constant 0 : index
    %170 = vector.load %arg19[%c0_68, %c0_69] : memref<32x32xbf16, #tpu.memory_space<vmem>>, vector<32x32xbf16>
    %cst_70 = arith.constant dense<0.000000e+00> : vector<32x32xf32>
    %171 = tpu.matmul %169, %170, %cst_70 {dimension_numbers = #tpu.dot_dimension_numbers<[1], [0], [0], [1], [0, 0, 1, 1], [], []>} : vector<32x32xbf16>, vector<32x32xbf16>, vector<32x32xf32> -> vector<32x32xf32>
    %c0_71 = arith.constant 0 : index
    %c0_72 = arith.constant 0 : index
    %172 = vector.load %arg20[%c0_71, %c0_72] : memref<1x32xf32, #tpu.memory_space<vmem>>, vector<1x32xf32>
    %173 = vector.broadcast %172 : vector<1x32xf32> to vector<32x32xf32>
    %174 = arith.addf %171, %173 : vector<32x32xf32>
    %175 = vector.shape_cast %174 : vector<32x32xf32> to vector<2x16x32xf32>
    %176 = arith.truncf %3 : vector<32x32xf32> to vector<32x32xbf16>
    %c0_73 = arith.constant 0 : index
    %c0_74 = arith.constant 0 : index
    %177 = vector.load %arg21[%c0_73, %c0_74] : memref<32x32xbf16, #tpu.memory_space<vmem>>, vector<32x32xbf16>
    %cst_75 = arith.constant dense<0.000000e+00> : vector<32x32xf32>
    %178 = tpu.matmul %176, %177, %cst_75 {dimension_numbers = #tpu.dot_dimension_numbers<[1], [0], [0], [1], [0, 0, 1, 1], [], []>} : vector<32x32xbf16>, vector<32x32xbf16>, vector<32x32xf32> -> vector<32x32xf32>
    %c0_76 = arith.constant 0 : index
    %c0_77 = arith.constant 0 : index
    %179 = vector.load %arg22[%c0_76, %c0_77] : memref<1x32xf32, #tpu.memory_space<vmem>>, vector<1x32xf32>
    %180 = vector.broadcast %179 : vector<1x32xf32> to vector<32x32xf32>
    %181 = arith.addf %178, %180 : vector<32x32xf32>
    %182 = vector.shape_cast %181 : vector<32x32xf32> to vector<2x16x32xf32>
    %cst_78 = arith.constant 0.000000e+00 : f32
    %183 = vector.broadcast %cst_78 : f32 to vector<2x8x16xf32>
    %184 = vector.extract_strided_slice %168 {offsets = [0, 0, 0], sizes = [2, 8, 8], strides = [1, 1, 1]} : vector<2x8x32xf32> to vector<2x8x8xf32>
    %185 = arith.truncf %184 : vector<2x8x8xf32> to vector<2x8x8xbf16>
    %186 = vector.extract_strided_slice %175 {offsets = [0, 0, 0], sizes = [2, 16, 8], strides = [1, 1, 1]} : vector<2x16x32xf32> to vector<2x16x8xf32>
    %187 = arith.truncf %186 : vector<2x16x8xf32> to vector<2x16x8xbf16>
    %188 = vector.extract_strided_slice %182 {offsets = [0, 0, 0], sizes = [2, 16, 8], strides = [1, 1, 1]} : vector<2x16x32xf32> to vector<2x16x8xf32>
    %189 = arith.truncf %188 : vector<2x16x8xf32> to vector<2x16x8xbf16>
    "tpu.trace_start"() <{level = 10 : i32, message = "bqd,bkd->bqk"}> : () -> ()
    %cst_79 = arith.constant dense<0.000000e+00> : vector<2x8x16xf32>
    %190 = tpu.matmul %185, %187, %cst_79 {dimension_numbers = #tpu.dot_dimension_numbers<[2], [2], [1], [1], [0, 0, 0, 1, 1, 1], [0], [0]>} : vector<2x8x8xbf16>, vector<2x16x8xbf16>, vector<2x8x16xf32> -> vector<2x8x16xf32>
    "tpu.trace_stop"() : () -> ()
    %cst_80 = arith.constant dense<0xFF800000> : vector<2x8xf32>
    %191 = vector.multi_reduction <maximumf>, %190, %cst_80 [2] : vector<2x8x16xf32> to vector<2x8xf32>
    %192 = vector.shape_cast %191 : vector<2x8xf32> to vector<2x8x1xf32>
    %193 = vector.broadcast %192 : vector<2x8x1xf32> to vector<2x8x16xf32>
    %194 = arith.subf %190, %193 : vector<2x8x16xf32>
    %195 = math.exp %194 : vector<2x8x16xf32>
    %cst_81 = arith.constant dense<0.000000e+00> : vector<2x8xf32>
    %196 = vector.multi_reduction <add>, %195, %cst_81 [2] : vector<2x8x16xf32> to vector<2x8xf32>
    %197 = vector.shape_cast %196 : vector<2x8xf32> to vector<2x8x1xf32>
    %198 = vector.broadcast %197 : vector<2x8x1xf32> to vector<2x8x16xf32>
    %199 = arith.divf %195, %198 : vector<2x8x16xf32>
    %200 = arith.truncf %199 : vector<2x8x16xf32> to vector<2x8x16xbf16>
    "tpu.trace_start"() <{level = 10 : i32, message = "bqk,bkd->bqd"}> : () -> ()
    %cst_82 = arith.constant dense<0.000000e+00> : vector<2x8x8xf32>
    %201 = tpu.matmul %200, %189, %cst_82 {dimension_numbers = #tpu.dot_dimension_numbers<[2], [1], [1], [2], [0, 0, 0, 1, 1, 2], [0], [0]>} : vector<2x8x16xbf16>, vector<2x16x8xbf16>, vector<2x8x8xf32> -> vector<2x8x8xf32>
    "tpu.trace_stop"() : () -> ()
    %202 = arith.addf %183, %199 : vector<2x8x16xf32>
    %203 = vector.extract_strided_slice %168 {offsets = [0, 0, 8], sizes = [2, 8, 8], strides = [1, 1, 1]} : vector<2x8x32xf32> to vector<2x8x8xf32>
    %204 = arith.truncf %203 : vector<2x8x8xf32> to vector<2x8x8xbf16>
    %205 = vector.extract_strided_slice %175 {offsets = [0, 0, 8], sizes = [2, 16, 8], strides = [1, 1, 1]} : vector<2x16x32xf32> to vector<2x16x8xf32>
    %206 = arith.truncf %205 : vector<2x16x8xf32> to vector<2x16x8xbf16>
    %207 = vector.extract_strided_slice %182 {offsets = [0, 0, 8], sizes = [2, 16, 8], strides = [1, 1, 1]} : vector<2x16x32xf32> to vector<2x16x8xf32>
    %208 = arith.truncf %207 : vector<2x16x8xf32> to vector<2x16x8xbf16>
    "tpu.trace_start"() <{level = 10 : i32, message = "bqd,bkd->bqk"}> : () -> ()
    %cst_83 = arith.constant dense<0.000000e+00> : vector<2x8x16xf32>
    %209 = tpu.matmul %204, %206, %cst_83 {dimension_numbers = #tpu.dot_dimension_numbers<[2], [2], [1], [1], [0, 0, 0, 1, 1, 1], [0], [0]>} : vector<2x8x8xbf16>, vector<2x16x8xbf16>, vector<2x8x16xf32> -> vector<2x8x16xf32>
    "tpu.trace_stop"() : () -> ()
    %cst_84 = arith.constant dense<0xFF800000> : vector<2x8xf32>
    %210 = vector.multi_reduction <maximumf>, %209, %cst_84 [2] : vector<2x8x16xf32> to vector<2x8xf32>
    %211 = vector.shape_cast %210 : vector<2x8xf32> to vector<2x8x1xf32>
    %212 = vector.broadcast %211 : vector<2x8x1xf32> to vector<2x8x16xf32>
    %213 = arith.subf %209, %212 : vector<2x8x16xf32>
    %214 = math.exp %213 : vector<2x8x16xf32>
    %cst_85 = arith.constant dense<0.000000e+00> : vector<2x8xf32>
    %215 = vector.multi_reduction <add>, %214, %cst_85 [2] : vector<2x8x16xf32> to vector<2x8xf32>
    %216 = vector.shape_cast %215 : vector<2x8xf32> to vector<2x8x1xf32>
    %217 = vector.broadcast %216 : vector<2x8x1xf32> to vector<2x8x16xf32>
    %218 = arith.divf %214, %217 : vector<2x8x16xf32>
    %219 = arith.truncf %218 : vector<2x8x16xf32> to vector<2x8x16xbf16>
    "tpu.trace_start"() <{level = 10 : i32, message = "bqk,bkd->bqd"}> : () -> ()
    %cst_86 = arith.constant dense<0.000000e+00> : vector<2x8x8xf32>
    %220 = tpu.matmul %219, %208, %cst_86 {dimension_numbers = #tpu.dot_dimension_numbers<[2], [1], [1], [2], [0, 0, 0, 1, 1, 2], [0], [0]>} : vector<2x8x16xbf16>, vector<2x16x8xbf16>, vector<2x8x8xf32> -> vector<2x8x8xf32>
    "tpu.trace_stop"() : () -> ()
    %221 = arith.addf %202, %218 : vector<2x8x16xf32>
    %222 = vector.extract_strided_slice %168 {offsets = [0, 0, 16], sizes = [2, 8, 8], strides = [1, 1, 1]} : vector<2x8x32xf32> to vector<2x8x8xf32>
    %223 = arith.truncf %222 : vector<2x8x8xf32> to vector<2x8x8xbf16>
    %224 = vector.extract_strided_slice %175 {offsets = [0, 0, 16], sizes = [2, 16, 8], strides = [1, 1, 1]} : vector<2x16x32xf32> to vector<2x16x8xf32>
    %225 = arith.truncf %224 : vector<2x16x8xf32> to vector<2x16x8xbf16>
    %226 = vector.extract_strided_slice %182 {offsets = [0, 0, 16], sizes = [2, 16, 8], strides = [1, 1, 1]} : vector<2x16x32xf32> to vector<2x16x8xf32>
    %227 = arith.truncf %226 : vector<2x16x8xf32> to vector<2x16x8xbf16>
    "tpu.trace_start"() <{level = 10 : i32, message = "bqd,bkd->bqk"}> : () -> ()
    %cst_87 = arith.constant dense<0.000000e+00> : vector<2x8x16xf32>
    %228 = tpu.matmul %223, %225, %cst_87 {dimension_numbers = #tpu.dot_dimension_numbers<[2], [2], [1], [1], [0, 0, 0, 1, 1, 1], [0], [0]>} : vector<2x8x8xbf16>, vector<2x16x8xbf16>, vector<2x8x16xf32> -> vector<2x8x16xf32>
    "tpu.trace_stop"() : () -> ()
    %cst_88 = arith.constant dense<0xFF800000> : vector<2x8xf32>
    %229 = vector.multi_reduction <maximumf>, %228, %cst_88 [2] : vector<2x8x16xf32> to vector<2x8xf32>
    %230 = vector.shape_cast %229 : vector<2x8xf32> to vector<2x8x1xf32>
    %231 = vector.broadcast %230 : vector<2x8x1xf32> to vector<2x8x16xf32>
    %232 = arith.subf %228, %231 : vector<2x8x16xf32>
    %233 = math.exp %232 : vector<2x8x16xf32>
    %cst_89 = arith.constant dense<0.000000e+00> : vector<2x8xf32>
    %234 = vector.multi_reduction <add>, %233, %cst_89 [2] : vector<2x8x16xf32> to vector<2x8xf32>
    %235 = vector.shape_cast %234 : vector<2x8xf32> to vector<2x8x1xf32>
    %236 = vector.broadcast %235 : vector<2x8x1xf32> to vector<2x8x16xf32>
    %237 = arith.divf %233, %236 : vector<2x8x16xf32>
    %238 = arith.truncf %237 : vector<2x8x16xf32> to vector<2x8x16xbf16>
    "tpu.trace_start"() <{level = 10 : i32, message = "bqk,bkd->bqd"}> : () -> ()
    %cst_90 = arith.constant dense<0.000000e+00> : vector<2x8x8xf32>
    %239 = tpu.matmul %238, %227, %cst_90 {dimension_numbers = #tpu.dot_dimension_numbers<[2], [1], [1], [2], [0, 0, 0, 1, 1, 2], [0], [0]>} : vector<2x8x16xbf16>, vector<2x16x8xbf16>, vector<2x8x8xf32> -> vector<2x8x8xf32>
    "tpu.trace_stop"() : () -> ()
    %240 = arith.addf %221, %237 : vector<2x8x16xf32>
    %241 = vector.extract_strided_slice %168 {offsets = [0, 0, 24], sizes = [2, 8, 8], strides = [1, 1, 1]} : vector<2x8x32xf32> to vector<2x8x8xf32>
    %242 = arith.truncf %241 : vector<2x8x8xf32> to vector<2x8x8xbf16>
    %243 = vector.extract_strided_slice %175 {offsets = [0, 0, 24], sizes = [2, 16, 8], strides = [1, 1, 1]} : vector<2x16x32xf32> to vector<2x16x8xf32>
    %244 = arith.truncf %243 : vector<2x16x8xf32> to vector<2x16x8xbf16>
    %245 = vector.extract_strided_slice %182 {offsets = [0, 0, 24], sizes = [2, 16, 8], strides = [1, 1, 1]} : vector<2x16x32xf32> to vector<2x16x8xf32>
    %246 = arith.truncf %245 : vector<2x16x8xf32> to vector<2x16x8xbf16>
    "tpu.trace_start"() <{level = 10 : i32, message = "bqd,bkd->bqk"}> : () -> ()
    %cst_91 = arith.constant dense<0.000000e+00> : vector<2x8x16xf32>
    %247 = tpu.matmul %242, %244, %cst_91 {dimension_numbers = #tpu.dot_dimension_numbers<[2], [2], [1], [1], [0, 0, 0, 1, 1, 1], [0], [0]>} : vector<2x8x8xbf16>, vector<2x16x8xbf16>, vector<2x8x16xf32> -> vector<2x8x16xf32>
    "tpu.trace_stop"() : () -> ()
    %cst_92 = arith.constant dense<0xFF800000> : vector<2x8xf32>
    %248 = vector.multi_reduction <maximumf>, %247, %cst_92 [2] : vector<2x8x16xf32> to vector<2x8xf32>
    %249 = vector.shape_cast %248 : vector<2x8xf32> to vector<2x8x1xf32>
    %250 = vector.broadcast %249 : vector<2x8x1xf32> to vector<2x8x16xf32>
    %251 = arith.subf %247, %250 : vector<2x8x16xf32>
    %252 = math.exp %251 : vector<2x8x16xf32>
    %cst_93 = arith.constant dense<0.000000e+00> : vector<2x8xf32>
    %253 = vector.multi_reduction <add>, %252, %cst_93 [2] : vector<2x8x16xf32> to vector<2x8xf32>
    %254 = vector.shape_cast %253 : vector<2x8xf32> to vector<2x8x1xf32>
    %255 = vector.broadcast %254 : vector<2x8x1xf32> to vector<2x8x16xf32>
    %256 = arith.divf %252, %255 : vector<2x8x16xf32>
    %257 = arith.truncf %256 : vector<2x8x16xf32> to vector<2x8x16xbf16>
    "tpu.trace_start"() <{level = 10 : i32, message = "bqk,bkd->bqd"}> : () -> ()
    %cst_94 = arith.constant dense<0.000000e+00> : vector<2x8x8xf32>
    %258 = tpu.matmul %257, %246, %cst_94 {dimension_numbers = #tpu.dot_dimension_numbers<[2], [1], [1], [2], [0, 0, 0, 1, 1, 2], [0], [0]>} : vector<2x8x16xbf16>, vector<2x16x8xbf16>, vector<2x8x8xf32> -> vector<2x8x8xf32>
    "tpu.trace_stop"() : () -> ()
    %259 = arith.addf %240, %256 : vector<2x8x16xf32>
    %cst_95 = arith.constant 2.500000e-01 : f32
    %260 = vector.broadcast %cst_95 : f32 to vector<2x8x16xf32>
    %261 = arith.mulf %259, %260 : vector<2x8x16xf32>
    %c0_96 = arith.constant 0 : index
    %c0_97 = arith.constant 0 : index
    %c0_98 = arith.constant 0 : index
    %262 = vector.load %arg31[%c0_96, %c0_97, %c0_98] : memref<2x8x16xf32, #tpu.memory_space<vmem>>, vector<2x8x16xf32>
    tpu.vector_store %arg31[%c0_96, %c0_97, %c0_98], %261 {strides = array<i32>} : memref<2x8x16xf32, #tpu.memory_space<vmem>>, vector<2x8x16xf32>,
    %263 = tpu.concatenate %201, %220, %239, %258 in 2 : vector<2x8x8xf32>, vector<2x8x8xf32>, vector<2x8x8xf32>, vector<2x8x8xf32> -> vector<2x8x32xf32>
    %264 = vector.shape_cast %263 : vector<2x8x32xf32> to vector<16x32xf32>
    %265 = arith.truncf %264 : vector<16x32xf32> to vector<16x32xbf16>
    %c0_99 = arith.constant 0 : index
    %c0_100 = arith.constant 0 : index
    %266 = vector.load %arg23[%c0_99, %c0_100] : memref<32x32xbf16, #tpu.memory_space<vmem>>, vector<32x32xbf16>
    %cst_101 = arith.constant dense<0.000000e+00> : vector<16x32xf32>
    %267 = tpu.matmul %265, %266, %cst_101 {dimension_numbers = #tpu.dot_dimension_numbers<[1], [0], [0], [1], [0, 0, 1, 1], [], []>} : vector<16x32xbf16>, vector<32x32xbf16>, vector<16x32xf32> -> vector<16x32xf32>
    %c0_102 = arith.constant 0 : index
    %c0_103 = arith.constant 0 : index
    %268 = vector.load %arg24[%c0_102, %c0_103] : memref<1x32xf32, #tpu.memory_space<vmem>>, vector<1x32xf32>
    %269 = vector.broadcast %268 : vector<1x32xf32> to vector<16x32xf32>
    %270 = arith.addf %267, %269 : vector<16x32xf32>
    %271 = arith.addf %137, %270 : vector<16x32xf32>
    %cst_104 = arith.constant dense<0.000000e+00> : vector<16xf32>
    %272 = vector.multi_reduction <add>, %271, %cst_104 [1] : vector<16x32xf32> to vector<16xf32>
    %273 = vector.shape_cast %272 : vector<16xf32> to vector<16x1xf32>
    %cst_105 = arith.constant 3.200000e+01 : f32
    %274 = vector.broadcast %cst_105 : f32 to vector<16x1xf32>
    %275 = arith.divf %273, %274 : vector<16x1xf32>
    %276 = vector.broadcast %275 : vector<16x1xf32> to vector<16x32xf32>
    %277 = arith.subf %271, %276 : vector<16x32xf32>
    %278 = arith.mulf %277, %277 : vector<16x32xf32>
    %cst_106 = arith.constant dense<0.000000e+00> : vector<16xf32>
    %279 = vector.multi_reduction <add>, %278, %cst_106 [1] : vector<16x32xf32> to vector<16xf32>
    %280 = vector.shape_cast %279 : vector<16xf32> to vector<16x1xf32>
    %cst_107 = arith.constant 3.200000e+01 : f32
    %281 = vector.broadcast %cst_107 : f32 to vector<16x1xf32>
    %282 = arith.divf %280, %281 : vector<16x1xf32>
    %283 = vector.broadcast %275 : vector<16x1xf32> to vector<16x32xf32>
    %284 = arith.subf %271, %283 : vector<16x32xf32>
    %cst_108 = arith.constant 9.99999974E-6 : f32
    %285 = vector.broadcast %cst_108 : f32 to vector<16x1xf32>
    %286 = arith.addf %282, %285 : vector<16x1xf32>
    %287 = math.rsqrt %286 : vector<16x1xf32>
    %288 = vector.broadcast %287 : vector<16x1xf32> to vector<16x32xf32>
    %289 = arith.mulf %284, %288 : vector<16x32xf32>
    %c0_109 = arith.constant 0 : index
    %c0_110 = arith.constant 0 : index
    %290 = vector.load %arg7[%c0_109, %c0_110] : memref<1x32xf32, #tpu.memory_space<vmem>>, vector<1x32xf32>
    %291 = vector.broadcast %290 : vector<1x32xf32> to vector<16x32xf32>
    %292 = arith.mulf %289, %291 : vector<16x32xf32>
    %c0_111 = arith.constant 0 : index
    %c0_112 = arith.constant 0 : index
    %293 = vector.load %arg8[%c0_111, %c0_112] : memref<1x32xf32, #tpu.memory_space<vmem>>, vector<1x32xf32>
    %294 = vector.broadcast %293 : vector<1x32xf32> to vector<16x32xf32>
    %295 = arith.addf %292, %294 : vector<16x32xf32>
    %296 = arith.truncf %295 : vector<16x32xf32> to vector<16x32xbf16>
    %c0_113 = arith.constant 0 : index
    %c0_114 = arith.constant 0 : index
    %297 = vector.load %arg25[%c0_113, %c0_114] : memref<32x64xbf16, #tpu.memory_space<vmem>>, vector<32x64xbf16>
    %cst_115 = arith.constant dense<0.000000e+00> : vector<16x64xf32>
    %298 = tpu.matmul %296, %297, %cst_115 {dimension_numbers = #tpu.dot_dimension_numbers<[1], [0], [0], [1], [0, 0, 1, 1], [], []>} : vector<16x32xbf16>, vector<32x64xbf16>, vector<16x64xf32> -> vector<16x64xf32>
    %c0_116 = arith.constant 0 : index
    %c0_117 = arith.constant 0 : index
    %299 = vector.load %arg26[%c0_116, %c0_117] : memref<1x64xf32, #tpu.memory_space<vmem>>, vector<1x64xf32>
    %300 = vector.broadcast %299 : vector<1x64xf32> to vector<16x64xf32>
    %301 = arith.addf %298, %300 : vector<16x64xf32>
    %cst_118 = arith.constant 0.000000e+00 : f32
    %302 = vector.broadcast %cst_118 : f32 to vector<16x64xf32>
    %303 = arith.maximumf %301, %302 : vector<16x64xf32>
    %304 = arith.truncf %303 : vector<16x64xf32> to vector<16x64xbf16>
    %c0_119 = arith.constant 0 : index
    %c0_120 = arith.constant 0 : index
    %305 = vector.load %arg27[%c0_119, %c0_120] : memref<64x32xbf16, #tpu.memory_space<vmem>>, vector<64x32xbf16>
    %cst_121 = arith.constant dense<0.000000e+00> : vector<16x32xf32>
    %306 = tpu.matmul %304, %305, %cst_121 {dimension_numbers = #tpu.dot_dimension_numbers<[1], [0], [0], [1], [0, 0, 1, 1], [], []>} : vector<16x64xbf16>, vector<64x32xbf16>, vector<16x32xf32> -> vector<16x32xf32>
    %c0_122 = arith.constant 0 : index
    %c0_123 = arith.constant 0 : index
    %307 = vector.load %arg28[%c0_122, %c0_123] : memref<1x32xf32, #tpu.memory_space<vmem>>, vector<1x32xf32>
    %308 = vector.broadcast %307 : vector<1x32xf32> to vector<16x32xf32>
    %309 = arith.addf %306, %308 : vector<16x32xf32>
    %310 = arith.addf %271, %309 : vector<16x32xf32>
    %311 = vector.shape_cast %310 : vector<16x32xf32> to vector<2x8x32xf32>
    %c0_124 = arith.constant 0 : index
    %c0_125 = arith.constant 0 : index
    %c0_126 = arith.constant 0 : index
    %312 = vector.load %arg29[%c0_124, %c0_125, %c0_126] : memref<2x8x32xf32, #tpu.memory_space<vmem>>, vector<2x8x32xf32>
    tpu.vector_store %arg29[%c0_124, %c0_125, %c0_126], %311 {strides = array<i32>} : memref<2x8x32xf32, #tpu.memory_space<vmem>>, vector<2x8x32xf32>,
    return
  }
  func.func @transform_0(%arg0: i32) -> (i32, i32, i32) {
    %c0_i32 = arith.constant 0 : i32
    %c0_i32_0 = arith.constant 0 : i32
    %c0_i32_1 = arith.constant 0 : i32
    return %arg0, %c0_i32, %c0_i32_0 : i32, i32, i32
  }
  func.func @transform_1(%arg0: i32) -> (i32, i32, i32) {
    %c0_i32 = arith.constant 0 : i32
    %c0_i32_0 = arith.constant 0 : i32
    %c0_i32_1 = arith.constant 0 : i32
    return %arg0, %c0_i32, %c0_i32_0 : i32, i32, i32
  }
  func.func @transform_2(%arg0: i32) -> (i32, i32) {
    %c0_i32 = arith.constant 0 : i32
    %c0_i32_0 = arith.constant 0 : i32
    %c0_i32_1 = arith.constant 0 : i32
    return %c0_i32, %c0_i32_0 : i32, i32
  }
  func.func @transform_3(%arg0: i32) -> (i32, i32) {
    %c0_i32 = arith.constant 0 : i32
    %c0_i32_0 = arith.constant 0 : i32
    %c0_i32_1 = arith.constant 0 : i32
    return %c0_i32, %c0_i32_0 : i32, i32
  }
  func.func @transform_4(%arg0: i32) -> (i32, i32) {
    %c0_i32 = arith.constant 0 : i32
    %c0_i32_0 = arith.constant 0 : i32
    %c0_i32_1 = arith.constant 0 : i32
    return %c0_i32, %c0_i32_0 : i32, i32
  }
  func.func @transform_5(%arg0: i32) -> (i32, i32) {
    %c0_i32 = arith.constant 0 : i32
    %c0_i32_0 = arith.constant 0 : i32
    %c0_i32_1 = arith.constant 0 : i32
    return %c0_i32, %c0_i32_0 : i32, i32
  }
  func.func @transform_6(%arg0: i32) -> (i32, i32) {
    %c0_i32 = arith.constant 0 : i32
    %c0_i32_0 = arith.constant 0 : i32
    %c0_i32_1 = arith.constant 0 : i32
    return %c0_i32, %c0_i32_0 : i32, i32
  }
  func.func @transform_7(%arg0: i32) -> (i32, i32) {
    %c0_i32 = arith.constant 0 : i32
    %c0_i32_0 = arith.constant 0 : i32
    %c0_i32_1 = arith.constant 0 : i32
    return %c0_i32, %c0_i32_0 : i32, i32
  }
  func.func @transform_8(%arg0: i32) -> (i32, i32) {
    %c0_i32 = arith.constant 0 : i32
    %c0_i32_0 = arith.constant 0 : i32
    %c0_i32_1 = arith.constant 0 : i32
    return %c0_i32, %c0_i32_0 : i32, i32
  }
  func.func @transform_9(%arg0: i32) -> (i32, i32) {
    %c0_i32 = arith.constant 0 : i32
    %c0_i32_0 = arith.constant 0 : i32
    %c0_i32_1 = arith.constant 0 : i32
    return %c0_i32, %c0_i32_0 : i32, i32
  }
  func.func @transform_10(%arg0: i32) -> (i32, i32) {
    %c0_i32 = arith.constant 0 : i32
    %c0_i32_0 = arith.constant 0 : i32
    %c0_i32_1 = arith.constant 0 : i32
    return %c0_i32, %c0_i32_0 : i32, i32
  }
  func.func @transform_11(%arg0: i32) -> (i32, i32) {
    %c0_i32 = arith.constant 0 : i32
    %c0_i32_0 = arith.constant 0 : i32
    %c0_i32_1 = arith.constant 0 : i32
    return %c0_i32, %c0_i32_0 : i32, i32
  }
  func.func @transform_12(%arg0: i32) -> (i32, i32) {
    %c0_i32 = arith.constant 0 : i32
    %c0_i32_0 = arith.constant 0 : i32
    %c0_i32_1 = arith.constant 0 : i32
    return %c0_i32, %c0_i32_0 : i32, i32
  }
  func.func @transform_13(%arg0: i32) -> (i32, i32) {
    %c0_i32 = arith.constant 0 : i32
    %c0_i32_0 = arith.constant 0 : i32
    %c0_i32_1 = arith.constant 0 : i32
    return %c0_i32, %c0_i32_0 : i32, i32
  }
  func.func @transform_14(%arg0: i32) -> (i32, i32) {
    %c0_i32 = arith.constant 0 : i32
    %c0_i32_0 = arith.constant 0 : i32
    %c0_i32_1 = arith.constant 0 : i32
    return %c0_i32, %c0_i32_0 : i32, i32
  }
  func.func @transform_15(%arg0: i32) -> (i32, i32) {
    %c0_i32 = arith.constant 0 : i32
    %c0_i32_0 = arith.constant 0 : i32
    %c0_i32_1 = arith.constant 0 : i32
    return %c0_i32, %c0_i32_0 : i32, i32
  }
  func.func @transform_16(%arg0: i32) -> (i32, i32) {
    %c0_i32 = arith.constant 0 : i32
    %c0_i32_0 = arith.constant 0 : i32
    %c0_i32_1 = arith.constant 0 : i32
    return %c0_i32, %c0_i32_0 : i32, i32
  }
  func.func @transform_17(%arg0: i32) -> (i32, i32) {
    %c0_i32 = arith.constant 0 : i32
    %c0_i32_0 = arith.constant 0 : i32
    %c0_i32_1 = arith.constant 0 : i32
    return %c0_i32, %c0_i32_0 : i32, i32
  }
  func.func @transform_18(%arg0: i32) -> (i32, i32) {
    %c0_i32 = arith.constant 0 : i32
    %c0_i32_0 = arith.constant 0 : i32
    %c0_i32_1 = arith.constant 0 : i32
    return %c0_i32, %c0_i32_0 : i32, i32
  }
  func.func @transform_19(%arg0: i32) -> (i32, i32) {
    %c0_i32 = arith.constant 0 : i32
    %c0_i32_0 = arith.constant 0 : i32
    %c0_i32_1 = arith.constant 0 : i32
    return %c0_i32, %c0_i32_0 : i32, i32
  }
  func.func @transform_20(%arg0: i32) -> (i32, i32) {
    %c0_i32 = arith.constant 0 : i32
    %c0_i32_0 = arith.constant 0 : i32
    %c0_i32_1 = arith.constant 0 : i32
    return %c0_i32, %c0_i32_0 : i32, i32
  }
  func.func @transform_21(%arg0: i32) -> (i32, i32) {
    %c0_i32 = arith.constant 0 : i32
    %c0_i32_0 = arith.constant 0 : i32
    %c0_i32_1 = arith.constant 0 : i32
    return %c0_i32, %c0_i32_0 : i32, i32
  }
  func.func @transform_22(%arg0: i32) -> (i32, i32) {
    %c0_i32 = arith.constant 0 : i32
    %c0_i32_0 = arith.constant 0 : i32
    %c0_i32_1 = arith.constant 0 : i32
    return %c0_i32, %c0_i32_0 : i32, i32
  }
  func.func @transform_23(%arg0: i32) -> (i32, i32) {
    %c0_i32 = arith.constant 0 : i32
    %c0_i32_0 = arith.constant 0 : i32
    %c0_i32_1 = arith.constant 0 : i32
    return %c0_i32, %c0_i32_0 : i32, i32
  }
  func.func @transform_24(%arg0: i32) -> (i32, i32) {
    %c0_i32 = arith.constant 0 : i32
    %c0_i32_0 = arith.constant 0 : i32
    %c0_i32_1 = arith.constant 0 : i32
    return %c0_i32, %c0_i32_0 : i32, i32
  }
  func.func @transform_25(%arg0: i32) -> (i32, i32) {
    %c0_i32 = arith.constant 0 : i32
    %c0_i32_0 = arith.constant 0 : i32
    %c0_i32_1 = arith.constant 0 : i32
    return %c0_i32, %c0_i32_0 : i32, i32
  }
  func.func @transform_26(%arg0: i32) -> (i32, i32) {
    %c0_i32 = arith.constant 0 : i32
    %c0_i32_0 = arith.constant 0 : i32
    %c0_i32_1 = arith.constant 0 : i32
    return %c0_i32, %c0_i32_0 : i32, i32
  }
  func.func @transform_27(%arg0: i32) -> (i32, i32) {
    %c0_i32 = arith.constant 0 : i32
    %c0_i32_0 = arith.constant 0 : i32
    %c0_i32_1 = arith.constant 0 : i32
    return %c0_i32, %c0_i32_0 : i32, i32
  }
  func.func @transform_28(%arg0: i32) -> (i32, i32, i32) {
    %c0_i32 = arith.constant 0 : i32
    %c0_i32_0 = arith.constant 0 : i32
    %c0_i32_1 = arith.constant 0 : i32
    return %arg0, %c0_i32, %c0_i32_0 : i32, i32, i32
  }
  func.func @transform_29(%arg0: i32) -> (i32, i32, i32) {
    %c0_i32 = arith.constant 0 : i32
    %c0_i32_0 = arith.constant 0 : i32
    %c0_i32_1 = arith.constant 0 : i32
    return %arg0, %c0_i32, %c0_i32_0 : i32, i32, i32
  }
  func.func @transform_30(%arg0: i32) -> (i32, i32, i32) {
    %c0_i32 = arith.constant 0 : i32
    %c0_i32_0 = arith.constant 0 : i32
    %c0_i32_1 = arith.constant 0 : i32
    return %arg0, %c0_i32, %c0_i32_0 : i32, i32, i32
  }
}

</mosaic_0001>

<llo_original>
// kernel: tpu_custom_call.1
$region0: #{tpu_custom_call.1}
  #allocation0 [shape = 'u32[]', space=smem, size = 0x4, offset = 0x4, fixed_abs, tag = 'smem constant byte address 0x4 - core index']
  #allocation1 [shape = 'u32[72,128]{1,0:T(1,128)}', space=vmem, size = 0x9000, scoped, tag = 'internal scratch']
  %s0 = inlined_call_operand.smem [shape: u32[31], index: -1, kind: input, shape index: {}]
  %s1 = sld [smem:[%s0]]
  %s2 = scalar_lea.smem %s0, 1
  %s3 = sld [smem:[%s2]]
  %s4 = scalar_lea.smem %s0, 2
  %s5 = sld [smem:[%s4]]
  %s6 = scalar_lea.smem %s0, 3
  %s7 = sld [smem:[%s6]]
  %s8 = scalar_lea.smem %s0, 4
  %s9 = sld [smem:[%s8]]
  %s10 = scalar_lea.smem %s0, 5
  %s11 = sld [smem:[%s10]]
  %s12 = scalar_lea.smem %s0, 6
  %s13 = sld [smem:[%s12]]
  %s14 = scalar_lea.smem %s0, 7
  %s15 = sld [smem:[%s14]]
  %s16 = scalar_lea.smem %s0, 8
  %s17 = sld [smem:[%s16]]
  %s18 = scalar_lea.smem %s0, 9
  %s19 = sld [smem:[%s18]]
  %s20 = scalar_lea.smem %s0, 10
  %s21 = sld [smem:[%s20]]
  %s22 = scalar_lea.smem %s0, 11
  %s23 = sld [smem:[%s22]]
  %s24 = scalar_lea.smem %s0, 12
  %s25 = sld [smem:[%s24]]
  %s26 = scalar_lea.smem %s0, 13
  %s27 = sld [smem:[%s26]]
  %s28 = scalar_lea.smem %s0, 14
  %s29 = sld [smem:[%s28]]
  %s30 = scalar_lea.smem %s0, 15
  %s31 = sld [smem:[%s30]]
  %s32 = scalar_lea.smem %s0, 16
  %s33 = sld [smem:[%s32]]
  %s34 = scalar_lea.smem %s0, 17
  %s35 = sld [smem:[%s34]]
  %s36 = scalar_lea.smem %s0, 18
  %s37 = sld [smem:[%s36]]
  %s38 = scalar_lea.smem %s0, 19
  %s39 = sld [smem:[%s38]]
  %s40 = scalar_lea.smem %s0, 20
  %s41 = sld [smem:[%s40]]
  %s42 = scalar_lea.smem %s0, 21
  %s43 = sld [smem:[%s42]]
  %s44 = scalar_lea.smem %s0, 22
  %s45 = sld [smem:[%s44]]
  %s46 = scalar_lea.smem %s0, 23
  %s47 = sld [smem:[%s46]]
  %s48 = scalar_lea.smem %s0, 24
  %s49 = sld [smem:[%s48]]
  %s50 = scalar_lea.smem %s0, 25
  %s51 = sld [smem:[%s50]]
  %s52 = scalar_lea.smem %s0, 26
  %s53 = sld [smem:[%s52]]
  %s54 = scalar_lea.smem %s0, 27
  %s55 = sld [smem:[%s54]]
  %s56 = scalar_lea.smem %s0, 28
  %s57 = sld [smem:[%s56]]
  %s58 = scalar_lea.smem %s0, 29
  %s59 = sld [smem:[%s58]]
  %s60 = scalar_lea.smem %s0, 30
  %s61 = sld [smem:[%s60]]
  %62 = xla_tuple %s57, %s59, %s61
  %s63 = sld [smem:[#allocation0]]
  $region202: #{tpu_custom_call.1} parent=0
    _
  %s65 = ssub.s32 1, %s63
  %s66 = scalar_select 0, %s65, %s63
  $region1: #{tpu_custom_call.1} parent=0
    #allocation2 [shape = 'u8[8192]{0}', space=vmem, size = 0x2000, scoped, tag = 'input window, operand 8, single buffered']
    #allocation3 [shape = 's32[1]{0}', space=sflag, size = 0x4, scoped, tag = 'scoped memory for tpu_custom_call.1']
    #allocation4 [shape = 's32[1]{0}', space=sflag, size = 0x4, scoped, tag = 'scoped memory for tpu_custom_call.1']
    #allocation5 [shape = 'u8[8192]{0}', space=vmem, size = 0x2000, scoped, tag = 'input window, operand 10, single buffered']
    #allocation6 [shape = 's32[1]{0}', space=sflag, size = 0x4, scoped, tag = 'scoped memory for tpu_custom_call.1']
    #allocation7 [shape = 'u8[8192]{0}', space=vmem, size = 0x2000, scoped, tag = 'input window, operand 12, single buffered']
    #allocation8 [shape = 'u8[512]{0}', space=vmem, size = 0x400, scoped, tag = 'input window, operand 13, single buffered']
    #allocation9 [shape = 's32[1]{0}', space=sflag, size = 0x4, scoped, tag = 'scoped memory for tpu_custom_call.1']
    #allocation10 [shape = 'u8[8192]{0}', space=vmem, size = 0x2000, scoped, tag = 'input window, operand 14, single buffered']
    #allocation11 [shape = 'u8[512]{0}', space=vmem, size = 0x400, scoped, tag = 'input window, operand 15, single buffered']
    #allocation12 [shape = 's32[1]{0}', space=sflag, size = 0x4, scoped, tag = 'scoped memory for tpu_custom_call.1']
    #allocation13 [shape = 'u8[8192]{0}', space=vmem, size = 0x2000, scoped, tag = 'input window, operand 16, single buffered']
    #allocation14 [shape = 'u8[512]{0}', space=vmem, size = 0x400, scoped, tag = 'input window, operand 17, single buffered']
    #allocation15 [shape = 's32[1]{0}', space=sflag, size = 0x4, scoped, tag = 'scoped memory for tpu_custom_call.1']
    #allocation16 [shape = 'u8[8192]{0}', space=vmem, size = 0x2000, scoped, tag = 'input window, operand 18, single buffered']
    #allocation17 [shape = 'u8[512]{0}', space=vmem, size = 0x400, scoped, tag = 'input window, operand 19, single buffered']
    #allocation18 [shape = 's32[1]{0}', space=sflag, size = 0x4, scoped, tag = 'scoped memory for tpu_custom_call.1']
    #allocation19 [shape = 'u8[8192]{0}', space=vmem, size = 0x2000, scoped, tag = 'input window, operand 20, single buffered']
    #allocation20 [shape = 'u8[512]{0}', space=vmem, size = 0x400, scoped, tag = 'input window, operand 21, single buffered']
    #allocation21 [shape = 's32[1]{0}', space=sflag, size = 0x4, scoped, tag = 'scoped memory for tpu_custom_call.1']
    #allocation22 [shape = 'u8[8192]{0}', space=vmem, size = 0x2000, scoped, tag = 'input window, operand 22, single buffered']
    #allocation23 [shape = 'u8[512]{0}', space=vmem, size = 0x400, scoped, tag = 'input window, operand 23, single buffered']
    #allocation24 [shape = 's32[1]{0}', space=sflag, size = 0x4, scoped, tag = 'scoped memory for tpu_custom_call.1']
    #allocation25 [shape = 'u8[8192]{0}', space=vmem, size = 0x2000, scoped, tag = 'input window, operand 24, single buffered']
    #allocation26 [shape = 'u8[512]{0}', space=vmem, size = 0x400, scoped, tag = 'input window, operand 25, single buffered']
    #allocation27 [shape = 's32[1]{0}', space=sflag, size = 0x4, scoped, tag = 'scoped memory for tpu_custom_call.1']
    #allocation28 [shape = 'u8[8192]{0}', space=vmem, size = 0x2000, scoped, tag = 'output window, operand 0, single buffered']
    #allocation29 [shape = 'u8[8192]{0}', space=vmem, size = 0x2000, scoped, tag = 'output window, operand 1, single buffered']
    #allocation30 [shape = 's32[1]{0}', space=sflag, size = 0x4, scoped, tag = 'scoped memory for tpu_custom_call.1']
    #allocation31 [shape = 'u8[8192]{0}', space=vmem, size = 0x2000, scoped, tag = 'output window, operand 2, single buffered']
    %67 = vsyncpa [#allocation3], 0
    %68 = vsyncpa [#allocation6], 0
    %69 = vsyncpa [#allocation9], 0
    %70 = vsyncpa [#allocation12], 0
    %71 = vsyncpa [#allocation15], 0
    %72 = vsyncpa [#allocation18], 0
    %73 = vsyncpa [#allocation21], 0
    %74 = vsyncpa [#allocation24], 0
    %75 = vsyncpa [#allocation27], 0
    %76 = vsyncpa [#allocation4], 0
    %77 = vsyncpa [#allocation30], 0
    // Predicated region
    $region2: #{tpu_custom_call.1} parent=1 // pred_check
      _
    $region3: #{tpu_custom_call.1} parent=1 // pred_check_branch
      %79 = sbr.rel (0) target = $region5
    $region4: #{tpu_custom_call.1} parent=1 // pred_region
      _
    $region5: #{tpu_custom_call.1} parent=1 // pred_fallthru
      _
    // Predicated region
    $region6: #{tpu_custom_call.1} parent=1 // pred_check
      _
    $region7: #{tpu_custom_call.1} parent=1 // pred_check_branch
      %81 = sbr.rel (0) target = $region9
    $region8: #{tpu_custom_call.1} parent=1 // pred_region
      _
    $region9: #{tpu_custom_call.1} parent=1 // pred_fallthru
      _
    // Predicated region
    $region10: #{tpu_custom_call.1} parent=1 // pred_check
      _
    $region11: #{tpu_custom_call.1} parent=1 // pred_check_branch
      %83 = sbr.rel (0) target = $region13
    $region12: #{tpu_custom_call.1} parent=1 // pred_region
      _
    $region13: #{tpu_custom_call.1} parent=1 // pred_fallthru
      _
    // Predicated region
    $region14: #{tpu_custom_call.1} parent=1 // pred_check
      _
    $region15: #{tpu_custom_call.1} parent=1 // pred_check_branch
      %85 = sbr.rel (0) target = $region17
    $region16: #{tpu_custom_call.1} parent=1 // pred_region
      _
    $region17: #{tpu_custom_call.1} parent=1 // pred_fallthru
      _
    // Predicated region
    $region18: #{tpu_custom_call.1} parent=1 // pred_check
      _
    $region19: #{tpu_custom_call.1} parent=1 // pred_check_branch
      %87 = sbr.rel (0) target = $region21
    $region20: #{tpu_custom_call.1} parent=1 // pred_region
      _
    $region21: #{tpu_custom_call.1} parent=1 // pred_fallthru
      _
    // Predicated region
    $region22: #{tpu_custom_call.1} parent=1 // pred_check
      _
    $region23: #{tpu_custom_call.1} parent=1 // pred_check_branch
      %89 = sbr.rel (0) target = $region25
    $region24: #{tpu_custom_call.1} parent=1 // pred_region
      _
    $region25: #{tpu_custom_call.1} parent=1 // pred_fallthru
      _
    // Predicated region
    $region26: #{tpu_custom_call.1} parent=1 // pred_check
      _
    $region27: #{tpu_custom_call.1} parent=1 // pred_check_branch
      %91 = sbr.rel (0) target = $region29
    $region28: #{tpu_custom_call.1} parent=1 // pred_region
      _
    $region29: #{tpu_custom_call.1} parent=1 // pred_fallthru
      _
    // Predicated region
    $region30: #{tpu_custom_call.1} parent=1 // pred_check
      _
    $region31: #{tpu_custom_call.1} parent=1 // pred_check_branch
      %93 = sbr.rel (0) target = $region33
    $region32: #{tpu_custom_call.1} parent=1 // pred_region
      _
    $region33: #{tpu_custom_call.1} parent=1 // pred_fallthru
      _
    // Predicated region
    $region34: #{tpu_custom_call.1} parent=1 // pred_check
      _
    $region35: #{tpu_custom_call.1} parent=1 // pred_check_branch
      %95 = sbr.rel (0) target = $region37
    $region36: #{tpu_custom_call.1} parent=1 // pred_region
      %97 = vsyncadd [#allocation3], 0
      %s98 = sshll.u32 %s17, 4
      %s99 = int_to_ptr.hbm [resolvable:$true] %s98
      %s100 = sshll.u32 [#allocation2], 4
      %s101 = int_to_ptr.vmem [resolvable:$true] %s100
      %106 = dma.hbm_to_vmem [thread:$0]  %s99, 256, %s101, [#allocation3], 64, 64, 4
    $region37: #{tpu_custom_call.1} parent=1 // pred_fallthru
      _
    // Predicated region
    $region38: #{tpu_custom_call.1} parent=1 // pred_check
      _
    $region39: #{tpu_custom_call.1} parent=1 // pred_check_branch
      %108 = sbr.rel (0) target = $region41
    $region40: #{tpu_custom_call.1} parent=1 // pred_region
      _
    $region41: #{tpu_custom_call.1} parent=1 // pred_fallthru
      _
    // Predicated region
    $region42: #{tpu_custom_call.1} parent=1 // pred_check
      _
    $region43: #{tpu_custom_call.1} parent=1 // pred_check_branch
      %110 = sbr.rel (0) target = $region45
    $region44: #{tpu_custom_call.1} parent=1 // pred_region
      %112 = vsyncadd [#allocation6], 0
      %s113 = sshll.u32 %s21, 4
      %s114 = int_to_ptr.hbm [resolvable:$true] %s113
      %s115 = sshll.u32 [#allocation5], 4
      %s116 = int_to_ptr.vmem [resolvable:$true] %s115
      %121 = dma.hbm_to_vmem [thread:$0]  %s114, 256, %s116, [#allocation6], 64, 64, 4
    $region45: #{tpu_custom_call.1} parent=1 // pred_fallthru
      _
    // Predicated region
    $region46: #{tpu_custom_call.1} parent=1 // pred_check
      _
    $region47: #{tpu_custom_call.1} parent=1 // pred_check_branch
      %123 = sbr.rel (0) target = $region49
    $region48: #{tpu_custom_call.1} parent=1 // pred_region
      _
    $region49: #{tpu_custom_call.1} parent=1 // pred_fallthru
      _
    // Predicated region
    $region50: #{tpu_custom_call.1} parent=1 // pred_check
      _
    $region51: #{tpu_custom_call.1} parent=1 // pred_check_branch
      %125 = sbr.rel (0) target = $region53
    $region52: #{tpu_custom_call.1} parent=1 // pred_region
      %127 = vsyncadd [#allocation6], 0
      %s128 = sshll.u32 %s25, 4
      %s129 = int_to_ptr.hbm [resolvable:$true] %s128
      %s130 = sshll.u32 [#allocation7], 4
      %s131 = int_to_ptr.vmem [resolvable:$true] %s130
      %136 = dma.hbm_to_vmem [thread:$0]  %s129, 256, %s131, [#allocation6], 64, 64, 4
    $region53: #{tpu_custom_call.1} parent=1 // pred_fallthru
      _
    // Predicated region
    $region54: #{tpu_custom_call.1} parent=1 // pred_check
      _
    $region55: #{tpu_custom_call.1} parent=1 // pred_check_branch
      %138 = sbr.rel (0) target = $region57
    $region56: #{tpu_custom_call.1} parent=1 // pred_region
      %140 = vsyncadd [#allocation9], 0
      %s142 = sshll.u32 %s27, 4
      %s143 = int_to_ptr.hbm [resolvable:$true] %s142
      %s144 = sshll.u32 [#allocation8], 4
      %s145 = int_to_ptr.vmem [resolvable:$true] %s144
      %147 = dma.hbm_to_vmem [thread:$0]  %s143, 16, %s145, [#allocation9]
    $region57: #{tpu_custom_call.1} parent=1 // pred_fallthru
      _
    // Predicated region
    $region58: #{tpu_custom_call.1} parent=1 // pred_check
      _
    $region59: #{tpu_custom_call.1} parent=1 // pred_check_branch
      %149 = sbr.rel (0) target = $region61
    $region60: #{tpu_custom_call.1} parent=1 // pred_region
      %151 = vsyncadd [#allocation9], 0
      %s152 = sshll.u32 %s29, 4
      %s153 = int_to_ptr.hbm [resolvable:$true] %s152
      %s154 = sshll.u32 [#allocation10], 4
      %s155 = int_to_ptr.vmem [resolvable:$true] %s154
      %160 = dma.hbm_to_vmem [thread:$0]  %s153, 256, %s155, [#allocation9], 64, 64, 4
    $region61: #{tpu_custom_call.1} parent=1 // pred_fallthru
      _
    // Predicated region
    $region62: #{tpu_custom_call.1} parent=1 // pred_check
      _
    $region63: #{tpu_custom_call.1} parent=1 // pred_check_branch
      %162 = sbr.rel (0) target = $region65
    $region64: #{tpu_custom_call.1} parent=1 // pred_region
      %164 = vsyncadd [#allocation12], 0
      %s166 = sshll.u32 %s31, 4
      %s167 = int_to_ptr.hbm [resolvable:$true] %s166
      %s168 = sshll.u32 [#allocation11], 4
      %s169 = int_to_ptr.vmem [resolvable:$true] %s168
      %171 = dma.hbm_to_vmem [thread:$0]  %s167, 16, %s169, [#allocation12]
    $region65: #{tpu_custom_call.1} parent=1 // pred_fallthru
      _
    // Predicated region
    $region66: #{tpu_custom_call.1} parent=1 // pred_check
      _
    $region67: #{tpu_custom_call.1} parent=1 // pred_check_branch
      %173 = sbr.rel (0) target = $region69
    $region68: #{tpu_custom_call.1} parent=1 // pred_region
      %175 = vsyncadd [#allocation12], 0
      %s176 = sshll.u32 %s33, 4
      %s177 = int_to_ptr.hbm [resolvable:$true] %s176
      %s178 = sshll.u32 [#allocation13], 4
      %s179 = int_to_ptr.vmem [resolvable:$true] %s178
      %184 = dma.hbm_to_vmem [thread:$0]  %s177, 256, %s179, [#allocation12], 64, 64, 4
    $region69: #{tpu_custom_call.1} parent=1 // pred_fallthru
      _
    // Predicated region
    $region70: #{tpu_custom_call.1} parent=1 // pred_check
      _
    $region71: #{tpu_custom_call.1} parent=1 // pred_check_branch
      %186 = sbr.rel (0) target = $region73
    $region72: #{tpu_custom_call.1} parent=1 // pred_region
      %188 = vsyncadd [#allocation15], 0
      %s190 = sshll.u32 %s35, 4
      %s191 = int_to_ptr.hbm [resolvable:$true] %s190
      %s192 = sshll.u32 [#allocation14], 4
      %s193 = int_to_ptr.vmem [resolvable:$true] %s192
      %195 = dma.hbm_to_vmem [thread:$0]  %s191, 16, %s193, [#allocation15]
    $region73: #{tpu_custom_call.1} parent=1 // pred_fallthru
      _
    // Predicated region
    $region74: #{tpu_custom_call.1} parent=1 // pred_check
      _
    $region75: #{tpu_custom_call.1} parent=1 // pred_check_branch
      %197 = sbr.rel (0) target = $region77
    $region76: #{tpu_custom_call.1} parent=1 // pred_region
      %199 = vsyncadd [#allocation15], 0
      %s200 = sshll.u32 %s37, 4
      %s201 = int_to_ptr.hbm [resolvable:$true] %s200
      %s202 = sshll.u32 [#allocation16], 4
      %s203 = int_to_ptr.vmem [resolvable:$true] %s202
      %208 = dma.hbm_to_vmem [thread:$0]  %s201, 256, %s203, [#allocation15], 64, 64, 4
    $region77: #{tpu_custom_call.1} parent=1 // pred_fallthru
      _
    // Predicated region
    $region78: #{tpu_custom_call.1} parent=1 // pred_check
      _
    $region79: #{tpu_custom_call.1} parent=1 // pred_check_branch
      %210 = sbr.rel (0) target = $region81
    $region80: #{tpu_custom_call.1} parent=1 // pred_region
      %212 = vsyncadd [#allocation18], 0
      %s214 = sshll.u32 %s39, 4
      %s215 = int_to_ptr.hbm [resolvable:$true] %s214
      %s216 = sshll.u32 [#allocation17], 4
      %s217 = int_to_ptr.vmem [resolvable:$true] %s216
      %219 = dma.hbm_to_vmem [thread:$0]  %s215, 16, %s217, [#allocation18]
    $region81: #{tpu_custom_call.1} parent=1 // pred_fallthru
      _
    // Predicated region
    $region82: #{tpu_custom_call.1} parent=1 // pred_check
      _
    $region83: #{tpu_custom_call.1} parent=1 // pred_check_branch
      %221 = sbr.rel (0) target = $region85
    $region84: #{tpu_custom_call.1} parent=1 // pred_region
      %223 = vsyncadd [#allocation18], 0
      %s224 = sshll.u32 %s41, 4
      %s225 = int_to_ptr.hbm [resolvable:$true] %s224
      %s226 = sshll.u32 [#allocation19], 4
      %s227 = int_to_ptr.vmem [resolvable:$true] %s226
      %232 = dma.hbm_to_vmem [thread:$0]  %s225, 256, %s227, [#allocation18], 64, 64, 4
    $region85: #{tpu_custom_call.1} parent=1 // pred_fallthru
      _
    // Predicated region
    $region86: #{tpu_custom_call.1} parent=1 // pred_check
      _
    $region87: #{tpu_custom_call.1} parent=1 // pred_check_branch
      %234 = sbr.rel (0) target = $region89
    $region88: #{tpu_custom_call.1} parent=1 // pred_region
      %236 = vsyncadd [#allocation21], 0
      %s238 = sshll.u32 %s43, 4
      %s239 = int_to_ptr.hbm [resolvable:$true] %s238
      %s240 = sshll.u32 [#allocation20], 4
      %s241 = int_to_ptr.vmem [resolvable:$true] %s240
      %243 = dma.hbm_to_vmem [thread:$0]  %s239, 16, %s241, [#allocation21]
    $region89: #{tpu_custom_call.1} parent=1 // pred_fallthru
      _
    // Predicated region
    $region90: #{tpu_custom_call.1} parent=1 // pred_check
      _
    $region91: #{tpu_custom_call.1} parent=1 // pred_check_branch
      %245 = sbr.rel (0) target = $region93
    $region92: #{tpu_custom_call.1} parent=1 // pred_region
      %247 = vsyncadd [#allocation21], 0
      %s248 = sshll.u32 %s45, 4
      %s249 = int_to_ptr.hbm [resolvable:$true] %s248
      %s250 = sshll.u32 [#allocation22], 4
      %s251 = int_to_ptr.vmem [resolvable:$true] %s250
      %256 = dma.hbm_to_vmem [thread:$0]  %s249, 256, %s251, [#allocation21], 64, 64, 4
    $region93: #{tpu_custom_call.1} parent=1 // pred_fallthru
      _
    // Predicated region
    $region94: #{tpu_custom_call.1} parent=1 // pred_check
      _
    $region95: #{tpu_custom_call.1} parent=1 // pred_check_branch
      %258 = sbr.rel (0) target = $region97
    $region96: #{tpu_custom_call.1} parent=1 // pred_region
      %260 = vsyncadd [#allocation24], 0
      %s262 = sshll.u32 %s47, 4
      %s263 = int_to_ptr.hbm [resolvable:$true] %s262
      %s264 = sshll.u32 [#allocation23], 4
      %s265 = int_to_ptr.vmem [resolvable:$true] %s264
      %267 = dma.hbm_to_vmem [thread:$0]  %s263, 16, %s265, [#allocation24]
    $region97: #{tpu_custom_call.1} parent=1 // pred_fallthru
      _
    // Predicated region
    $region98: #{tpu_custom_call.1} parent=1 // pred_check
      _
    $region99: #{tpu_custom_call.1} parent=1 // pred_check_branch
      %269 = sbr.rel (0) target = $region101
    $region100: #{tpu_custom_call.1} parent=1 // pred_region
      %271 = vsyncadd [#allocation24], 0
      %s272 = sshll.u32 %s49, 4
      %s273 = int_to_ptr.hbm [resolvable:$true] %s272
      %s274 = sshll.u32 [#allocation25], 4
      %s275 = int_to_ptr.vmem [resolvable:$true] %s274
      %280 = dma.hbm_to_vmem [thread:$0]  %s273, 256, %s275, [#allocation24], 64, 64, 4
    $region101: #{tpu_custom_call.1} parent=1 // pred_fallthru
      _
    // Predicated region
    $region102: #{tpu_custom_call.1} parent=1 // pred_check
      _
    $region103: #{tpu_custom_call.1} parent=1 // pred_check_branch
      %282 = sbr.rel (0) target = $region105
    $region104: #{tpu_custom_call.1} parent=1 // pred_region
      %284 = vsyncadd [#allocation27], 0
      %s286 = sshll.u32 %s51, 4
      %s287 = int_to_ptr.hbm [resolvable:$true] %s286
      %s288 = sshll.u32 [#allocation26], 4
      %s289 = int_to_ptr.vmem [resolvable:$true] %s288
      %291 = dma.hbm_to_vmem [thread:$0]  %s287, 16, %s289, [#allocation27]
    $region105: #{tpu_custom_call.1} parent=1 // pred_fallthru
      _
    // Predicated region
    $region106: #{tpu_custom_call.1} parent=1 // pred_check
      _
    $region107: #{tpu_custom_call.1} parent=1 // pred_check_branch
      %293 = sbr.rel (0) target = $region109
    $region108: #{tpu_custom_call.1} parent=1 // pred_region
      _
    $region109: #{tpu_custom_call.1} parent=1 // pred_fallthru
      _
    // Predicated region
    $region110: #{tpu_custom_call.1} parent=1 // pred_check
      _
    $region111: #{tpu_custom_call.1} parent=1 // pred_check_branch
      %295 = sbr.rel (0) target = $region113
    $region112: #{tpu_custom_call.1} parent=1 // pred_region
      _
    $region113: #{tpu_custom_call.1} parent=1 // pred_fallthru
      _
    // Predicated region
    $region114: #{tpu_custom_call.1} parent=1 // pred_check
      _
    $region115: #{tpu_custom_call.1} parent=1 // pred_check_branch
      %297 = sbr.rel (0) target = $region117
    $region116: #{tpu_custom_call.1} parent=1 // pred_region
      %299 = dma.done [#allocation3], 256
    $region117: #{tpu_custom_call.1} parent=1 // pred_fallthru
      _
    // Predicated region
    $region118: #{tpu_custom_call.1} parent=1 // pred_check
      _
    $region119: #{tpu_custom_call.1} parent=1 // pred_check_branch
      %301 = sbr.rel (0) target = $region121
    $region120: #{tpu_custom_call.1} parent=1 // pred_region
      %303 = dma.done [#allocation6], 256
    $region121: #{tpu_custom_call.1} parent=1 // pred_fallthru
      _
    // Predicated region
    $region122: #{tpu_custom_call.1} parent=1 // pred_check
      _
    $region123: #{tpu_custom_call.1} parent=1 // pred_check_branch
      %305 = sbr.rel (0) target = $region125
    $region124: #{tpu_custom_call.1} parent=1 // pred_region
      %307 = dma.done [#allocation6], 256
    $region125: #{tpu_custom_call.1} parent=1 // pred_fallthru
      _
    // Predicated region
    $region126: #{tpu_custom_call.1} parent=1 // pred_check
      _
    $region127: #{tpu_custom_call.1} parent=1 // pred_check_branch
      %309 = sbr.rel (0) target = $region129
    $region128: #{tpu_custom_call.1} parent=1 // pred_region
      %311 = dma.done [#allocation9], 16
    $region129: #{tpu_custom_call.1} parent=1 // pred_fallthru
      _
    // Predicated region
    $region130: #{tpu_custom_call.1} parent=1 // pred_check
      _
    $region131: #{tpu_custom_call.1} parent=1 // pred_check_branch
      %313 = sbr.rel (0) target = $region133
    $region132: #{tpu_custom_call.1} parent=1 // pred_region
      %315 = dma.done [#allocation9], 256
    $region133: #{tpu_custom_call.1} parent=1 // pred_fallthru
      _
    // Predicated region
    $region134: #{tpu_custom_call.1} parent=1 // pred_check
      _
    $region135: #{tpu_custom_call.1} parent=1 // pred_check_branch
      %317 = sbr.rel (0) target = $region137
    $region136: #{tpu_custom_call.1} parent=1 // pred_region
      %319 = dma.done [#allocation12], 16
    $region137: #{tpu_custom_call.1} parent=1 // pred_fallthru
      _
    // Predicated region
    $region138: #{tpu_custom_call.1} parent=1 // pred_check
      _
    $region139: #{tpu_custom_call.1} parent=1 // pred_check_branch
      %321 = sbr.rel (0) target = $region141
    $region140: #{tpu_custom_call.1} parent=1 // pred_region
      %323 = dma.done [#allocation12], 256
    $region141: #{tpu_custom_call.1} parent=1 // pred_fallthru
      _
    // Predicated region
    $region142: #{tpu_custom_call.1} parent=1 // pred_check
      _
    $region143: #{tpu_custom_call.1} parent=1 // pred_check_branch
      %325 = sbr.rel (0) target = $region145
    $region144: #{tpu_custom_call.1} parent=1 // pred_region
      %327 = dma.done [#allocation15], 16
    $region145: #{tpu_custom_call.1} parent=1 // pred_fallthru
      _
    // Predicated region
    $region146: #{tpu_custom_call.1} parent=1 // pred_check
      _
    $region147: #{tpu_custom_call.1} parent=1 // pred_check_branch
      %329 = sbr.rel (0) target = $region149
    $region148: #{tpu_custom_call.1} parent=1 // pred_region
      %331 = dma.done [#allocation15], 256
    $region149: #{tpu_custom_call.1} parent=1 // pred_fallthru
      _
    // Predicated region
    $region150: #{tpu_custom_call.1} parent=1 // pred_check
      _
    $region151: #{tpu_custom_call.1} parent=1 // pred_check_branch
      %333 = sbr.rel (0) target = $region153
    $region152: #{tpu_custom_call.1} parent=1 // pred_region
      %335 = dma.done [#allocation18], 16
    $region153: #{tpu_custom_call.1} parent=1 // pred_fallthru
      _
    // Predicated region
    $region154: #{tpu_custom_call.1} parent=1 // pred_check
      _
    $region155: #{tpu_custom_call.1} parent=1 // pred_check_branch
      %337 = sbr.rel (0) target = $region157
    $region156: #{tpu_custom_call.1} parent=1 // pred_region
      %339 = dma.done [#allocation18], 256
    $region157: #{tpu_custom_call.1} parent=1 // pred_fallthru
      _
    // Predicated region
    $region158: #{tpu_custom_call.1} parent=1 // pred_check
      _
    $region159: #{tpu_custom_call.1} parent=1 // pred_check_branch
      %341 = sbr.rel (0) target = $region161
    $region160: #{tpu_custom_call.1} parent=1 // pred_region
      %343 = dma.done [#allocation21], 16
    $region161: #{tpu_custom_call.1} parent=1 // pred_fallthru
      _
    // Predicated region
    $region162: #{tpu_custom_call.1} parent=1 // pred_check
      _
    $region163: #{tpu_custom_call.1} parent=1 // pred_check_branch
      %345 = sbr.rel (0) target = $region165
    $region164: #{tpu_custom_call.1} parent=1 // pred_region
      %347 = dma.done [#allocation21], 256
    $region165: #{tpu_custom_call.1} parent=1 // pred_fallthru
      _
    // Predicated region
    $region166: #{tpu_custom_call.1} parent=1 // pred_check
      _
    $region167: #{tpu_custom_call.1} parent=1 // pred_check_branch
      %349 = sbr.rel (0) target = $region169
    $region168: #{tpu_custom_call.1} parent=1 // pred_region
      %351 = dma.done [#allocation24], 16
    $region169: #{tpu_custom_call.1} parent=1 // pred_fallthru
      _
    // Predicated region
    $region170: #{tpu_custom_call.1} parent=1 // pred_check
      _
    $region171: #{tpu_custom_call.1} parent=1 // pred_check_branch
      %353 = sbr.rel (0) target = $region173
    $region172: #{tpu_custom_call.1} parent=1 // pred_region
      %355 = dma.done [#allocation24], 256
    $region173: #{tpu_custom_call.1} parent=1 // pred_fallthru
      _
    // Predicated region
    $region174: #{tpu_custom_call.1} parent=1 // pred_check
      _
    $region175: #{tpu_custom_call.1} parent=1 // pred_check_branch
      %357 = sbr.rel (0) target = $region177
    $region176: #{tpu_custom_call.1} parent=1 // pred_region
      %359 = dma.done [#allocation27], 16
    $region177: #{tpu_custom_call.1} parent=1 // pred_fallthru
      _
    %v361 = vld [vmem:[%s1] sm:$0xff]
    %v362 = vld [vmem:[%s1 + $0x8] sm:$0xff]
    %v363 = vld [vmem:[%s3] sm:$0xff]
    %v364 = vld [vmem:[%s3 + $0x8] sm:$0xff]
    %v365 = vld [vmem:[%s3 + $0x10] sm:$0xff]
    %v366 = vld [vmem:[%s3 + $0x18] sm:$0xff]
    %vm367 = vcmask 261120
    %v368 = vsel %vm367, %v361, 0.0
    %369 = vadd.xlane.f32.xlu0 %v368
    %v370 = vpop.xlane.xlu0 %369
    %v371 = vsel %vm367, %v362, 0.0
    %372 = vadd.xlane.f32.xlu0 %v371
    %v373 = vpop.xlane.xlu0 %372
    %v374 = vrcp.pop 32.0
    %v375 = vmul.f32 32.0, %v374
    %v376 = vsub.f32 1.0, %v375
    %v377 = vmul.f32 %v374, %v376
    %v378 = vadd.f32 %v374, %v377
    %vm379 = vweird.f32 %v374
    %v380 = vsel %vm379, %v374, %v378
    %v381 = vmul.f32 %v370, %v380
    %v382 = vmul.f32 %v373, %v380
    %v383 = vsub.f32 %v361, %v381
    %v384 = vsub.f32 %v362, %v382
    %v385 = vmul.f32 %v383, %v383
    %v386 = vmul.f32 %v384, %v384
    %v387 = vsel %vm367, %v385, 0.0
    %388 = vadd.xlane.f32.xlu0 %v387
    %v389 = vpop.xlane.xlu0 %388
    %v390 = vsel %vm367, %v386, 0.0
    %391 = vadd.xlane.f32.xlu0 %v390
    %v392 = vpop.xlane.xlu0 %391
    %v393 = vmul.f32 %v389, %v380
    %v394 = vmul.f32 %v392, %v380
    %v395 = vadd.f32 %v393, 1e-05
    %v396 = vadd.f32 %v394, 1e-05
    %v397 = vrsqrt.pop %v395
    %v398 = vmul.f32 %v397, %v395
    %v399 = vmul.f32 %v398, %v397
    %v400 = vmul.f32 0.5, %v399
    %v401 = vsub.f32 1.5, %v400
    %v402 = vmul.f32 %v397, %v401
    %vm403 = vweird.f32 %v395
    %vm404 = vweird.f32 %v397
    %vm405 = vmor %vm403, %vm404
    %v406 = vsel %vm405, %v397, %v402
    %v407 = vrsqrt.pop %v396
    %v408 = vmul.f32 %v407, %v396
    %v409 = vmul.f32 %v408, %v407
    %v410 = vmul.f32 0.5, %v409
    %v411 = vsub.f32 1.5, %v410
    %v412 = vmul.f32 %v407, %v411
    %vm413 = vweird.f32 %v396
    %vm414 = vweird.f32 %v407
    %vm415 = vmor %vm413, %vm414
    %v416 = vsel %vm415, %v407, %v412
    %v417 = vmul.f32 %v383, %v406
    %v418 = vmul.f32 %v384, %v416
    %v419 = vld [vmem:[%s5] sm:$0x1]
    %v421 = vperm.slane %v419, 0
    %v423 = vmul.f32 %v417, %v421
    %v424 = vmul.f32 %v418, %v421
    %v425 = vld [vmem:[%s7] sm:$0x1]
    %v427 = vperm.slane %v425, 0
    %v429 = vadd.f32 %v423, %v427
    %v430 = vadd.f32 %v424, %v427
    %v431 = vpack.c.bf16 %v430, %v429
    %v432 = vld [vmem:[#allocation2] sm:$0xf]
    %v433 = vld [vmem:[#allocation2 + $0x4] sm:$0xf]
    %v434 = vld [vmem:[#allocation2 + $0x8] sm:$0xf]
    %v435 = vld [vmem:[#allocation2 + $0xc] sm:$0xf]
    %v436 = vld [vmem:[%s19] sm:$0x1]
    %v438 = vperm.slane %v436, 0
    %v444 = vunpack.c.l.b16 %v432
    %v445 = vunpack.c.l.b16 %v433
    %v446 = vunpack.c.l.b16 %v434
    %v447 = vunpack.c.l.b16 %v435
    %v448 = vpack.c.b16 %v445, %v444
    %v449 = vpack.c.b16 %v447, %v446
    %v453 = vsel %vm367, %v431, 0
    %455 = vmatpush.bf16.msra.mxu0 0
    %456 = vmatpush.bf16.msra.mxu0 0
    %457 = vmatpush.bf16.msra.mxu0 0
    %458 = vmatpush.bf16.msra.mxu0 0
    %459 = vmatpush.bf16.msra.mxu0 0
    %460 = vmatpush.bf16.msra.mxu0 0
    %461 = vmatpush.bf16.msra.mxu0 %v449
    %462 = vmatpush.bf16.msra.mxu0 %v448
    %463 = vmatmul.bf16.gmra.mxu0 %v453
    %v464 = vpop.f32.mrf.mxu0
    %v465 = vadd.f32 %v438, %v464
    %v466 = vpop.f32.mrf.mxu0
    %v467 = vadd.f32 %v438, %v466
    %468 = vdwg.mxu0
    %v469 = vld [vmem:[#allocation5] sm:$0xf]
    %v470 = vld [vmem:[#allocation5 + $0x4] sm:$0xf]
    %v471 = vld [vmem:[#allocation5 + $0x8] sm:$0xf]
    %v472 = vld [vmem:[#allocation5 + $0xc] sm:$0xf]
    %v473 = vld [vmem:[%s23] sm:$0x1]
    %v475 = vperm.slane %v473, 0
    %v481 = vunpack.c.l.b16 %v469
    %v482 = vunpack.c.l.b16 %v470
    %v483 = vunpack.c.l.b16 %v471
    %v484 = vunpack.c.l.b16 %v472
    %v485 = vpack.c.b16 %v482, %v481
    %v486 = vpack.c.b16 %v484, %v483
    %489 = vmatpush.bf16.msra.mxu0 0
    %490 = vmatpush.bf16.msra.mxu0 0
    %491 = vmatpush.bf16.msra.mxu0 0
    %492 = vmatpush.bf16.msra.mxu0 0
    %493 = vmatpush.bf16.msra.mxu0 0
    %494 = vmatpush.bf16.msra.mxu0 0
    %495 = vmatpush.bf16.msra.mxu0 %v486
    %496 = vmatpush.bf16.msra.mxu0 %v485
    %497 = vmatmul.bf16.gmra.mxu0 %v453
    %v498 = vpop.f32.mrf.mxu0
    %v499 = vadd.f32 %v475, %v498
    %v500 = vpop.f32.mrf.mxu0
    %v501 = vadd.f32 %v475, %v500
    %502 = vdwg.mxu0
    %v503 = vld [vmem:[#allocation7] sm:$0xf]
    %v504 = vld [vmem:[#allocation7 + $0x4] sm:$0xf]
    %v505 = vld [vmem:[#allocation7 + $0x8] sm:$0xf]
    %v506 = vld [vmem:[#allocation7 + $0xc] sm:$0xf]
    %v507 = vld [vmem:[#allocation8] sm:$0x1]
    %v509 = vperm.slane %v507, 0
    %v515 = vunpack.c.l.b16 %v503
    %v516 = vunpack.c.l.b16 %v504
    %v517 = vunpack.c.l.b16 %v505
    %v518 = vunpack.c.l.b16 %v506
    %v519 = vpack.c.b16 %v516, %v515
    %v520 = vpack.c.b16 %v518, %v517
    %523 = vmatpush.bf16.msra.mxu0 0
    %524 = vmatpush.bf16.msra.mxu0 0
    %525 = vmatpush.bf16.msra.mxu0 0
    %526 = vmatpush.bf16.msra.mxu0 0
    %527 = vmatpush.bf16.msra.mxu0 0
    %528 = vmatpush.bf16.msra.mxu0 0
    %529 = vmatpush.bf16.msra.mxu0 %v520
    %530 = vmatpush.bf16.msra.mxu0 %v519
    %531 = vmatmul.bf16.gmra.mxu0 %v453
    %v532 = vpop.f32.mrf.mxu0
    %v533 = vadd.f32 %v509, %v532
    %v534 = vpop.f32.mrf.mxu0
    %v535 = vadd.f32 %v509, %v534
    %536 = vdwg.mxu0
    %v537 = vpack.c.bf16 %v465, %v465
    %v538 = vpack.c.bf16 %v467, %v467
    %v539 = vpack.c.bf16 %v499, %v499
    %v540 = vpack.c.bf16 %v501, %v501
    %v541 = vpack.c.bf16 %v533, %v533
    %v542 = vpack.c.bf16 %v535, %v535
    %vm543 = vcmask 64512
    %v545 = vsel %vm543, %v537, 0
    %v548 = vsel %vm543, %v539, 0
    %550 = vmatpush.bf16.xpose.msra.mxu0 0
    %551 = vmatpush.bf16.xpose.msra.mxu0 0
    %552 = vmatpush.bf16.xpose.msra.mxu0 0
    %553 = vmatpush.bf16.xpose.msra.mxu0 0
    %554 = vmatpush.bf16.xpose.msra.mxu0 0
    %555 = vmatpush.bf16.xpose.msra.mxu0 0
    %556 = vmatpush.bf16.xpose.msra.mxu0 0
    %557 = vmatpush.bf16.xpose.msra.mxu0 %v548
    %558 = vmatmul.bf16.gmra.mxu0 %v545
    %v559 = vpop.f32.mrf.mxu0
    %v560 = vadd.f32 0.0, %v559
    %v561 = vpop.f32.mrf.mxu0
    %562 = vdwg.mxu0
    %v564 = vsel %vm543, %v538, 0
    %v567 = vsel %vm543, %v540, 0
    %569 = vmatpush.bf16.xpose.msra.mxu0 0
    %570 = vmatpush.bf16.xpose.msra.mxu0 0
    %571 = vmatpush.bf16.xpose.msra.mxu0 0
    %572 = vmatpush.bf16.xpose.msra.mxu0 0
    %573 = vmatpush.bf16.xpose.msra.mxu0 0
    %574 = vmatpush.bf16.xpose.msra.mxu0 0
    %575 = vmatpush.bf16.xpose.msra.mxu0 0
    %576 = vmatpush.bf16.xpose.msra.mxu0 %v567
    %577 = vmatmul.bf16.gmra.mxu0 %v564
    %v578 = vpop.f32.mrf.mxu0
    %v579 = vadd.f32 0.0, %v578
    %v580 = vpop.f32.mrf.mxu0
    %581 = vdwg.mxu0
    %v582 = vsel %vm543, %v560, -inf
    %583 = vmax.xlane.f32.xlu0 %v582
    %v584 = vpop.xlane.xlu0 %583
    %v585 = vsel %vm543, %v579, -inf
    %586 = vmax.xlane.f32.xlu0 %v585
    %v587 = vpop.xlane.xlu0 %586
    %v588 = vsub.f32 %v560, %v584
    %v589 = vsub.f32 %v579, %v587
    %v590 = vmul.f32 %v588, 1.442695
    %v591 = vpow.pop %v590
    %v592 = vmul.f32 %v589, 1.442695
    %v593 = vpow.pop %v592
    %v594 = vsel %vm543, %v591, 0.0
    %595 = vadd.xlane.f32.xlu0 %v594
    %v596 = vpop.xlane.xlu0 %595
    %v597 = vsel %vm543, %v593, 0.0
    %598 = vadd.xlane.f32.xlu0 %v597
    %v599 = vpop.xlane.xlu0 %598
    %v600 = vrcp.pop %v596
    %v601 = vmul.f32 %v596, %v600
    %v602 = vsub.f32 1.0, %v601
    %v603 = vmul.f32 %v600, %v602
    %v604 = vadd.f32 %v600, %v603
    %vm605 = vweird.f32 %v596
    %vm606 = vweird.f32 %v600
    %vm607 = vmor %vm605, %vm606
    %v608 = vsel %vm607, %v600, %v604
    %v609 = vand.u32 2147483647, %v596
    %vm610 = vcmp.eq.f32.partialorder %v609, 8.507059e+37
    %v611 = vand.u32 %v596, 2147483648
    %v612 = vor.u32 1.1754944e-38, %v611
    %v613 = vsel %vm610, %v612, %v608
    %v614 = vmul.f32 %v591, %v613
    %v615 = vrcp.pop %v599
    %v616 = vmul.f32 %v599, %v615
    %v617 = vsub.f32 1.0, %v616
    %v618 = vmul.f32 %v615, %v617
    %v619 = vadd.f32 %v615, %v618
    %vm620 = vweird.f32 %v599
    %vm621 = vweird.f32 %v615
    %vm622 = vmor %vm620, %vm621
    %v623 = vsel %vm622, %v615, %v619
    %v624 = vand.u32 2147483647, %v599
    %vm625 = vcmp.eq.f32.partialorder %v624, 8.507059e+37
    %v626 = vand.u32 %v599, 2147483648
    %v627 = vor.u32 1.1754944e-38, %v626
    %v628 = vsel %vm625, %v627, %v623
    %v629 = vmul.f32 %v593, %v628
    %v630 = vpack.c.bf16 %v614, %v614
    %v631 = vpack.c.bf16 %v629, %v629
    %v633 = vsel %vm543, %v630, 0
    %vm635 = vcmask 1043456
    %v637 = vsel %vm635, %v541, 0
    %639 = vmatpush.bf16.msra.mxu0 0
    %640 = vmatpush.bf16.msra.mxu0 0
    %641 = vmatpush.bf16.msra.mxu0 0
    %642 = vmatpush.bf16.msra.mxu0 0
    %643 = vmatpush.bf16.msra.mxu0 0
    %644 = vmatpush.bf16.msra.mxu0 0
    %645 = vmatpush.bf16.msra.mxu0 0
    %646 = vmatpush.bf16.msra.mxu0 %v637
    %647 = vmatmul.bf16.gmra.mxu0 %v633
    %v648 = vpop.f32.mrf.mxu0
    %v649 = vadd.f32 0.0, %v648
    %v650 = vpop.f32.mrf.mxu0
    %651 = vdwg.mxu0
    %v653 = vsel %vm543, %v631, 0
    %v656 = vsel %vm635, %v542, 0
    %658 = vmatpush.bf16.msra.mxu0 0
    %659 = vmatpush.bf16.msra.mxu0 0
    %660 = vmatpush.bf16.msra.mxu0 0
    %661 = vmatpush.bf16.msra.mxu0 0
    %662 = vmatpush.bf16.msra.mxu0 0
    %663 = vmatpush.bf16.msra.mxu0 0
    %664 = vmatpush.bf16.msra.mxu0 0
    %665 = vmatpush.bf16.msra.mxu0 %v656
    %666 = vmatmul.bf16.gmra.mxu0 %v653
    %v667 = vpop.f32.mrf.mxu0
    %v668 = vadd.f32 0.0, %v667
    %v669 = vpop.f32.mrf.mxu0
    %670 = vdwg.mxu0
    %v671 = vadd.f32 %v614, 0.0
    %v672 = vadd.f32 %v629, 0.0
    %v674 = vunpack.c.l.b16 %v537
    %v675 = vpack.c.b16 %v674, %v674
    %676 = vrot.lane.b32.xlu0 %v675, 120
    %v677 = vpop.permute.xlu0 %676
    %v679 = vunpack.c.l.b16 %v539
    %v680 = vpack.c.b16 %v679, %v679
    %681 = vrot.lane.b32.xlu0 %v680, 120
    %v682 = vpop.permute.xlu0 %681
    %v684 = vsel %vm543, %v677, 0
    %v687 = vsel %vm543, %v682, 0
    %689 = vmatpush.bf16.xpose.msra.mxu0 0
    %690 = vmatpush.bf16.xpose.msra.mxu0 0
    %691 = vmatpush.bf16.xpose.msra.mxu0 0
    %692 = vmatpush.bf16.xpose.msra.mxu0 0
    %693 = vmatpush.bf16.xpose.msra.mxu0 0
    %694 = vmatpush.bf16.xpose.msra.mxu0 0
    %695 = vmatpush.bf16.xpose.msra.mxu0 0
    %696 = vmatpush.bf16.xpose.msra.mxu0 %v687
    %697 = vmatmul.bf16.gmra.mxu0 %v684
    %v698 = vpop.f32.mrf.mxu0
    %v699 = vadd.f32 0.0, %v698
    %v700 = vpop.f32.mrf.mxu0
    %701 = vdwg.mxu0
    %v703 = vunpack.c.l.b16 %v538
    %v704 = vpack.c.b16 %v703, %v703
    %705 = vrot.lane.b32.xlu0 %v704, 120
    %v706 = vpop.permute.xlu0 %705
    %v708 = vunpack.c.l.b16 %v540
    %v709 = vpack.c.b16 %v708, %v708
    %710 = vrot.lane.b32.xlu0 %v709, 120
    %v711 = vpop.permute.xlu0 %710
    %v713 = vsel %vm543, %v706, 0
    %v716 = vsel %vm543, %v711, 0
    %718 = vmatpush.bf16.xpose.msra.mxu0 0
    %719 = vmatpush.bf16.xpose.msra.mxu0 0
    %720 = vmatpush.bf16.xpose.msra.mxu0 0
    %721 = vmatpush.bf16.xpose.msra.mxu0 0
    %722 = vmatpush.bf16.xpose.msra.mxu0 0
    %723 = vmatpush.bf16.xpose.msra.mxu0 0
    %724 = vmatpush.bf16.xpose.msra.mxu0 0
    %725 = vmatpush.bf16.xpose.msra.mxu0 %v716
    %726 = vmatmul.bf16.gmra.mxu0 %v713
    %v727 = vpop.f32.mrf.mxu0
    %v728 = vadd.f32 0.0, %v727
    %v729 = vpop.f32.mrf.mxu0
    %730 = vdwg.mxu0
    %v731 = vsel %vm543, %v699, -inf
    %732 = vmax.xlane.f32.xlu0 %v731
    %v733 = vpop.xlane.xlu0 %732
    %v734 = vsel %vm543, %v728, -inf
    %735 = vmax.xlane.f32.xlu0 %v734
    %v736 = vpop.xlane.xlu0 %735
    %v737 = vsub.f32 %v699, %v733
    %v738 = vsub.f32 %v728, %v736
    %v739 = vmul.f32 %v737, 1.442695
    %v740 = vpow.pop %v739
    %v741 = vmul.f32 %v738, 1.442695
    %v742 = vpow.pop %v741
    %v743 = vsel %vm543, %v740, 0.0
    %744 = vadd.xlane.f32.xlu0 %v743
    %v745 = vpop.xlane.xlu0 %744
    %v746 = vsel %vm543, %v742, 0.0
    %747 = vadd.xlane.f32.xlu0 %v746
    %v748 = vpop.xlane.xlu0 %747
    %v749 = vrcp.pop %v745
    %v750 = vmul.f32 %v745, %v749
    %v751 = vsub.f32 1.0, %v750
    %v752 = vmul.f32 %v749, %v751
    %v753 = vadd.f32 %v749, %v752
    %vm754 = vweird.f32 %v745
    %vm755 = vweird.f32 %v749
    %vm756 = vmor %vm754, %vm755
    %v757 = vsel %vm756, %v749, %v753
    %v758 = vand.u32 2147483647, %v745
    %vm759 = vcmp.eq.f32.partialorder %v758, 8.507059e+37
    %v760 = vand.u32 %v745, 2147483648
    %v761 = vor.u32 1.1754944e-38, %v760
    %v762 = vsel %vm759, %v761, %v757
    %v763 = vmul.f32 %v740, %v762
    %v764 = vrcp.pop %v748
    %v765 = vmul.f32 %v748, %v764
    %v766 = vsub.f32 1.0, %v765
    %v767 = vmul.f32 %v764, %v766
    %v768 = vadd.f32 %v764, %v767
    %vm769 = vweird.f32 %v748
    %vm770 = vweird.f32 %v764
    %vm771 = vmor %vm769, %vm770
    %v772 = vsel %vm771, %v764, %v768
    %v773 = vand.u32 2147483647, %v748
    %vm774 = vcmp.eq.f32.partialorder %v773, 8.507059e+37
    %v775 = vand.u32 %v748, 2147483648
    %v776 = vor.u32 1.1754944e-38, %v775
    %v777 = vsel %vm774, %v776, %v772
    %v778 = vmul.f32 %v742, %v777
    %v779 = vpack.c.bf16 %v763, %v763
    %v780 = vpack.c.bf16 %v778, %v778
    %v782 = vunpack.c.l.b16 %v541
    %v783 = vpack.c.b16 %v782, %v782
    %784 = vrot.lane.b32.xlu0 %v783, 120
    %v785 = vpop.permute.xlu0 %784
    %v787 = vsel %vm543, %v779, 0
    %v790 = vsel %vm635, %v785, 0
    %792 = vmatpush.bf16.msra.mxu0 0
    %793 = vmatpush.bf16.msra.mxu0 0
    %794 = vmatpush.bf16.msra.mxu0 0
    %795 = vmatpush.bf16.msra.mxu0 0
    %796 = vmatpush.bf16.msra.mxu0 0
    %797 = vmatpush.bf16.msra.mxu0 0
    %798 = vmatpush.bf16.msra.mxu0 0
    %799 = vmatpush.bf16.msra.mxu0 %v790
    %800 = vmatmul.bf16.gmra.mxu0 %v787
    %v801 = vpop.f32.mrf.mxu0
    %v802 = vadd.f32 0.0, %v801
    %v803 = vpop.f32.mrf.mxu0
    %804 = vdwg.mxu0
    %v806 = vunpack.c.l.b16 %v542
    %v807 = vpack.c.b16 %v806, %v806
    %808 = vrot.lane.b32.xlu0 %v807, 120
    %v809 = vpop.permute.xlu0 %808
    %v811 = vsel %vm543, %v780, 0
    %v814 = vsel %vm635, %v809, 0
    %816 = vmatpush.bf16.msra.mxu0 0
    %817 = vmatpush.bf16.msra.mxu0 0
    %818 = vmatpush.bf16.msra.mxu0 0
    %819 = vmatpush.bf16.msra.mxu0 0
    %820 = vmatpush.bf16.msra.mxu0 0
    %821 = vmatpush.bf16.msra.mxu0 0
    %822 = vmatpush.bf16.msra.mxu0 0
    %823 = vmatpush.bf16.msra.mxu0 %v814
    %824 = vmatmul.bf16.gmra.mxu0 %v811
    %v825 = vpop.f32.mrf.mxu0
    %v826 = vadd.f32 0.0, %v825
    %v827 = vpop.f32.mrf.mxu0
    %828 = vdwg.mxu0
    %v829 = vadd.f32 %v671, %v763
    %v830 = vadd.f32 %v672, %v778
    %831 = vrot.lane.b32.xlu0 %v675, 112
    %v832 = vpop.permute.xlu0 %831
    %833 = vrot.lane.b32.xlu0 %v680, 112
    %v834 = vpop.permute.xlu0 %833
    %v836 = vsel %vm543, %v832, 0
    %v839 = vsel %vm543, %v834, 0
    %841 = vmatpush.bf16.xpose.msra.mxu0 0
    %842 = vmatpush.bf16.xpose.msra.mxu0 0
    %843 = vmatpush.bf16.xpose.msra.mxu0 0
    %844 = vmatpush.bf16.xpose.msra.mxu0 0
    %845 = vmatpush.bf16.xpose.msra.mxu0 0
    %846 = vmatpush.bf16.xpose.msra.mxu0 0
    %847 = vmatpush.bf16.xpose.msra.mxu0 0
    %848 = vmatpush.bf16.xpose.msra.mxu0 %v839
    %849 = vmatmul.bf16.gmra.mxu0 %v836
    %v850 = vpop.f32.mrf.mxu0
    %v851 = vadd.f32 0.0, %v850
    %v852 = vpop.f32.mrf.mxu0
    %853 = vdwg.mxu0
    %854 = vrot.lane.b32.xlu0 %v704, 112
    %v855 = vpop.permute.xlu0 %854
    %856 = vrot.lane.b32.xlu0 %v709, 112
    %v857 = vpop.permute.xlu0 %856
    %v859 = vsel %vm543, %v855, 0
    %v862 = vsel %vm543, %v857, 0
    %864 = vmatpush.bf16.xpose.msra.mxu0 0
    %865 = vmatpush.bf16.xpose.msra.mxu0 0
    %866 = vmatpush.bf16.xpose.msra.mxu0 0
    %867 = vmatpush.bf16.xpose.msra.mxu0 0
    %868 = vmatpush.bf16.xpose.msra.mxu0 0
    %869 = vmatpush.bf16.xpose.msra.mxu0 0
    %870 = vmatpush.bf16.xpose.msra.mxu0 0
    %871 = vmatpush.bf16.xpose.msra.mxu0 %v862
    %872 = vmatmul.bf16.gmra.mxu0 %v859
    %v873 = vpop.f32.mrf.mxu0
    %v874 = vadd.f32 0.0, %v873
    %v875 = vpop.f32.mrf.mxu0
    %876 = vdwg.mxu0
    %v877 = vsel %vm543, %v851, -inf
    %878 = vmax.xlane.f32.xlu0 %v877
    %v879 = vpop.xlane.xlu0 %878
    %v880 = vsel %vm543, %v874, -inf
    %881 = vmax.xlane.f32.xlu0 %v880
    %v882 = vpop.xlane.xlu0 %881
    %v883 = vsub.f32 %v851, %v879
    %v884 = vsub.f32 %v874, %v882
    %v885 = vmul.f32 %v883, 1.442695
    %v886 = vpow.pop %v885
    %v887 = vmul.f32 %v884, 1.442695
    %v888 = vpow.pop %v887
    %v889 = vsel %vm543, %v886, 0.0
    %890 = vadd.xlane.f32.xlu0 %v889
    %v891 = vpop.xlane.xlu0 %890
    %v892 = vsel %vm543, %v888, 0.0
    %893 = vadd.xlane.f32.xlu0 %v892
    %v894 = vpop.xlane.xlu0 %893
    %v895 = vrcp.pop %v891
    %v896 = vmul.f32 %v891, %v895
    %v897 = vsub.f32 1.0, %v896
    %v898 = vmul.f32 %v895, %v897
    %v899 = vadd.f32 %v895, %v898
    %vm900 = vweird.f32 %v891
    %vm901 = vweird.f32 %v895
    %vm902 = vmor %vm900, %vm901
    %v903 = vsel %vm902, %v895, %v899
    %v904 = vand.u32 2147483647, %v891
    %vm905 = vcmp.eq.f32.partialorder %v904, 8.507059e+37
    %v906 = vand.u32 %v891, 2147483648
    %v907 = vor.u32 1.1754944e-38, %v906
    %v908 = vsel %vm905, %v907, %v903
    %v909 = vmul.f32 %v886, %v908
    %v910 = vrcp.pop %v894
    %v911 = vmul.f32 %v894, %v910
    %v912 = vsub.f32 1.0, %v911
    %v913 = vmul.f32 %v910, %v912
    %v914 = vadd.f32 %v910, %v913
    %vm915 = vweird.f32 %v894
    %vm916 = vweird.f32 %v910
    %vm917 = vmor %vm915, %vm916
    %v918 = vsel %vm917, %v910, %v914
    %v919 = vand.u32 2147483647, %v894
    %vm920 = vcmp.eq.f32.partialorder %v919, 8.507059e+37
    %v921 = vand.u32 %v894, 2147483648
    %v922 = vor.u32 1.1754944e-38, %v921
    %v923 = vsel %vm920, %v922, %v918
    %v924 = vmul.f32 %v888, %v923
    %v925 = vpack.c.bf16 %v909, %v909
    %v926 = vpack.c.bf16 %v924, %v924
    %927 = vrot.lane.b32.xlu0 %v783, 112
    %v928 = vpop.permute.xlu0 %927
    %v930 = vsel %vm543, %v925, 0
    %v933 = vsel %vm635, %v928, 0
    %935 = vmatpush.bf16.msra.mxu0 0
    %936 = vmatpush.bf16.msra.mxu0 0
    %937 = vmatpush.bf16.msra.mxu0 0
    %938 = vmatpush.bf16.msra.mxu0 0
    %939 = vmatpush.bf16.msra.mxu0 0
    %940 = vmatpush.bf16.msra.mxu0 0
    %941 = vmatpush.bf16.msra.mxu0 0
    %942 = vmatpush.bf16.msra.mxu0 %v933
    %943 = vmatmul.bf16.gmra.mxu0 %v930
    %v944 = vpop.f32.mrf.mxu0
    %v945 = vadd.f32 0.0, %v944
    %v946 = vpop.f32.mrf.mxu0
    %947 = vdwg.mxu0
    %948 = vrot.lane.b32.xlu0 %v807, 112
    %v949 = vpop.permute.xlu0 %948
    %v951 = vsel %vm543, %v926, 0
    %v954 = vsel %vm635, %v949, 0
    %956 = vmatpush.bf16.msra.mxu0 0
    %957 = vmatpush.bf16.msra.mxu0 0
    %958 = vmatpush.bf16.msra.mxu0 0
    %959 = vmatpush.bf16.msra.mxu0 0
    %960 = vmatpush.bf16.msra.mxu0 0
    %961 = vmatpush.bf16.msra.mxu0 0
    %962 = vmatpush.bf16.msra.mxu0 0
    %963 = vmatpush.bf16.msra.mxu0 %v954
    %964 = vmatmul.bf16.gmra.mxu0 %v951
    %v965 = vpop.f32.mrf.mxu0
    %v966 = vadd.f32 0.0, %v965
    %v967 = vpop.f32.mrf.mxu0
    %968 = vdwg.mxu0
    %v969 = vadd.f32 %v829, %v909
    %v970 = vadd.f32 %v830, %v924
    %971 = vrot.lane.b32.xlu0 %v675, 104
    %v972 = vpop.permute.xlu0 %971
    %973 = vrot.lane.b32.xlu0 %v680, 104
    %v974 = vpop.permute.xlu0 %973
    %v976 = vsel %vm543, %v972, 0
    %v979 = vsel %vm543, %v974, 0
    %981 = vmatpush.bf16.xpose.msra.mxu0 0
    %982 = vmatpush.bf16.xpose.msra.mxu0 0
    %983 = vmatpush.bf16.xpose.msra.mxu0 0
    %984 = vmatpush.bf16.xpose.msra.mxu0 0
    %985 = vmatpush.bf16.xpose.msra.mxu0 0
    %986 = vmatpush.bf16.xpose.msra.mxu0 0
    %987 = vmatpush.bf16.xpose.msra.mxu0 0
    %988 = vmatpush.bf16.xpose.msra.mxu0 %v979
    %989 = vmatmul.bf16.gmra.mxu0 %v976
    %v990 = vpop.f32.mrf.mxu0
    %v991 = vadd.f32 0.0, %v990
    %v992 = vpop.f32.mrf.mxu0
    %993 = vdwg.mxu0
    %994 = vrot.lane.b32.xlu0 %v704, 104
    %v995 = vpop.permute.xlu0 %994
    %996 = vrot.lane.b32.xlu0 %v709, 104
    %v997 = vpop.permute.xlu0 %996
    %v999 = vsel %vm543, %v995, 0
    %v1002 = vsel %vm543, %v997, 0
    %1004 = vmatpush.bf16.xpose.msra.mxu0 0
    %1005 = vmatpush.bf16.xpose.msra.mxu0 0
    %1006 = vmatpush.bf16.xpose.msra.mxu0 0
    %1007 = vmatpush.bf16.xpose.msra.mxu0 0
    %1008 = vmatpush.bf16.xpose.msra.mxu0 0
    %1009 = vmatpush.bf16.xpose.msra.mxu0 0
    %1010 = vmatpush.bf16.xpose.msra.mxu0 0
    %1011 = vmatpush.bf16.xpose.msra.mxu0 %v1002
    %1012 = vmatmul.bf16.gmra.mxu0 %v999
    %v1013 = vpop.f32.mrf.mxu0
    %v1014 = vadd.f32 0.0, %v1013
    %v1015 = vpop.f32.mrf.mxu0
    %1016 = vdwg.mxu0
    %v1017 = vsel %vm543, %v991, -inf
    %1018 = vmax.xlane.f32.xlu0 %v1017
    %v1019 = vpop.xlane.xlu0 %1018
    %v1020 = vsel %vm543, %v1014, -inf
    %1021 = vmax.xlane.f32.xlu0 %v1020
    %v1022 = vpop.xlane.xlu0 %1021
    %v1023 = vsub.f32 %v991, %v1019
    %v1024 = vsub.f32 %v1014, %v1022
    %v1025 = vmul.f32 %v1023, 1.442695
    %v1026 = vpow.pop %v1025
    %v1027 = vmul.f32 %v1024, 1.442695
    %v1028 = vpow.pop %v1027
    %v1029 = vsel %vm543, %v1026, 0.0
    %1030 = vadd.xlane.f32.xlu0 %v1029
    %v1031 = vpop.xlane.xlu0 %1030
    %v1032 = vsel %vm543, %v1028, 0.0
    %1033 = vadd.xlane.f32.xlu0 %v1032
    %v1034 = vpop.xlane.xlu0 %1033
    %v1035 = vrcp.pop %v1031
    %v1036 = vmul.f32 %v1031, %v1035
    %v1037 = vsub.f32 1.0, %v1036
    %v1038 = vmul.f32 %v1035, %v1037
    %v1039 = vadd.f32 %v1035, %v1038
    %vm1040 = vweird.f32 %v1031
    %vm1041 = vweird.f32 %v1035
    %vm1042 = vmor %vm1040, %vm1041
    %v1043 = vsel %vm1042, %v1035, %v1039
    %v1044 = vand.u32 2147483647, %v1031
    %vm1045 = vcmp.eq.f32.partialorder %v1044, 8.507059e+37
    %v1046 = vand.u32 %v1031, 2147483648
    %v1047 = vor.u32 1.1754944e-38, %v1046
    %v1048 = vsel %vm1045, %v1047, %v1043
    %v1049 = vmul.f32 %v1026, %v1048
    %v1050 = vrcp.pop %v1034
    %v1051 = vmul.f32 %v1034, %v1050
    %v1052 = vsub.f32 1.0, %v1051
    %v1053 = vmul.f32 %v1050, %v1052
    %v1054 = vadd.f32 %v1050, %v1053
    %vm1055 = vweird.f32 %v1034
    %vm1056 = vweird.f32 %v1050
    %vm1057 = vmor %vm1055, %vm1056
    %v1058 = vsel %vm1057, %v1050, %v1054
    %v1059 = vand.u32 2147483647, %v1034
    %vm1060 = vcmp.eq.f32.partialorder %v1059, 8.507059e+37
    %v1061 = vand.u32 %v1034, 2147483648
    %v1062 = vor.u32 1.1754944e-38, %v1061
    %v1063 = vsel %vm1060, %v1062, %v1058
    %v1064 = vmul.f32 %v1028, %v1063
    %v1065 = vpack.c.bf16 %v1049, %v1049
    %v1066 = vpack.c.bf16 %v1064, %v1064
    %1067 = vrot.lane.b32.xlu0 %v783, 104
    %v1068 = vpop.permute.xlu0 %1067
    %v1070 = vsel %vm543, %v1065, 0
    %v1073 = vsel %vm635, %v1068, 0
    %1075 = vmatpush.bf16.msra.mxu0 0
    %1076 = vmatpush.bf16.msra.mxu0 0
    %1077 = vmatpush.bf16.msra.mxu0 0
    %1078 = vmatpush.bf16.msra.mxu0 0
    %1079 = vmatpush.bf16.msra.mxu0 0
    %1080 = vmatpush.bf16.msra.mxu0 0
    %1081 = vmatpush.bf16.msra.mxu0 0
    %1082 = vmatpush.bf16.msra.mxu0 %v1073
    %1083 = vmatmul.bf16.gmra.mxu0 %v1070
    %v1084 = vpop.f32.mrf.mxu0
    %v1085 = vadd.f32 0.0, %v1084
    %v1086 = vpop.f32.mrf.mxu0
    %1087 = vdwg.mxu0
    %1088 = vrot.lane.b32.xlu0 %v807, 104
    %v1089 = vpop.permute.xlu0 %1088
    %v1091 = vsel %vm543, %v1066, 0
    %v1094 = vsel %vm635, %v1089, 0
    %1096 = vmatpush.bf16.msra.mxu0 0
    %1097 = vmatpush.bf16.msra.mxu0 0
    %1098 = vmatpush.bf16.msra.mxu0 0
    %1099 = vmatpush.bf16.msra.mxu0 0
    %1100 = vmatpush.bf16.msra.mxu0 0
    %1101 = vmatpush.bf16.msra.mxu0 0
    %1102 = vmatpush.bf16.msra.mxu0 0
    %1103 = vmatpush.bf16.msra.mxu0 %v1094
    %1104 = vmatmul.bf16.gmra.mxu0 %v1091
    %v1105 = vpop.f32.mrf.mxu0
    %v1106 = vadd.f32 0.0, %v1105
    %v1107 = vpop.f32.mrf.mxu0
    %1108 = vdwg.mxu0
    %v1109 = vadd.f32 %v969, %v1049
    %v1110 = vadd.f32 %v970, %v1064
    %v1111 = vmul.f32 %v1109, 0.25
    %v1112 = vmul.f32 %v1110, 0.25
    %1113 = vst.msk [vmem:[#allocation29] sm:$0xff] %vm543, %v1111
    %1114 = vst.msk [vmem:[#allocation29 + $0x8] sm:$0xff] %vm543, %v1112
    %1117 = vrot.lane.b32.xlu0 %v802, 8
    %v1118 = vpop.permute.xlu0 %1117
    %1119 = vrot.lane.b32.xlu0 %v826, 8
    %v1120 = vpop.permute.xlu0 %1119
    %1125 = vrot.lane.b32.xlu0 %v945, 16
    %v1126 = vpop.permute.xlu0 %1125
    %1127 = vrot.lane.b32.xlu0 %v966, 16
    %v1128 = vpop.permute.xlu0 %1127
    %1133 = vrot.lane.b32.xlu0 %v1085, 24
    %v1134 = vpop.permute.xlu0 %1133
    %1135 = vrot.lane.b32.xlu0 %v1106, 24
    %v1136 = vpop.permute.xlu0 %1135
    %v1139 = vsel %vm543, %v649, %v1118
    %v1140 = vsel %vm543, %v668, %v1120
    %vm1141 = vcmask 130048
    %v1142 = vsel %vm1141, %v1139, %v1126
    %v1143 = vsel %vm1141, %v1140, %v1128
    %vm1144 = vcmask 195584
    %v1145 = vsel %vm1144, %v1142, %v1134
    %v1146 = vsel %vm1144, %v1143, %v1136
    %v1147 = vpack.c.bf16 %v1146, %v1145
    %v1148 = vld [vmem:[#allocation10] sm:$0xf]
    %v1149 = vld [vmem:[#allocation10 + $0x4] sm:$0xf]
    %v1150 = vld [vmem:[#allocation10 + $0x8] sm:$0xf]
    %v1151 = vld [vmem:[#allocation10 + $0xc] sm:$0xf]
    %v1152 = vld [vmem:[#allocation11] sm:$0x1]
    %v1154 = vperm.slane %v1152, 0
    %v1160 = vunpack.c.l.b16 %v1148
    %v1161 = vunpack.c.l.b16 %v1149
    %v1162 = vunpack.c.l.b16 %v1150
    %v1163 = vunpack.c.l.b16 %v1151
    %v1164 = vpack.c.b16 %v1161, %v1160
    %v1165 = vpack.c.b16 %v1163, %v1162
    %v1169 = vsel %vm367, %v1147, 0
    %1171 = vmatpush.bf16.msra.mxu0 0
    %1172 = vmatpush.bf16.msra.mxu0 0
    %1173 = vmatpush.bf16.msra.mxu0 0
    %1174 = vmatpush.bf16.msra.mxu0 0
    %1175 = vmatpush.bf16.msra.mxu0 0
    %1176 = vmatpush.bf16.msra.mxu0 0
    %1177 = vmatpush.bf16.msra.mxu0 %v1165
    %1178 = vmatpush.bf16.msra.mxu0 %v1164
    %1179 = vmatmul.bf16.gmra.mxu0 %v1169
    %v1180 = vpop.f32.mrf.mxu0
    %v1181 = vadd.f32 %v1154, %v1180
    %v1182 = vpop.f32.mrf.mxu0
    %v1183 = vadd.f32 %v1154, %v1182
    %1184 = vdwg.mxu0
    %v1185 = vadd.f32 %v361, %v1181
    %v1186 = vadd.f32 %v362, %v1183
    %v1187 = vsel %vm367, %v1185, 0.0
    %1188 = vadd.xlane.f32.xlu0 %v1187
    %v1189 = vpop.xlane.xlu0 %1188
    %v1190 = vsel %vm367, %v1186, 0.0
    %1191 = vadd.xlane.f32.xlu0 %v1190
    %v1192 = vpop.xlane.xlu0 %1191
    %v1193 = vmul.f32 %v1189, %v380
    %v1194 = vmul.f32 %v1192, %v380
    %v1195 = vsub.f32 %v1185, %v1193
    %v1196 = vsub.f32 %v1186, %v1194
    %v1197 = vmul.f32 %v1195, %v1195
    %v1198 = vmul.f32 %v1196, %v1196
    %v1199 = vsel %vm367, %v1197, 0.0
    %1200 = vadd.xlane.f32.xlu0 %v1199
    %v1201 = vpop.xlane.xlu0 %1200
    %v1202 = vsel %vm367, %v1198, 0.0
    %1203 = vadd.xlane.f32.xlu0 %v1202
    %v1204 = vpop.xlane.xlu0 %1203
    %v1205 = vmul.f32 %v1201, %v380
    %v1206 = vmul.f32 %v1204, %v380
    %v1207 = vadd.f32 %v1205, 1e-05
    %v1208 = vadd.f32 %v1206, 1e-05
    %v1209 = vrsqrt.pop %v1207
    %v1210 = vmul.f32 %v1209, %v1207
    %v1211 = vmul.f32 %v1210, %v1209
    %v1212 = vmul.f32 0.5, %v1211
    %v1213 = vsub.f32 1.5, %v1212
    %v1214 = vmul.f32 %v1209, %v1213
    %vm1215 = vweird.f32 %v1207
    %vm1216 = vweird.f32 %v1209
    %vm1217 = vmor %vm1215, %vm1216
    %v1218 = vsel %vm1217, %v1209, %v1214
    %v1219 = vrsqrt.pop %v1208
    %v1220 = vmul.f32 %v1219, %v1208
    %v1221 = vmul.f32 %v1220, %v1219
    %v1222 = vmul.f32 0.5, %v1221
    %v1223 = vsub.f32 1.5, %v1222
    %v1224 = vmul.f32 %v1219, %v1223
    %vm1225 = vweird.f32 %v1208
    %vm1226 = vweird.f32 %v1219
    %vm1227 = vmor %vm1225, %vm1226
    %v1228 = vsel %vm1227, %v1219, %v1224
    %v1229 = vmul.f32 %v1195, %v1218
    %v1230 = vmul.f32 %v1196, %v1228
    %v1231 = vld [vmem:[%s9] sm:$0x1]
    %v1233 = vperm.slane %v1231, 0
    %v1235 = vmul.f32 %v1229, %v1233
    %v1236 = vmul.f32 %v1230, %v1233
    %v1237 = vld [vmem:[%s11] sm:$0x1]
    %v1239 = vperm.slane %v1237, 0
    %v1241 = vadd.f32 %v1235, %v1239
    %v1242 = vadd.f32 %v1236, %v1239
    %v1243 = vpack.c.bf16 %v1242, %v1241
    %v1244 = vld [vmem:[#allocation13] sm:$0xf]
    %v1245 = vld [vmem:[#allocation13 + $0x4] sm:$0xf]
    %v1246 = vld [vmem:[#allocation13 + $0x8] sm:$0xf]
    %v1247 = vld [vmem:[#allocation13 + $0xc] sm:$0xf]
    %v1248 = vld [vmem:[#allocation14] sm:$0x1]
    %v1250 = vperm.slane %v1248, 0
    %v1256 = vunpack.c.l.b16 %v1244
    %v1257 = vunpack.c.l.b16 %v1245
    %v1258 = vunpack.c.l.b16 %v1246
    %v1259 = vunpack.c.l.b16 %v1247
    %v1260 = vpack.c.b16 %v1257, %v1256
    %v1261 = vpack.c.b16 %v1259, %v1258
    %v1265 = vsel %vm367, %v1243, 0
    %1267 = vmatpush.bf16.msra.mxu0 0
    %1268 = vmatpush.bf16.msra.mxu0 0
    %1269 = vmatpush.bf16.msra.mxu0 0
    %1270 = vmatpush.bf16.msra.mxu0 0
    %1271 = vmatpush.bf16.msra.mxu0 0
    %1272 = vmatpush.bf16.msra.mxu0 0
    %1273 = vmatpush.bf16.msra.mxu0 %v1261
    %1274 = vmatpush.bf16.msra.mxu0 %v1260
    %1275 = vmatmul.bf16.gmra.mxu0 %v1265
    %v1276 = vpop.f32.mrf.mxu0
    %v1277 = vadd.f32 %v1250, %v1276
    %v1278 = vpop.f32.mrf.mxu0
    %v1279 = vadd.f32 %v1250, %v1278
    %1280 = vdwg.mxu0
    %v1281 = vpack.c.bf16 %v364, %v363
    %v1282 = vpack.c.bf16 %v366, %v365
    %v1283 = vld [vmem:[#allocation16] sm:$0xf]
    %v1284 = vld [vmem:[#allocation16 + $0x4] sm:$0xf]
    %v1285 = vld [vmem:[#allocation16 + $0x8] sm:$0xf]
    %v1286 = vld [vmem:[#allocation16 + $0xc] sm:$0xf]
    %v1287 = vld [vmem:[#allocation17] sm:$0x1]
    %v1289 = vperm.slane %v1287, 0
    %v1295 = vunpack.c.l.b16 %v1283
    %v1296 = vunpack.c.l.b16 %v1284
    %v1297 = vunpack.c.l.b16 %v1285
    %v1298 = vunpack.c.l.b16 %v1286
    %v1299 = vpack.c.b16 %v1296, %v1295
    %v1300 = vpack.c.b16 %v1298, %v1297
    %v1304 = vsel %vm367, %v1281, 0
    %v1307 = vsel %vm367, %v1282, 0
    %1309 = vmatpush.bf16.msra.mxu0 0
    %1310 = vmatpush.bf16.msra.mxu0 0
    %1311 = vmatpush.bf16.msra.mxu0 0
    %1312 = vmatpush.bf16.msra.mxu0 0
    %1313 = vmatpush.bf16.msra.mxu0 0
    %1314 = vmatpush.bf16.msra.mxu0 0
    %1315 = vmatpush.bf16.msra.mxu0 %v1300
    %1316 = vmatpush.bf16.msra.mxu0 %v1299
    %1317 = vmatmul.bf16.gmra.mxu0 %v1304
    %v1318 = vpop.f32.mrf.mxu0
    %v1319 = vadd.f32 %v1289, %v1318
    %v1320 = vpop.f32.mrf.mxu0
    %v1321 = vadd.f32 %v1289, %v1320
    %1322 = vmatmul.bf16.gmra.mxu0 %v1307
    %v1323 = vpop.f32.mrf.mxu0
    %v1324 = vadd.f32 %v1289, %v1323
    %v1325 = vpop.f32.mrf.mxu0
    %v1326 = vadd.f32 %v1289, %v1325
    %1327 = vdwg.mxu0
    %v1328 = vld [vmem:[#allocation19] sm:$0xf]
    %v1329 = vld [vmem:[#allocation19 + $0x4] sm:$0xf]
    %v1330 = vld [vmem:[#allocation19 + $0x8] sm:$0xf]
    %v1331 = vld [vmem:[#allocation19 + $0xc] sm:$0xf]
    %v1332 = vld [vmem:[#allocation20] sm:$0x1]
    %v1334 = vperm.slane %v1332, 0
    %v1340 = vunpack.c.l.b16 %v1328
    %v1341 = vunpack.c.l.b16 %v1329
    %v1342 = vunpack.c.l.b16 %v1330
    %v1343 = vunpack.c.l.b16 %v1331
    %v1344 = vpack.c.b16 %v1341, %v1340
    %v1345 = vpack.c.b16 %v1343, %v1342
    %1348 = vmatpush.bf16.msra.mxu0 0
    %1349 = vmatpush.bf16.msra.mxu0 0
    %1350 = vmatpush.bf16.msra.mxu0 0
    %1351 = vmatpush.bf16.msra.mxu0 0
    %1352 = vmatpush.bf16.msra.mxu0 0
    %1353 = vmatpush.bf16.msra.mxu0 0
    %1354 = vmatpush.bf16.msra.mxu0 %v1345
    %1355 = vmatpush.bf16.msra.mxu0 %v1344
    %1356 = vmatmul.bf16.gmra.mxu0 %v1304
    %v1357 = vpop.f32.mrf.mxu0
    %v1358 = vadd.f32 %v1334, %v1357
    %v1359 = vpop.f32.mrf.mxu0
    %v1360 = vadd.f32 %v1334, %v1359
    %1361 = vmatmul.bf16.gmra.mxu0 %v1307
    %v1362 = vpop.f32.mrf.mxu0
    %v1363 = vadd.f32 %v1334, %v1362
    %v1364 = vpop.f32.mrf.mxu0
    %v1365 = vadd.f32 %v1334, %v1364
    %1366 = vdwg.mxu0
    %v1367 = vpack.c.bf16 %v1277, %v1277
    %v1368 = vpack.c.bf16 %v1279, %v1279
    %v1369 = vpack.c.bf16 %v1319, %v1319
    %v1370 = vpack.c.bf16 %v1321, %v1321
    %v1371 = vpack.c.bf16 %v1324, %v1324
    %v1372 = vpack.c.bf16 %v1326, %v1326
    %v1373 = vpack.c.bf16 %v1358, %v1358
    %v1374 = vpack.c.bf16 %v1360, %v1360
    %v1375 = vpack.c.bf16 %v1363, %v1363
    %v1376 = vpack.c.bf16 %v1365, %v1365
    %v1379 = vunpack.c.l.b16 %v1369
    %v1380 = vunpack.c.l.b16 %v1370
    %v1381 = vpack.c.b16 %v1380, %v1379
    %v1383 = vsel %vm543, %v1367, 0
    %v1386 = vsel %vm543, %v1381, 0
    %1388 = vmatpush.bf16.xpose.msra.mxu0 0
    %1389 = vmatpush.bf16.xpose.msra.mxu0 0
    %1390 = vmatpush.bf16.xpose.msra.mxu0 0
    %1391 = vmatpush.bf16.xpose.msra.mxu0 0
    %1392 = vmatpush.bf16.xpose.msra.mxu0 0
    %1393 = vmatpush.bf16.xpose.msra.mxu0 0
    %1394 = vmatpush.bf16.xpose.msra.mxu0 0
    %1395 = vmatpush.bf16.xpose.msra.mxu0 %v1386
    %1396 = vmatmul.bf16.gmra.mxu0 %v1383
    %v1397 = vpop.f32.mrf.mxu0
    %v1398 = vadd.f32 0.0, %v1397
    %v1399 = vpop.f32.mrf.mxu0
    %1400 = vdwg.mxu0
    %v1403 = vunpack.c.l.b16 %v1371
    %v1404 = vunpack.c.l.b16 %v1372
    %v1405 = vpack.c.b16 %v1404, %v1403
    %v1407 = vsel %vm543, %v1368, 0
    %v1410 = vsel %vm543, %v1405, 0
    %1412 = vmatpush.bf16.xpose.msra.mxu0 0
    %1413 = vmatpush.bf16.xpose.msra.mxu0 0
    %1414 = vmatpush.bf16.xpose.msra.mxu0 0
    %1415 = vmatpush.bf16.xpose.msra.mxu0 0
    %1416 = vmatpush.bf16.xpose.msra.mxu0 0
    %1417 = vmatpush.bf16.xpose.msra.mxu0 0
    %1418 = vmatpush.bf16.xpose.msra.mxu0 0
    %1419 = vmatpush.bf16.xpose.msra.mxu0 %v1410
    %1420 = vmatmul.bf16.gmra.mxu0 %v1407
    %v1421 = vpop.f32.mrf.mxu0
    %v1422 = vadd.f32 0.0, %v1421
    %v1423 = vpop.f32.mrf.mxu0
    %1424 = vdwg.mxu0
    %v1425 = vsel %vm1141, %v1398, -inf
    %1426 = vmax.xlane.f32.xlu0 %v1425
    %v1427 = vpop.xlane.xlu0 %1426
    %v1428 = vsel %vm1141, %v1422, -inf
    %1429 = vmax.xlane.f32.xlu0 %v1428
    %v1430 = vpop.xlane.xlu0 %1429
    %v1431 = vsub.f32 %v1398, %v1427
    %v1432 = vsub.f32 %v1422, %v1430
    %v1433 = vmul.f32 %v1431, 1.442695
    %v1434 = vpow.pop %v1433
    %v1435 = vmul.f32 %v1432, 1.442695
    %v1436 = vpow.pop %v1435
    %v1437 = vsel %vm1141, %v1434, 0.0
    %1438 = vadd.xlane.f32.xlu0 %v1437
    %v1439 = vpop.xlane.xlu0 %1438
    %v1440 = vsel %vm1141, %v1436, 0.0
    %1441 = vadd.xlane.f32.xlu0 %v1440
    %v1442 = vpop.xlane.xlu0 %1441
    %v1443 = vrcp.pop %v1439
    %v1444 = vmul.f32 %v1439, %v1443
    %v1445 = vsub.f32 1.0, %v1444
    %v1446 = vmul.f32 %v1443, %v1445
    %v1447 = vadd.f32 %v1443, %v1446
    %vm1448 = vweird.f32 %v1439
    %vm1449 = vweird.f32 %v1443
    %vm1450 = vmor %vm1448, %vm1449
    %v1451 = vsel %vm1450, %v1443, %v1447
    %v1452 = vand.u32 2147483647, %v1439
    %vm1453 = vcmp.eq.f32.partialorder %v1452, 8.507059e+37
    %v1454 = vand.u32 %v1439, 2147483648
    %v1455 = vor.u32 1.1754944e-38, %v1454
    %v1456 = vsel %vm1453, %v1455, %v1451
    %v1457 = vmul.f32 %v1434, %v1456
    %v1458 = vrcp.pop %v1442
    %v1459 = vmul.f32 %v1442, %v1458
    %v1460 = vsub.f32 1.0, %v1459
    %v1461 = vmul.f32 %v1458, %v1460
    %v1462 = vadd.f32 %v1458, %v1461
    %vm1463 = vweird.f32 %v1442
    %vm1464 = vweird.f32 %v1458
    %vm1465 = vmor %vm1463, %vm1464
    %v1466 = vsel %vm1465, %v1458, %v1462
    %v1467 = vand.u32 2147483647, %v1442
    %vm1468 = vcmp.eq.f32.partialorder %v1467, 8.507059e+37
    %v1469 = vand.u32 %v1442, 2147483648
    %v1470 = vor.u32 1.1754944e-38, %v1469
    %v1471 = vsel %vm1468, %v1470, %v1466
    %v1472 = vmul.f32 %v1436, %v1471
    %v1473 = vpack.c.bf16 %v1457, %v1457
    %v1474 = vpack.c.bf16 %v1472, %v1472
    %v1477 = vunpack.c.l.b16 %v1373
    %v1478 = vunpack.c.l.b16 %v1374
    %v1479 = vpack.c.b16 %v1478, %v1477
    %v1482 = vsel %vm1141, %v1473, 0
    %1484 = vmatpush.bf16.msra.mxu0 0
    %1485 = vmatpush.bf16.msra.mxu0 0
    %1486 = vmatpush.bf16.msra.mxu0 0
    %1487 = vmatpush.bf16.msra.mxu0 0
    %1488 = vmatpush.bf16.msra.mxu0 0
    %1489 = vmatpush.bf16.msra.mxu0 0
    %1490 = vmatpush.bf16.msra.mxu0 0
    %1491 = vmatpush.bf16.msra.mxu0 %v1479
    %1492 = vmatmul.bf16.gmra.mxu0 %v1482
    %v1493 = vpop.f32.mrf.mxu0
    %v1494 = vadd.f32 0.0, %v1493
    %v1495 = vpop.f32.mrf.mxu0
    %1496 = vdwg.mxu0
    %v1499 = vunpack.c.l.b16 %v1375
    %v1500 = vunpack.c.l.b16 %v1376
    %v1501 = vpack.c.b16 %v1500, %v1499
    %v1504 = vsel %vm1141, %v1474, 0
    %1506 = vmatpush.bf16.msra.mxu0 0
    %1507 = vmatpush.bf16.msra.mxu0 0
    %1508 = vmatpush.bf16.msra.mxu0 0
    %1509 = vmatpush.bf16.msra.mxu0 0
    %1510 = vmatpush.bf16.msra.mxu0 0
    %1511 = vmatpush.bf16.msra.mxu0 0
    %1512 = vmatpush.bf16.msra.mxu0 0
    %1513 = vmatpush.bf16.msra.mxu0 %v1501
    %1514 = vmatmul.bf16.gmra.mxu0 %v1504
    %v1515 = vpop.f32.mrf.mxu0
    %v1516 = vadd.f32 0.0, %v1515
    %v1517 = vpop.f32.mrf.mxu0
    %1518 = vdwg.mxu0
    %v1519 = vadd.f32 %v1457, 0.0
    %v1520 = vadd.f32 %v1472, 0.0
    %v1522 = vunpack.c.l.b16 %v1367
    %v1523 = vpack.c.b16 %v1522, %v1522
    %1524 = vrot.lane.b32.xlu0 %v1523, 120
    %v1525 = vpop.permute.xlu0 %1524
    %1526 = vrot.lane.b32.xlu0 %v1381, 120
    %v1527 = vpop.permute.xlu0 %1526
    %v1529 = vsel %vm543, %v1525, 0
    %v1532 = vsel %vm543, %v1527, 0
    %1534 = vmatpush.bf16.xpose.msra.mxu0 0
    %1535 = vmatpush.bf16.xpose.msra.mxu0 0
    %1536 = vmatpush.bf16.xpose.msra.mxu0 0
    %1537 = vmatpush.bf16.xpose.msra.mxu0 0
    %1538 = vmatpush.bf16.xpose.msra.mxu0 0
    %1539 = vmatpush.bf16.xpose.msra.mxu0 0
    %1540 = vmatpush.bf16.xpose.msra.mxu0 0
    %1541 = vmatpush.bf16.xpose.msra.mxu0 %v1532
    %1542 = vmatmul.bf16.gmra.mxu0 %v1529
    %v1543 = vpop.f32.mrf.mxu0
    %v1544 = vadd.f32 0.0, %v1543
    %v1545 = vpop.f32.mrf.mxu0
    %1546 = vdwg.mxu0
    %v1548 = vunpack.c.l.b16 %v1368
    %v1549 = vpack.c.b16 %v1548, %v1548
    %1550 = vrot.lane.b32.xlu0 %v1549, 120
    %v1551 = vpop.permute.xlu0 %1550
    %1552 = vrot.lane.b32.xlu0 %v1405, 120
    %v1553 = vpop.permute.xlu0 %1552
    %v1555 = vsel %vm543, %v1551, 0
    %v1558 = vsel %vm543, %v1553, 0
    %1560 = vmatpush.bf16.xpose.msra.mxu0 0
    %1561 = vmatpush.bf16.xpose.msra.mxu0 0
    %1562 = vmatpush.bf16.xpose.msra.mxu0 0
    %1563 = vmatpush.bf16.xpose.msra.mxu0 0
    %1564 = vmatpush.bf16.xpose.msra.mxu0 0
    %1565 = vmatpush.bf16.xpose.msra.mxu0 0
    %1566 = vmatpush.bf16.xpose.msra.mxu0 0
    %1567 = vmatpush.bf16.xpose.msra.mxu0 %v1558
    %1568 = vmatmul.bf16.gmra.mxu0 %v1555
    %v1569 = vpop.f32.mrf.mxu0
    %v1570 = vadd.f32 0.0, %v1569
    %v1571 = vpop.f32.mrf.mxu0
    %1572 = vdwg.mxu0
    %v1573 = vsel %vm1141, %v1544, -inf
    %1574 = vmax.xlane.f32.xlu0 %v1573
    %v1575 = vpop.xlane.xlu0 %1574
    %v1576 = vsel %vm1141, %v1570, -inf
    %1577 = vmax.xlane.f32.xlu0 %v1576
    %v1578 = vpop.xlane.xlu0 %1577
    %v1579 = vsub.f32 %v1544, %v1575
    %v1580 = vsub.f32 %v1570, %v1578
    %v1581 = vmul.f32 %v1579, 1.442695
    %v1582 = vpow.pop %v1581
    %v1583 = vmul.f32 %v1580, 1.442695
    %v1584 = vpow.pop %v1583
    %v1585 = vsel %vm1141, %v1582, 0.0
    %1586 = vadd.xlane.f32.xlu0 %v1585
    %v1587 = vpop.xlane.xlu0 %1586
    %v1588 = vsel %vm1141, %v1584, 0.0
    %1589 = vadd.xlane.f32.xlu0 %v1588
    %v1590 = vpop.xlane.xlu0 %1589
    %v1591 = vrcp.pop %v1587
    %v1592 = vmul.f32 %v1587, %v1591
    %v1593 = vsub.f32 1.0, %v1592
    %v1594 = vmul.f32 %v1591, %v1593
    %v1595 = vadd.f32 %v1591, %v1594
    %vm1596 = vweird.f32 %v1587
    %vm1597 = vweird.f32 %v1591
    %vm1598 = vmor %vm1596, %vm1597
    %v1599 = vsel %vm1598, %v1591, %v1595
    %v1600 = vand.u32 2147483647, %v1587
    %vm1601 = vcmp.eq.f32.partialorder %v1600, 8.507059e+37
    %v1602 = vand.u32 %v1587, 2147483648
    %v1603 = vor.u32 1.1754944e-38, %v1602
    %v1604 = vsel %vm1601, %v1603, %v1599
    %v1605 = vmul.f32 %v1582, %v1604
    %v1606 = vrcp.pop %v1590
    %v1607 = vmul.f32 %v1590, %v1606
    %v1608 = vsub.f32 1.0, %v1607
    %v1609 = vmul.f32 %v1606, %v1608
    %v1610 = vadd.f32 %v1606, %v1609
    %vm1611 = vweird.f32 %v1590
    %vm1612 = vweird.f32 %v1606
    %vm1613 = vmor %vm1611, %vm1612
    %v1614 = vsel %vm1613, %v1606, %v1610
    %v1615 = vand.u32 2147483647, %v1590
    %vm1616 = vcmp.eq.f32.partialorder %v1615, 8.507059e+37
    %v1617 = vand.u32 %v1590, 2147483648
    %v1618 = vor.u32 1.1754944e-38, %v1617
    %v1619 = vsel %vm1616, %v1618, %v1614
    %v1620 = vmul.f32 %v1584, %v1619
    %v1621 = vpack.c.bf16 %v1605, %v1605
    %v1622 = vpack.c.bf16 %v1620, %v1620
    %1623 = vrot.lane.b32.xlu0 %v1479, 120
    %v1624 = vpop.permute.xlu0 %1623
    %v1627 = vsel %vm1141, %v1621, 0
    %1629 = vmatpush.bf16.msra.mxu0 0
    %1630 = vmatpush.bf16.msra.mxu0 0
    %1631 = vmatpush.bf16.msra.mxu0 0
    %1632 = vmatpush.bf16.msra.mxu0 0
    %1633 = vmatpush.bf16.msra.mxu0 0
    %1634 = vmatpush.bf16.msra.mxu0 0
    %1635 = vmatpush.bf16.msra.mxu0 0
    %1636 = vmatpush.bf16.msra.mxu0 %v1624
    %1637 = vmatmul.bf16.gmra.mxu0 %v1627
    %v1638 = vpop.f32.mrf.mxu0
    %v1639 = vadd.f32 0.0, %v1638
    %v1640 = vpop.f32.mrf.mxu0
    %1641 = vdwg.mxu0
    %1642 = vrot.lane.b32.xlu0 %v1501, 120
    %v1643 = vpop.permute.xlu0 %1642
    %v1646 = vsel %vm1141, %v1622, 0
    %1648 = vmatpush.bf16.msra.mxu0 0
    %1649 = vmatpush.bf16.msra.mxu0 0
    %1650 = vmatpush.bf16.msra.mxu0 0
    %1651 = vmatpush.bf16.msra.mxu0 0
    %1652 = vmatpush.bf16.msra.mxu0 0
    %1653 = vmatpush.bf16.msra.mxu0 0
    %1654 = vmatpush.bf16.msra.mxu0 0
    %1655 = vmatpush.bf16.msra.mxu0 %v1643
    %1656 = vmatmul.bf16.gmra.mxu0 %v1646
    %v1657 = vpop.f32.mrf.mxu0
    %v1658 = vadd.f32 0.0, %v1657
    %v1659 = vpop.f32.mrf.mxu0
    %1660 = vdwg.mxu0
    %v1661 = vadd.f32 %v1519, %v1605
    %v1662 = vadd.f32 %v1520, %v1620
    %1663 = vrot.lane.b32.xlu0 %v1523, 112
    %v1664 = vpop.permute.xlu0 %1663
    %1665 = vrot.lane.b32.xlu0 %v1381, 112
    %v1666 = vpop.permute.xlu0 %1665
    %v1668 = vsel %vm543, %v1664, 0
    %v1671 = vsel %vm543, %v1666, 0
    %1673 = vmatpush.bf16.xpose.msra.mxu0 0
    %1674 = vmatpush.bf16.xpose.msra.mxu0 0
    %1675 = vmatpush.bf16.xpose.msra.mxu0 0
    %1676 = vmatpush.bf16.xpose.msra.mxu0 0
    %1677 = vmatpush.bf16.xpose.msra.mxu0 0
    %1678 = vmatpush.bf16.xpose.msra.mxu0 0
    %1679 = vmatpush.bf16.xpose.msra.mxu0 0
    %1680 = vmatpush.bf16.xpose.msra.mxu0 %v1671
    %1681 = vmatmul.bf16.gmra.mxu0 %v1668
    %v1682 = vpop.f32.mrf.mxu0
    %v1683 = vadd.f32 0.0, %v1682
    %v1684 = vpop.f32.mrf.mxu0
    %1685 = vdwg.mxu0
    %1686 = vrot.lane.b32.xlu0 %v1549, 112
    %v1687 = vpop.permute.xlu0 %1686
    %1688 = vrot.lane.b32.xlu0 %v1405, 112
    %v1689 = vpop.permute.xlu0 %1688
    %v1691 = vsel %vm543, %v1687, 0
    %v1694 = vsel %vm543, %v1689, 0
    %1696 = vmatpush.bf16.xpose.msra.mxu0 0
    %1697 = vmatpush.bf16.xpose.msra.mxu0 0
    %1698 = vmatpush.bf16.xpose.msra.mxu0 0
    %1699 = vmatpush.bf16.xpose.msra.mxu0 0
    %1700 = vmatpush.bf16.xpose.msra.mxu0 0
    %1701 = vmatpush.bf16.xpose.msra.mxu0 0
    %1702 = vmatpush.bf16.xpose.msra.mxu0 0
    %1703 = vmatpush.bf16.xpose.msra.mxu0 %v1694
    %1704 = vmatmul.bf16.gmra.mxu0 %v1691
    %v1705 = vpop.f32.mrf.mxu0
    %v1706 = vadd.f32 0.0, %v1705
    %v1707 = vpop.f32.mrf.mxu0
    %1708 = vdwg.mxu0
    %v1709 = vsel %vm1141, %v1683, -inf
    %1710 = vmax.xlane.f32.xlu0 %v1709
    %v1711 = vpop.xlane.xlu0 %1710
    %v1712 = vsel %vm1141, %v1706, -inf
    %1713 = vmax.xlane.f32.xlu0 %v1712
    %v1714 = vpop.xlane.xlu0 %1713
    %v1715 = vsub.f32 %v1683, %v1711
    %v1716 = vsub.f32 %v1706, %v1714
    %v1717 = vmul.f32 %v1715, 1.442695
    %v1718 = vpow.pop %v1717
    %v1719 = vmul.f32 %v1716, 1.442695
    %v1720 = vpow.pop %v1719
    %v1721 = vsel %vm1141, %v1718, 0.0
    %1722 = vadd.xlane.f32.xlu0 %v1721
    %v1723 = vpop.xlane.xlu0 %1722
    %v1724 = vsel %vm1141, %v1720, 0.0
    %1725 = vadd.xlane.f32.xlu0 %v1724
    %v1726 = vpop.xlane.xlu0 %1725
    %v1727 = vrcp.pop %v1723
    %v1728 = vmul.f32 %v1723, %v1727
    %v1729 = vsub.f32 1.0, %v1728
    %v1730 = vmul.f32 %v1727, %v1729
    %v1731 = vadd.f32 %v1727, %v1730
    %vm1732 = vweird.f32 %v1723
    %vm1733 = vweird.f32 %v1727
    %vm1734 = vmor %vm1732, %vm1733
    %v1735 = vsel %vm1734, %v1727, %v1731
    %v1736 = vand.u32 2147483647, %v1723
    %vm1737 = vcmp.eq.f32.partialorder %v1736, 8.507059e+37
    %v1738 = vand.u32 %v1723, 2147483648
    %v1739 = vor.u32 1.1754944e-38, %v1738
    %v1740 = vsel %vm1737, %v1739, %v1735
    %v1741 = vmul.f32 %v1718, %v1740
    %v1742 = vrcp.pop %v1726
    %v1743 = vmul.f32 %v1726, %v1742
    %v1744 = vsub.f32 1.0, %v1743
    %v1745 = vmul.f32 %v1742, %v1744
    %v1746 = vadd.f32 %v1742, %v1745
    %vm1747 = vweird.f32 %v1726
    %vm1748 = vweird.f32 %v1742
    %vm1749 = vmor %vm1747, %vm1748
    %v1750 = vsel %vm1749, %v1742, %v1746
    %v1751 = vand.u32 2147483647, %v1726
    %vm1752 = vcmp.eq.f32.partialorder %v1751, 8.507059e+37
    %v1753 = vand.u32 %v1726, 2147483648
    %v1754 = vor.u32 1.1754944e-38, %v1753
    %v1755 = vsel %vm1752, %v1754, %v1750
    %v1756 = vmul.f32 %v1720, %v1755
    %v1757 = vpack.c.bf16 %v1741, %v1741
    %v1758 = vpack.c.bf16 %v1756, %v1756
    %1759 = vrot.lane.b32.xlu0 %v1479, 112
    %v1760 = vpop.permute.xlu0 %1759
    %v1763 = vsel %vm1141, %v1757, 0
    %1765 = vmatpush.bf16.msra.mxu0 0
    %1766 = vmatpush.bf16.msra.mxu0 0
    %1767 = vmatpush.bf16.msra.mxu0 0
    %1768 = vmatpush.bf16.msra.mxu0 0
    %1769 = vmatpush.bf16.msra.mxu0 0
    %1770 = vmatpush.bf16.msra.mxu0 0
    %1771 = vmatpush.bf16.msra.mxu0 0
    %1772 = vmatpush.bf16.msra.mxu0 %v1760
    %1773 = vmatmul.bf16.gmra.mxu0 %v1763
    %v1774 = vpop.f32.mrf.mxu0
    %v1775 = vadd.f32 0.0, %v1774
    %v1776 = vpop.f32.mrf.mxu0
    %1777 = vdwg.mxu0
    %1778 = vrot.lane.b32.xlu0 %v1501, 112
    %v1779 = vpop.permute.xlu0 %1778
    %v1782 = vsel %vm1141, %v1758, 0
    %1784 = vmatpush.bf16.msra.mxu0 0
    %1785 = vmatpush.bf16.msra.mxu0 0
    %1786 = vmatpush.bf16.msra.mxu0 0
    %1787 = vmatpush.bf16.msra.mxu0 0
    %1788 = vmatpush.bf16.msra.mxu0 0
    %1789 = vmatpush.bf16.msra.mxu0 0
    %1790 = vmatpush.bf16.msra.mxu0 0
    %1791 = vmatpush.bf16.msra.mxu0 %v1779
    %1792 = vmatmul.bf16.gmra.mxu0 %v1782
    %v1793 = vpop.f32.mrf.mxu0
    %v1794 = vadd.f32 0.0, %v1793
    %v1795 = vpop.f32.mrf.mxu0
    %1796 = vdwg.mxu0
    %v1797 = vadd.f32 %v1661, %v1741
    %v1798 = vadd.f32 %v1662, %v1756
    %1799 = vrot.lane.b32.xlu0 %v1523, 104
    %v1800 = vpop.permute.xlu0 %1799
    %1801 = vrot.lane.b32.xlu0 %v1381, 104
    %v1802 = vpop.permute.xlu0 %1801
    %v1804 = vsel %vm543, %v1800, 0
    %v1807 = vsel %vm543, %v1802, 0
    %1809 = vmatpush.bf16.xpose.msra.mxu0 0
    %1810 = vmatpush.bf16.xpose.msra.mxu0 0
    %1811 = vmatpush.bf16.xpose.msra.mxu0 0
    %1812 = vmatpush.bf16.xpose.msra.mxu0 0
    %1813 = vmatpush.bf16.xpose.msra.mxu0 0
    %1814 = vmatpush.bf16.xpose.msra.mxu0 0
    %1815 = vmatpush.bf16.xpose.msra.mxu0 0
    %1816 = vmatpush.bf16.xpose.msra.mxu0 %v1807
    %1817 = vmatmul.bf16.gmra.mxu0 %v1804
    %v1818 = vpop.f32.mrf.mxu0
    %v1819 = vadd.f32 0.0, %v1818
    %v1820 = vpop.f32.mrf.mxu0
    %1821 = vdwg.mxu0
    %1822 = vrot.lane.b32.xlu0 %v1549, 104
    %v1823 = vpop.permute.xlu0 %1822
    %1824 = vrot.lane.b32.xlu0 %v1405, 104
    %v1825 = vpop.permute.xlu0 %1824
    %v1827 = vsel %vm543, %v1823, 0
    %v1830 = vsel %vm543, %v1825, 0
    %1832 = vmatpush.bf16.xpose.msra.mxu0 0
    %1833 = vmatpush.bf16.xpose.msra.mxu0 0
    %1834 = vmatpush.bf16.xpose.msra.mxu0 0
    %1835 = vmatpush.bf16.xpose.msra.mxu0 0
    %1836 = vmatpush.bf16.xpose.msra.mxu0 0
    %1837 = vmatpush.bf16.xpose.msra.mxu0 0
    %1838 = vmatpush.bf16.xpose.msra.mxu0 0
    %1839 = vmatpush.bf16.xpose.msra.mxu0 %v1830
    %1840 = vmatmul.bf16.gmra.mxu0 %v1827
    %v1841 = vpop.f32.mrf.mxu0
    %v1842 = vadd.f32 0.0, %v1841
    %v1843 = vpop.f32.mrf.mxu0
    %1844 = vdwg.mxu0
    %v1845 = vsel %vm1141, %v1819, -inf
    %1846 = vmax.xlane.f32.xlu0 %v1845
    %v1847 = vpop.xlane.xlu0 %1846
    %v1848 = vsel %vm1141, %v1842, -inf
    %1849 = vmax.xlane.f32.xlu0 %v1848
    %v1850 = vpop.xlane.xlu0 %1849
    %v1851 = vsub.f32 %v1819, %v1847
    %v1852 = vsub.f32 %v1842, %v1850
    %v1853 = vmul.f32 %v1851, 1.442695
    %v1854 = vpow.pop %v1853
    %v1855 = vmul.f32 %v1852, 1.442695
    %v1856 = vpow.pop %v1855
    %v1857 = vsel %vm1141, %v1854, 0.0
    %1858 = vadd.xlane.f32.xlu0 %v1857
    %v1859 = vpop.xlane.xlu0 %1858
    %v1860 = vsel %vm1141, %v1856, 0.0
    %1861 = vadd.xlane.f32.xlu0 %v1860
    %v1862 = vpop.xlane.xlu0 %1861
    %v1863 = vrcp.pop %v1859
    %v1864 = vmul.f32 %v1859, %v1863
    %v1865 = vsub.f32 1.0, %v1864
    %v1866 = vmul.f32 %v1863, %v1865
    %v1867 = vadd.f32 %v1863, %v1866
    %vm1868 = vweird.f32 %v1859
    %vm1869 = vweird.f32 %v1863
    %vm1870 = vmor %vm1868, %vm1869
    %v1871 = vsel %vm1870, %v1863, %v1867
    %v1872 = vand.u32 2147483647, %v1859
    %vm1873 = vcmp.eq.f32.partialorder %v1872, 8.507059e+37
    %v1874 = vand.u32 %v1859, 2147483648
    %v1875 = vor.u32 1.1754944e-38, %v1874
    %v1876 = vsel %vm1873, %v1875, %v1871
    %v1877 = vmul.f32 %v1854, %v1876
    %v1878 = vrcp.pop %v1862
    %v1879 = vmul.f32 %v1862, %v1878
    %v1880 = vsub.f32 1.0, %v1879
    %v1881 = vmul.f32 %v1878, %v1880
    %v1882 = vadd.f32 %v1878, %v1881
    %vm1883 = vweird.f32 %v1862
    %vm1884 = vweird.f32 %v1878
    %vm1885 = vmor %vm1883, %vm1884
    %v1886 = vsel %vm1885, %v1878, %v1882
    %v1887 = vand.u32 2147483647, %v1862
    %vm1888 = vcmp.eq.f32.partialorder %v1887, 8.507059e+37
    %v1889 = vand.u32 %v1862, 2147483648
    %v1890 = vor.u32 1.1754944e-38, %v1889
    %v1891 = vsel %vm1888, %v1890, %v1886
    %v1892 = vmul.f32 %v1856, %v1891
    %v1893 = vpack.c.bf16 %v1877, %v1877
    %v1894 = vpack.c.bf16 %v1892, %v1892
    %1895 = vrot.lane.b32.xlu0 %v1479, 104
    %v1896 = vpop.permute.xlu0 %1895
    %v1899 = vsel %vm1141, %v1893, 0
    %1901 = vmatpush.bf16.msra.mxu0 0
    %1902 = vmatpush.bf16.msra.mxu0 0
    %1903 = vmatpush.bf16.msra.mxu0 0
    %1904 = vmatpush.bf16.msra.mxu0 0
    %1905 = vmatpush.bf16.msra.mxu0 0
    %1906 = vmatpush.bf16.msra.mxu0 0
    %1907 = vmatpush.bf16.msra.mxu0 0
    %1908 = vmatpush.bf16.msra.mxu0 %v1896
    %1909 = vmatmul.bf16.gmra.mxu0 %v1899
    %v1910 = vpop.f32.mrf.mxu0
    %v1911 = vadd.f32 0.0, %v1910
    %v1912 = vpop.f32.mrf.mxu0
    %1913 = vdwg.mxu0
    %1914 = vrot.lane.b32.xlu0 %v1501, 104
    %v1915 = vpop.permute.xlu0 %1914
    %v1918 = vsel %vm1141, %v1894, 0
    %1920 = vmatpush.bf16.msra.mxu0 0
    %1921 = vmatpush.bf16.msra.mxu0 0
    %1922 = vmatpush.bf16.msra.mxu0 0
    %1923 = vmatpush.bf16.msra.mxu0 0
    %1924 = vmatpush.bf16.msra.mxu0 0
    %1925 = vmatpush.bf16.msra.mxu0 0
    %1926 = vmatpush.bf16.msra.mxu0 0
    %1927 = vmatpush.bf16.msra.mxu0 %v1915
    %1928 = vmatmul.bf16.gmra.mxu0 %v1918
    %v1929 = vpop.f32.mrf.mxu0
    %v1930 = vadd.f32 0.0, %v1929
    %v1931 = vpop.f32.mrf.mxu0
    %1932 = vdwg.mxu0
    %v1933 = vadd.f32 %v1797, %v1877
    %v1934 = vadd.f32 %v1798, %v1892
    %v1935 = vmul.f32 %v1933, 0.25
    %v1936 = vmul.f32 %v1934, 0.25
    %1937 = vst.msk [vmem:[#allocation31] sm:$0xff] %vm1141, %v1935
    %1938 = vst.msk [vmem:[#allocation31 + $0x8] sm:$0xff] %vm1141, %v1936
    %1941 = vrot.lane.b32.xlu0 %v1639, 8
    %v1942 = vpop.permute.xlu0 %1941
    %1943 = vrot.lane.b32.xlu0 %v1658, 8
    %v1944 = vpop.permute.xlu0 %1943
    %1949 = vrot.lane.b32.xlu0 %v1775, 16
    %v1950 = vpop.permute.xlu0 %1949
    %1951 = vrot.lane.b32.xlu0 %v1794, 16
    %v1952 = vpop.permute.xlu0 %1951
    %1957 = vrot.lane.b32.xlu0 %v1911, 24
    %v1958 = vpop.permute.xlu0 %1957
    %1959 = vrot.lane.b32.xlu0 %v1930, 24
    %v1960 = vpop.permute.xlu0 %1959
    %v1963 = vsel %vm543, %v1494, %v1942
    %v1964 = vsel %vm543, %v1516, %v1944
    %v1965 = vsel %vm1141, %v1963, %v1950
    %v1966 = vsel %vm1141, %v1964, %v1952
    %v1967 = vsel %vm1144, %v1965, %v1958
    %v1968 = vsel %vm1144, %v1966, %v1960
    %v1969 = vpack.c.bf16 %v1968, %v1967
    %v1970 = vld [vmem:[#allocation22] sm:$0xf]
    %v1971 = vld [vmem:[#allocation22 + $0x4] sm:$0xf]
    %v1972 = vld [vmem:[#allocation22 + $0x8] sm:$0xf]
    %v1973 = vld [vmem:[#allocation22 + $0xc] sm:$0xf]
    %v1974 = vld [vmem:[#allocation23] sm:$0x1]
    %v1976 = vperm.slane %v1974, 0
    %v1982 = vunpack.c.l.b16 %v1970
    %v1983 = vunpack.c.l.b16 %v1971
    %v1984 = vunpack.c.l.b16 %v1972
    %v1985 = vunpack.c.l.b16 %v1973
    %v1986 = vpack.c.b16 %v1983, %v1982
    %v1987 = vpack.c.b16 %v1985, %v1984
    %v1991 = vsel %vm367, %v1969, 0
    %1993 = vmatpush.bf16.msra.mxu0 0
    %1994 = vmatpush.bf16.msra.mxu0 0
    %1995 = vmatpush.bf16.msra.mxu0 0
    %1996 = vmatpush.bf16.msra.mxu0 0
    %1997 = vmatpush.bf16.msra.mxu0 0
    %1998 = vmatpush.bf16.msra.mxu0 0
    %1999 = vmatpush.bf16.msra.mxu0 %v1987
    %2000 = vmatpush.bf16.msra.mxu0 %v1986
    %2001 = vmatmul.bf16.gmra.mxu0 %v1991
    %v2002 = vpop.f32.mrf.mxu0
    %v2003 = vadd.f32 %v1976, %v2002
    %v2004 = vpop.f32.mrf.mxu0
    %v2005 = vadd.f32 %v1976, %v2004
    %2006 = vdwg.mxu0
    %v2007 = vadd.f32 %v1185, %v2003
    %v2008 = vadd.f32 %v1186, %v2005
    %v2009 = vsel %vm367, %v2007, 0.0
    %2010 = vadd.xlane.f32.xlu0 %v2009
    %v2011 = vpop.xlane.xlu0 %2010
    %v2012 = vsel %vm367, %v2008, 0.0
    %2013 = vadd.xlane.f32.xlu0 %v2012
    %v2014 = vpop.xlane.xlu0 %2013
    %v2015 = vmul.f32 %v2011, %v380
    %v2016 = vmul.f32 %v2014, %v380
    %v2017 = vsub.f32 %v2007, %v2015
    %v2018 = vsub.f32 %v2008, %v2016
    %v2019 = vmul.f32 %v2017, %v2017
    %v2020 = vmul.f32 %v2018, %v2018
    %v2021 = vsel %vm367, %v2019, 0.0
    %2022 = vadd.xlane.f32.xlu0 %v2021
    %v2023 = vpop.xlane.xlu0 %2022
    %v2024 = vsel %vm367, %v2020, 0.0
    %2025 = vadd.xlane.f32.xlu0 %v2024
    %v2026 = vpop.xlane.xlu0 %2025
    %v2027 = vmul.f32 %v2023, %v380
    %v2028 = vmul.f32 %v2026, %v380
    %v2029 = vadd.f32 %v2027, 1e-05
    %v2030 = vadd.f32 %v2028, 1e-05
    %v2031 = vrsqrt.pop %v2029
    %v2032 = vmul.f32 %v2031, %v2029
    %v2033 = vmul.f32 %v2032, %v2031
    %v2034 = vmul.f32 0.5, %v2033
    %v2035 = vsub.f32 1.5, %v2034
    %v2036 = vmul.f32 %v2031, %v2035
    %vm2037 = vweird.f32 %v2029
    %vm2038 = vweird.f32 %v2031
    %vm2039 = vmor %vm2037, %vm2038
    %v2040 = vsel %vm2039, %v2031, %v2036
    %v2041 = vrsqrt.pop %v2030
    %v2042 = vmul.f32 %v2041, %v2030
    %v2043 = vmul.f32 %v2042, %v2041
    %v2044 = vmul.f32 0.5, %v2043
    %v2045 = vsub.f32 1.5, %v2044
    %v2046 = vmul.f32 %v2041, %v2045
    %vm2047 = vweird.f32 %v2030
    %vm2048 = vweird.f32 %v2041
    %vm2049 = vmor %vm2047, %vm2048
    %v2050 = vsel %vm2049, %v2041, %v2046
    %v2051 = vmul.f32 %v2017, %v2040
    %v2052 = vmul.f32 %v2018, %v2050
    %v2053 = vld [vmem:[%s13] sm:$0x1]
    %v2055 = vperm.slane %v2053, 0
    %v2057 = vmul.f32 %v2051, %v2055
    %v2058 = vmul.f32 %v2052, %v2055
    %v2059 = vld [vmem:[%s15] sm:$0x1]
    %v2061 = vperm.slane %v2059, 0
    %v2063 = vadd.f32 %v2057, %v2061
    %v2064 = vadd.f32 %v2058, %v2061
    %v2065 = vpack.c.bf16 %v2064, %v2063
    %v2066 = vld [vmem:[#allocation25] sm:$0xf]
    %v2067 = vld [vmem:[#allocation25 + $0x4] sm:$0xf]
    %v2068 = vld [vmem:[#allocation25 + $0x8] sm:$0xf]
    %v2069 = vld [vmem:[#allocation25 + $0xc] sm:$0xf]
    %v2070 = vld [vmem:[#allocation26] sm:$0x1]
    %v2072 = vperm.slane %v2070, 0
    %v2078 = vunpack.c.l.b16 %v2066
    %v2079 = vunpack.c.l.b16 %v2067
    %v2080 = vunpack.c.l.b16 %v2068
    %v2081 = vunpack.c.l.b16 %v2069
    %v2082 = vpack.c.b16 %v2079, %v2078
    %v2083 = vpack.c.b16 %v2081, %v2080
    %v2087 = vsel %vm367, %v2065, 0
    %2089 = vmatpush.bf16.msra.mxu0 0
    %2090 = vmatpush.bf16.msra.mxu0 0
    %2091 = vmatpush.bf16.msra.mxu0 0
    %2092 = vmatpush.bf16.msra.mxu0 0
    %2093 = vmatpush.bf16.msra.mxu0 0
    %2094 = vmatpush.bf16.msra.mxu0 0
    %2095 = vmatpush.bf16.msra.mxu0 %v2083
    %2096 = vmatpush.bf16.msra.mxu0 %v2082
    %2097 = vmatmul.bf16.gmra.mxu0 %v2087
    %v2098 = vpop.f32.mrf.mxu0
    %v2099 = vadd.f32 %v2072, %v2098
    %v2100 = vpop.f32.mrf.mxu0
    %v2101 = vadd.f32 %v2072, %v2100
    %2102 = vdwg.mxu0
    %v2103 = vmax.f32 %v2099, 0.0
    %v2104 = vmax.f32 %v2101, 0.0
    %v2105 = vpack.c.bf16 %v2104, %v2103
    %v2106 = vld [vmem:[%s53] sm:$0xf]
    %v2107 = vld [vmem:[%s53 + $0x4] sm:$0xf]
    %v2108 = vld [vmem:[%s53 + $0x8] sm:$0xf]
    %v2109 = vld [vmem:[%s53 + $0xc] sm:$0xf]
    %v2110 = vld [vmem:[%s53 + $0x10] sm:$0xf]
    %v2111 = vld [vmem:[%s53 + $0x14] sm:$0xf]
    %v2112 = vld [vmem:[%s53 + $0x18] sm:$0xf]
    %v2113 = vld [vmem:[%s53 + $0x1c] sm:$0xf]
    %v2114 = vld [vmem:[%s55] sm:$0x1]
    %v2116 = vperm.slane %v2114, 0
    %v2126 = vunpack.c.l.b16 %v2106
    %v2127 = vunpack.c.l.b16 %v2107
    %v2128 = vunpack.c.l.b16 %v2108
    %v2129 = vunpack.c.l.b16 %v2109
    %v2130 = vunpack.c.l.b16 %v2110
    %v2131 = vunpack.c.l.b16 %v2111
    %v2132 = vunpack.c.l.b16 %v2112
    %v2133 = vunpack.c.l.b16 %v2113
    %v2134 = vpack.c.b16 %v2127, %v2126
    %v2135 = vpack.c.b16 %v2129, %v2128
    %v2136 = vpack.c.b16 %v2131, %v2130
    %v2137 = vpack.c.b16 %v2133, %v2132
    %vm2142 = vcmask 523264
    %v2144 = vsel %vm2142, %v2105, 0
    %2146 = vmatpush.bf16.msra.mxu0 0
    %2147 = vmatpush.bf16.msra.mxu0 0
    %2148 = vmatpush.bf16.msra.mxu0 0
    %2149 = vmatpush.bf16.msra.mxu0 0
    %2150 = vmatpush.bf16.msra.mxu0 %v2137
    %2151 = vmatpush.bf16.msra.mxu0 %v2136
    %2152 = vmatpush.bf16.msra.mxu0 %v2135
    %2153 = vmatpush.bf16.msra.mxu0 %v2134
    %2154 = vmatmul.bf16.gmra.mxu0 %v2144
    %v2155 = vpop.f32.mrf.mxu0
    %v2156 = vadd.f32 %v2116, %v2155
    %v2157 = vpop.f32.mrf.mxu0
    %v2158 = vadd.f32 %v2116, %v2157
    %2159 = vdwg.mxu0
    %v2160 = vadd.f32 %v2007, %v2156
    %v2161 = vadd.f32 %v2008, %v2158
    %2162 = vst.msk [vmem:[#allocation28] sm:$0xff] %vm367, %v2160
    %2163 = vst.msk [vmem:[#allocation28 + $0x8] sm:$0xff] %vm367, %v2161
    // Predicated region
    $region178: #{tpu_custom_call.1} parent=1 // pred_check
      _
    $region179: #{tpu_custom_call.1} parent=1 // pred_check_branch
      %2165 = sbr.rel (0) target = $region181
    $region180: #{tpu_custom_call.1} parent=1 // pred_region
      %2167 = vsyncadd [#allocation4], 0
      %s2168 = sshll.u32 [#allocation28], 4
      %s2169 = int_to_ptr.vmem [resolvable:$true] %s2168
      %s2170 = sshll.u32 %s57, 4
      %s2171 = int_to_ptr.hbm [resolvable:$true] %s2170
      %2176 = dma.vmem_to_hbm [thread:$0]  %s2169, 256, %s2171, [#allocation4], 128, 128, 8
    $region181: #{tpu_custom_call.1} parent=1 // pred_fallthru
      _
    // Predicated region
    $region182: #{tpu_custom_call.1} parent=1 // pred_check
      _
    $region183: #{tpu_custom_call.1} parent=1 // pred_check_branch
      %2178 = sbr.rel (0) target = $region185
    $region184: #{tpu_custom_call.1} parent=1 // pred_region
      %2180 = vsyncadd [#allocation30], 0
      %s2181 = sshll.u32 [#allocation29], 4
      %s2182 = int_to_ptr.vmem [resolvable:$true] %s2181
      %s2183 = sshll.u32 %s59, 4
      %s2184 = int_to_ptr.hbm [resolvable:$true] %s2183
      %2189 = dma.vmem_to_hbm [thread:$0]  %s2182, 256, %s2184, [#allocation30], 128, 128, 8
    $region185: #{tpu_custom_call.1} parent=1 // pred_fallthru
      _
    // Predicated region
    $region186: #{tpu_custom_call.1} parent=1 // pred_check
      _
    $region187: #{tpu_custom_call.1} parent=1 // pred_check_branch
      %2191 = sbr.rel (0) target = $region189
    $region188: #{tpu_custom_call.1} parent=1 // pred_region
      %2193 = vsyncadd [#allocation30], 0
      %s2194 = sshll.u32 [#allocation31], 4
      %s2195 = int_to_ptr.vmem [resolvable:$true] %s2194
      %s2196 = sshll.u32 %s61, 4
      %s2197 = int_to_ptr.hbm [resolvable:$true] %s2196
      %2202 = dma.vmem_to_hbm [thread:$0]  %s2195, 256, %s2197, [#allocation30], 128, 128, 8
    $region189: #{tpu_custom_call.1} parent=1 // pred_fallthru
      _
    // Predicated region
    $region190: #{tpu_custom_call.1} parent=1 // pred_check
      _
    $region191: #{tpu_custom_call.1} parent=1 // pred_check_branch
      %2204 = sbr.rel (0) target = $region193
    $region192: #{tpu_custom_call.1} parent=1 // pred_region
      %2206 = dma.done [#allocation4], 256
    $region193: #{tpu_custom_call.1} parent=1 // pred_fallthru
      _
    // Predicated region
    $region194: #{tpu_custom_call.1} parent=1 // pred_check
      _
    $region195: #{tpu_custom_call.1} parent=1 // pred_check_branch
      %2208 = sbr.rel (0) target = $region197
    $region196: #{tpu_custom_call.1} parent=1 // pred_region
      %2210 = dma.done [#allocation30], 256
    $region197: #{tpu_custom_call.1} parent=1 // pred_fallthru
      _
    // Predicated region
    $region198: #{tpu_custom_call.1} parent=1 // pred_check
      _
    $region199: #{tpu_custom_call.1} parent=1 // pred_check_branch
      %2212 = sbr.rel (0) target = $region201
    $region200: #{tpu_custom_call.1} parent=1 // pred_region
      %2214 = dma.done [#allocation30], 256
    $region201: #{tpu_custom_call.1} parent=1 // pred_fallthru
      _
    %2215 = vsyncpa [#allocation3], 1
    %2216 = vsyncpa [#allocation6], 1
    %2217 = vsyncpa [#allocation9], 1
    %2218 = vsyncpa [#allocation12], 1
    %2219 = vsyncpa [#allocation15], 1
    %2220 = vsyncpa [#allocation18], 1
    %2221 = vsyncpa [#allocation21], 1
    %2222 = vsyncpa [#allocation24], 1
    %2223 = vsyncpa [#allocation27], 1
    %2224 = vsyncpa [#allocation4], 1
    %2225 = vsyncpa [#allocation30], 1

</llo_original>
